<compile_context>
chip_gen: v5e
topology: v5e:2x2
jax: 0.10.0
libtpu: 0.0.40
codegen_flags: <defaults>
</compile_context>

<pallas_src>
import jax
import jax.numpy as jnp
from jax.experimental import pallas as pl
from jax.experimental.pallas import tpu as pltpu

BN_EPS = 1e-5  # PyTorch BatchNorm1d default


def _round_up(x, m):
    return (x + m - 1) // m * m


def _vmem_capacity_bytes():
    try:
        return int(pltpu.get_tpu_info().vmem_capacity_bytes)
    except Exception:
        return 128 * 1024 * 1024


def hidden_kernel(h_ref, r_ref, bn0_ref, w2_ref, x2_ref, xb_buf, z_buf):
    """One (batch tile, relation chunk) step of the core-tensor contraction.

    h_ref   : (tb, d1p)        head-entity embeddings (f32)
    r_ref   : (tb, kc)         relation-embedding chunk (f32)
    bn0_ref : (2, d1p)         rows = [scale0, shift0] (folded bn0)
    w2_ref  : (kc*d1p, d1p)    core-tensor chunk, row kk*d1p+i = W[c*kc+kk, i, :] (bf16)
    x2_ref  : (tb, d1p)        f32 hidden accumulator (resident output block)
    xb_buf  : (tb, d1p)        VMEM scratch, cached bn0(h) in bf16
    z_buf   : (tb, kc*d1p)     VMEM scratch, flattened outer-product chunk (bf16)
    """
    d1p = h_ref.shape[1]
    kc = r_ref.shape[1]
    c = pl.program_id(1)

    @pl.when(c == 0)
    def _():
        # bn0 (eval mode), pre-folded to scale/shift in the glue; dropout = id.
        x = h_ref[...] * bn0_ref[0:1, :] + bn0_ref[1:2, :]
        xb_buf[...] = x.astype(xb_buf.dtype)
        x2_ref[...] = jnp.zeros_like(x2_ref)

    # z[b, kk*d1p + i] = r[b, c*kc + kk] * x[b, i]  -- lane-dense VPU stores
    # (d1p is a multiple of 128), no 0/1 expansion matrices; only the real
    # contraction hits the MXU.  bf16 math is native on v6e/v7x; v5e extends.
    xb = xb_buf[...]
    for kk in range(kc):
        rk = r_ref[:, kk:kk + 1].astype(xb.dtype)            # (tb, 1)
        z_buf[:, kk * d1p:(kk + 1) * d1p] = rk * xb
    # Accumulate this chunk's contribution: (tb, kc*d1p) @ (kc*d1p, d1p).
    x2_ref[...] += jnp.dot(z_buf[...], w2_ref[...],
                           preferred_element_type=jnp.float32)


def scoring_kernel(x2_ref, et_ref, bias_ref, out_ref):
    """pred tile = x2 @ (s1*E)^T + E @ c1   (bn1 folded into et / bias)."""
    # TODO(synk): emit bf16 scores if the downstream ranking loss tolerates it
    # (halves the dominant output-writeback HBM stream).
    out_ref[...] = (
        jnp.dot(x2_ref[...].astype(jnp.bfloat16), et_ref[...],
                preferred_element_type=jnp.float32)
        + bias_ref[...]
    ).astype(out_ref.dtype)


def tucker_forward(h_idx, r_idx, E, R, W, bn0, bn1, *, tb=None, tn=None, kc=8):
    num_ent, d1 = E.shape
    num_rel, d2 = R.shape
    B = h_idx.shape[0]

    vmem_cap = _vmem_capacity_bytes()

    # ---- tile sizes (chip / problem aware) --------------------------------
    # tb is the M dim of both matmuls: W2 and E^T are re-streamed from HBM
    # once per batch tile, so arithmetic intensity ~ tb FLOP/byte.  tb=512
    # sits at/above the v6e/v7x roofline; clamp to the (padded) problem size.
    if tb is None:
        tb = 512
    if tn is None:
        tn = 256 if vmem_cap <= 64 * 1024 * 1024 else 512    # v7x: 64 MiB VMEM
    tb = min(tb, _round_up(max(B, 1), 128))
    tn = min(tn, _round_up(num_ent, 128))
    # TODO(synk): on v7x, if Bp//tb == 1 kernel A runs on one TensorCore; a
    # smaller tb_a (or splitting the d1p output columns) would re-enable the
    # second core at the cost of re-streaming W2 more often.

    # Feature dims: pad d1 to a lane multiple (lane-dense z stores, MXU-aligned
    # K for both matmuls), pad d2 to the relation-chunk size.
    d1p = _round_up(d1, 128)
    d2p = _round_up(d2, kc)
    nC = d2p // kc

    Ef = E.astype(jnp.float32)
    Rf = R.astype(jnp.float32)

    # ---- glue: embedding gathers + BN folding + re-layout (plain JAX) -----
    h = jnp.take(Ef, h_idx, axis=0)                        # (B, d1)
    r = jnp.take(Rf, r_idx, axis=0)                        # (B, d2)

    # bn0 (eval) folded to scale/shift vectors.
    s0 = bn0[0] * jax.lax.rsqrt(bn0[3] + BN_EPS)
    c0 = bn0[1] - bn0[2] * s0
    bn0p = jnp.stack([s0, c0]).astype(jnp.float32)         # (2, d1)

    # bn1 (eval) folded into the scoring matmul: pred = x2 @ (s1*E)^T + E @ c1
    s1 = bn1[0] * jax.lax.rsqrt(bn1[3] + BN_EPS)
    c1 = bn1[1] - bn1[2] * s1
    et = (Ef * s1[None, :]).T.astype(jnp.bfloat16)         # (d1, N)
    bias = (Ef @ c1)[None, :].astype(jnp.float32)          # (1, N)

    # Core tensor: row k*d1p + i of w2 holds W[k, i, :] (zero-padded).
    Wp = jnp.pad(W.astype(jnp.float32),
                 ((0, d2p - d2), (0, d1p - d1), (0, d1p - d1)))
    w2 = Wp.reshape(d2p * d1p, d1p).astype(jnp.bfloat16)

    # ---- pad feature / batch / entity dims to tile multiples --------------
    Bp = _round_up(max(B, 1), tb)
    Np = _round_up(num_ent, tn)
    h = jnp.pad(h, ((0, Bp - B), (0, d1p - d1)))
    r = jnp.pad(r, ((0, Bp - B), (0, d2p - d2)))
    bn0p = jnp.pad(bn0p, ((0, 0), (0, d1p - d1)))
    et = jnp.pad(et, ((0, d1p - d1), (0, Np - num_ent)))
    bias = jnp.pad(bias, ((0, 0), (0, Np - num_ent)))

    # Relation chunks laid out so the kernel only needs static slices:
    # r_chunks[c, b, kk] = r[b, c*kc + kk]
    r_chunks = r.reshape(Bp, nC, kc).transpose(1, 0, 2)    # (nC, Bp, kc)

    n_btiles = Bp // tb
    n_ntiles = Np // tn

    # ---- kernel A: hidden x2 = (r (x) bn0(h)) . W --------------------------
    resident_a = (2 * (tb * d1p * 4 + tb * kc * 4 + 2 * d1p * 4
                       + kc * d1p * d1p * 2 + tb * d1p * 4)
                  + tb * d1p * 2 + tb * kc * d1p * 2)
    vmem_a = int(min(max(2 * resident_a, 32 * 1024 * 1024),
                     int(vmem_cap * 0.9)))
    flops_a = 2 * Bp * d2p * d1p * d1p
    bytes_a = (Bp * d1p * 4 + Bp * d2p * 4 + 2 * d1p * 4
               + n_btiles * d2p * d1p * d1p * 2 + Bp * d1p * 4)

    x2 = pl.pallas_call(
        hidden_kernel,
        out_shape=jax.ShapeDtypeStruct((Bp, d1p), jnp.float32),
        grid_spec=pltpu.PrefetchScalarGridSpec(
            num_scalar_prefetch=0,
            grid=(n_btiles, nC),
            in_specs=[
                pl.BlockSpec((tb, d1p), lambda i, c: (i, 0)),          # h
                pl.BlockSpec((None, tb, kc), lambda i, c: (c, i, 0)),  # r chunk
                pl.BlockSpec((2, d1p), lambda i, c: (0, 0)),           # bn0
                pl.BlockSpec((kc * d1p, d1p), lambda i, c: (c, 0)),    # W2 chunk (streamed)
            ],
            out_specs=pl.BlockSpec((tb, d1p), lambda i, c: (i, 0)),
            scratch_shapes=[
                pltpu.VMEM((tb, d1p), jnp.bfloat16),        # cached bn0(h)
                pltpu.VMEM((tb, kc * d1p), jnp.bfloat16),   # z chunk
            ],
        ),
        compiler_params=pltpu.CompilerParams(
            dimension_semantics=("parallel", "arbitrary"),
            vmem_limit_bytes=vmem_a,
        ),
        cost_estimate=pl.CostEstimate(
            flops=flops_a, transcendentals=0, bytes_accessed=bytes_a),
    )(h, r_chunks, bn0p, w2)

    # ---- kernel B: pred = bn1(x2) @ E^T  (both grid axes "parallel") -------
    resident_b = 2 * (tb * d1p * 4 + d1p * tn * 2 + 8 * tn * 4 + tb * tn * 4)
    vmem_b = int(min(max(2 * resident_b, 32 * 1024 * 1024),
                     int(vmem_cap * 0.9)))
    flops_b = 2 * Bp * d1p * Np
    bytes_b = Bp * d1p * 4 + n_btiles * (d1p * Np * 2 + Np * 4) + Bp * Np * 4

    pred = pl.pallas_call(
        scoring_kernel,
        out_shape=jax.ShapeDtypeStruct((Bp, Np), jnp.float32),
        grid_spec=pltpu.PrefetchScalarGridSpec(
            num_scalar_prefetch=0,
            grid=(n_btiles, n_ntiles),
            in_specs=[
                pl.BlockSpec((tb, d1p), lambda i, j: (i, 0)),   # x2 (f32)
                pl.BlockSpec((d1p, tn), lambda i, j: (0, j)),   # bn1-scaled E^T
                pl.BlockSpec((1, tn), lambda i, j: (0, j)),     # bias row
            ],
            out_specs=pl.BlockSpec((tb, tn), lambda i, j: (i, j)),
        ),
        compiler_params=pltpu.CompilerParams(
            dimension_semantics=("parallel", "parallel"),
            vmem_limit_bytes=vmem_b,
        ),
        cost_estimate=pl.CostEstimate(
            flops=flops_b, transcendentals=0, bytes_accessed=bytes_b),
    )(x2, et, bias)

    return pred[:B, :num_ent]


def tucker_reference(h_idx, r_idx, E, R, W, bn0, bn1):
    """Pure-JAX f32 reference mirroring the PyTorch forward (eval mode)."""
    d1 = E.shape[1]
    h = E[h_idx]
    x = (h - bn0[2]) / jnp.sqrt(bn0[3] + BN_EPS) * bn0[0] + bn0[1]
    r = R[r_idx]
    W_mat = (r @ W.reshape(W.shape[0], -1)).reshape(-1, d1, d1)
    x = jnp.einsum('bi,bij->bj', x, W_mat)
    x = (x - bn1[2]) / jnp.sqrt(bn1[3] + BN_EPS) * bn1[0] + bn1[1]
    return x @ E.T


if __name__ == "__main__":
    key = jax.random.PRNGKey(0)
    num_ent, num_rel, d1 = 256, 16, 32
    d2 = d1
    B = 256

    keys = jax.random.split(key, 13)
    # xavier_normal_ equivalents for the embedding tables
    E = jax.random.normal(keys[0], (num_ent, d1), jnp.float32) * jnp.sqrt(2.0 / (num_ent + d1))
    R = jax.random.normal(keys[1], (num_rel, d2), jnp.float32) * jnp.sqrt(2.0 / (num_rel + d2))
    # core tensor W ~ U(-1, 1)
    W = jax.random.uniform(keys[2], (d2, d1, d1), jnp.float32, -1.0, 1.0)
    # BatchNorm1d params (eval mode): rows = gamma, beta, running_mean, running_var
    bn0 = jnp.stack([
        jax.random.uniform(keys[3], (d1,), jnp.float32, 0.5, 1.5),
        jax.random.normal(keys[4], (d1,), jnp.float32) * 0.1,
        jax.random.normal(keys[5], (d1,), jnp.float32) * 0.1,
        jax.random.uniform(keys[6], (d1,), jnp.float32, 0.5, 1.5),
    ]).astype(jnp.float32)
    bn1 = jnp.stack([
        jax.random.uniform(keys[7], (d1,), jnp.float32, 0.5, 1.5),
        jax.random.normal(keys[8], (d1,), jnp.float32) * 0.1,
        jax.random.normal(keys[9], (d1,), jnp.float32) * 0.1,
        jax.random.uniform(keys[10], (d1,), jnp.float32, 0.5, 1.5),
    ]).astype(jnp.float32)

    h_idx = jax.random.randint(keys[11], (B,), 0, num_ent)
    r_idx = jax.random.randint(keys[12], (B,), 0, num_rel)

    pred = tucker_forward(h_idx, r_idx, E, R, W, bn0, bn1)
    pred = jax.block_until_ready(pred)

    ref = tucker_reference(h_idx, r_idx, E, R, W, bn0, bn1)
    assert pred.shape == (B, num_ent)
    # bf16 matmul operands with f32 accumulation -> relaxed tolerance vs f32 ref.
    assert jnp.allclose(pred, ref, rtol=1e-2, atol=1e-2), \
        float(jnp.max(jnp.abs(pred - ref)))
    # TODO(synk): train-mode BatchNorm (batch statistics) and dropout are not
    # modeled; forward implemented in eval mode as is standard for inference kernels.
    print("KERNEL_OK")
</pallas_src>

<mosaic_0001>
module attributes {stable_mosaic.version = 11 : i64} {
  func.func @hidden_kernel(%arg0: i32, %arg1: i32, %arg2: memref<256x128xf32, #tpu.memory_space<vmem>>, %arg3: memref<1x256x8xf32, #tpu.memory_space<vmem>>, %arg4: memref<2x128xf32, #tpu.memory_space<vmem>>, %arg5: memref<1024x128xbf16, #tpu.memory_space<vmem>>, %arg6: memref<256x128xf32, #tpu.memory_space<vmem>>, %arg7: memref<256x128xbf16, #tpu.memory_space<vmem>>, %arg8: memref<256x1024xbf16, #tpu.memory_space<vmem>>) attributes {dimension_semantics = [#tpu.dimension_semantics<parallel>, #tpu.dimension_semantics<arbitrary>], iteration_bounds = array<i64: 1, 4>, scalar_prefetch = 0 : i64, scratch_operands = 2 : i64, tpu.core_type = #tpu.core_type<tc>, window_params = [{transform_indices = @transform_0, window_bounds = array<i64: 256, 128>}, {transform_indices = @transform_1, window_bounds = array<i64: 1, 256, 8>}, {pipeline_mode = #tpu.pipeline_mode<synchronous>, transform_indices = @transform_2, window_bounds = array<i64: 2, 128>}, {transform_indices = @transform_3, window_bounds = array<i64: 1024, 128>}, {transform_indices = @transform_4, window_bounds = array<i64: 256, 128>}]} {
    %c0_i32 = arith.constant 0 : i32
    %0 = arith.cmpi eq, %arg1, %c0_i32 : i32
    %1 = arith.extui %0 : i1 to i32
    %c0_i32_0 = arith.constant 0 : i32
    %2 = arith.cmpi ne, %1, %c0_i32_0 : i32
    scf.if %2 {
      %c0_36 = arith.constant 0 : index
      %c0_37 = arith.constant 0 : index
      %58 = vector.load %arg2[%c0_36, %c0_37] : memref<256x128xf32, #tpu.memory_space<vmem>>, vector<256x128xf32>
      %c0_38 = arith.constant 0 : index
      %c0_39 = arith.constant 0 : index
      %59 = vector.load %arg4[%c0_38, %c0_39] : memref<2x128xf32, #tpu.memory_space<vmem>>, vector<1x128xf32>
      %60 = vector.broadcast %59 : vector<1x128xf32> to vector<256x128xf32>
      %61 = arith.mulf %58, %60 : vector<256x128xf32>
      %c1_40 = arith.constant 1 : index
      %c0_41 = arith.constant 0 : index
      %62 = vector.load %arg4[%c1_40, %c0_41] : memref<2x128xf32, #tpu.memory_space<vmem>>, vector<1x128xf32>
      %63 = vector.broadcast %62 : vector<1x128xf32> to vector<256x128xf32>
      %64 = arith.addf %61, %63 : vector<256x128xf32>
      %65 = arith.truncf %64 : vector<256x128xf32> to vector<256x128xbf16>
      %c0_42 = arith.constant 0 : index
      %c0_43 = arith.constant 0 : index
      %66 = vector.load %arg7[%c0_42, %c0_43] : memref<256x128xbf16, #tpu.memory_space<vmem>>, vector<256x128xbf16>
      tpu.vector_store %arg7[%c0_42, %c0_43], %65 {strides = array<i32>} : memref<256x128xbf16, #tpu.memory_space<vmem>>, vector<256x128xbf16>,
      %cst_44 = arith.constant 0.000000e+00 : f32
      %67 = vector.broadcast %cst_44 : f32 to vector<256x128xf32>
      %c0_45 = arith.constant 0 : index
      %c0_46 = arith.constant 0 : index
      %68 = vector.load %arg6[%c0_45, %c0_46] : memref<256x128xf32, #tpu.memory_space<vmem>>, vector<256x128xf32>
      tpu.vector_store %arg6[%c0_45, %c0_46], %67 {strides = array<i32>} : memref<256x128xf32, #tpu.memory_space<vmem>>, vector<256x128xf32>,
    } else {
    }
    %c0 = arith.constant 0 : index
    %c0_1 = arith.constant 0 : index
    %3 = vector.load %arg7[%c0, %c0_1] : memref<256x128xbf16, #tpu.memory_space<vmem>>, vector<256x128xbf16>
    %c0_2 = arith.constant 0 : index
    %c0_3 = arith.constant 0 : index
    %c0_4 = arith.constant 0 : index
    %4 = vector.load %arg3[%c0_2, %c0_3, %c0_4] : memref<1x256x8xf32, #tpu.memory_space<vmem>>, vector<1x256x1xf32>
    %5 = vector.shape_cast %4 : vector<1x256x1xf32> to vector<256x1xf32>
    %6 = arith.truncf %5 : vector<256x1xf32> to vector<256x1xbf16>
    %7 = vector.broadcast %6 : vector<256x1xbf16> to vector<256x128xbf16>
    %8 = arith.mulf %7, %3 : vector<256x128xbf16>
    %c0_5 = arith.constant 0 : index
    %c0_6 = arith.constant 0 : index
    %9 = vector.load %arg8[%c0_5, %c0_6] : memref<256x1024xbf16, #tpu.memory_space<vmem>>, vector<256x128xbf16>
    tpu.vector_store %arg8[%c0_5, %c0_6], %8 {strides = array<i32>} : memref<256x1024xbf16, #tpu.memory_space<vmem>>, vector<256x128xbf16>,
    %c0_7 = arith.constant 0 : index
    %c0_8 = arith.constant 0 : index
    %c1 = arith.constant 1 : index
    %10 = vector.load %arg3[%c0_7, %c0_8, %c1] : memref<1x256x8xf32, #tpu.memory_space<vmem>>, vector<1x256x1xf32>
    %11 = vector.shape_cast %10 : vector<1x256x1xf32> to vector<256x1xf32>
    %12 = arith.truncf %11 : vector<256x1xf32> to vector<256x1xbf16>
    %13 = vector.broadcast %12 : vector<256x1xbf16> to vector<256x128xbf16>
    %14 = arith.mulf %13, %3 : vector<256x128xbf16>
    %c0_9 = arith.constant 0 : index
    %c128 = arith.constant 128 : index
    %15 = vector.load %arg8[%c0_9, %c128] : memref<256x1024xbf16, #tpu.memory_space<vmem>>, vector<256x128xbf16>
    tpu.vector_store %arg8[%c0_9, %c128], %14 {strides = array<i32>} : memref<256x1024xbf16, #tpu.memory_space<vmem>>, vector<256x128xbf16>,
    %c0_10 = arith.constant 0 : index
    %c0_11 = arith.constant 0 : index
    %c2 = arith.constant 2 : index
    %16 = vector.load %arg3[%c0_10, %c0_11, %c2] : memref<1x256x8xf32, #tpu.memory_space<vmem>>, vector<1x256x1xf32>
    %17 = vector.shape_cast %16 : vector<1x256x1xf32> to vector<256x1xf32>
    %18 = arith.truncf %17 : vector<256x1xf32> to vector<256x1xbf16>
    %19 = vector.broadcast %18 : vector<256x1xbf16> to vector<256x128xbf16>
    %20 = arith.mulf %19, %3 : vector<256x128xbf16>
    %c0_12 = arith.constant 0 : index
    %c256 = arith.constant 256 : index
    %21 = vector.load %arg8[%c0_12, %c256] : memref<256x1024xbf16, #tpu.memory_space<vmem>>, vector<256x128xbf16>
    tpu.vector_store %arg8[%c0_12, %c256], %20 {strides = array<i32>} : memref<256x1024xbf16, #tpu.memory_space<vmem>>, vector<256x128xbf16>,
    %c0_13 = arith.constant 0 : index
    %c0_14 = arith.constant 0 : index
    %c3 = arith.constant 3 : index
    %22 = vector.load %arg3[%c0_13, %c0_14, %c3] : memref<1x256x8xf32, #tpu.memory_space<vmem>>, vector<1x256x1xf32>
    %23 = vector.shape_cast %22 : vector<1x256x1xf32> to vector<256x1xf32>
    %24 = arith.truncf %23 : vector<256x1xf32> to vector<256x1xbf16>
    %25 = vector.broadcast %24 : vector<256x1xbf16> to vector<256x128xbf16>
    %26 = arith.mulf %25, %3 : vector<256x128xbf16>
    %c0_15 = arith.constant 0 : index
    %c384 = arith.constant 384 : index
    %27 = vector.load %arg8[%c0_15, %c384] : memref<256x1024xbf16, #tpu.memory_space<vmem>>, vector<256x128xbf16>
    tpu.vector_store %arg8[%c0_15, %c384], %26 {strides = array<i32>} : memref<256x1024xbf16, #tpu.memory_space<vmem>>, vector<256x128xbf16>,
    %c0_16 = arith.constant 0 : index
    %c0_17 = arith.constant 0 : index
    %c4 = arith.constant 4 : index
    %28 = vector.load %arg3[%c0_16, %c0_17, %c4] : memref<1x256x8xf32, #tpu.memory_space<vmem>>, vector<1x256x1xf32>
    %29 = vector.shape_cast %28 : vector<1x256x1xf32> to vector<256x1xf32>
    %30 = arith.truncf %29 : vector<256x1xf32> to vector<256x1xbf16>
    %31 = vector.broadcast %30 : vector<256x1xbf16> to vector<256x128xbf16>
    %32 = arith.mulf %31, %3 : vector<256x128xbf16>
    %c0_18 = arith.constant 0 : index
    %c512 = arith.constant 512 : index
    %33 = vector.load %arg8[%c0_18, %c512] : memref<256x1024xbf16, #tpu.memory_space<vmem>>, vector<256x128xbf16>
    tpu.vector_store %arg8[%c0_18, %c512], %32 {strides = array<i32>} : memref<256x1024xbf16, #tpu.memory_space<vmem>>, vector<256x128xbf16>,
    %c0_19 = arith.constant 0 : index
    %c0_20 = arith.constant 0 : index
    %c5 = arith.constant 5 : index
    %34 = vector.load %arg3[%c0_19, %c0_20, %c5] : memref<1x256x8xf32, #tpu.memory_space<vmem>>, vector<1x256x1xf32>
    %35 = vector.shape_cast %34 : vector<1x256x1xf32> to vector<256x1xf32>
    %36 = arith.truncf %35 : vector<256x1xf32> to vector<256x1xbf16>
    %37 = vector.broadcast %36 : vector<256x1xbf16> to vector<256x128xbf16>
    %38 = arith.mulf %37, %3 : vector<256x128xbf16>
    %c0_21 = arith.constant 0 : index
    %c640 = arith.constant 640 : index
    %39 = vector.load %arg8[%c0_21, %c640] : memref<256x1024xbf16, #tpu.memory_space<vmem>>, vector<256x128xbf16>
    tpu.vector_store %arg8[%c0_21, %c640], %38 {strides = array<i32>} : memref<256x1024xbf16, #tpu.memory_space<vmem>>, vector<256x128xbf16>,
    %c0_22 = arith.constant 0 : index
    %c0_23 = arith.constant 0 : index
    %c6 = arith.constant 6 : index
    %40 = vector.load %arg3[%c0_22, %c0_23, %c6] : memref<1x256x8xf32, #tpu.memory_space<vmem>>, vector<1x256x1xf32>
    %41 = vector.shape_cast %40 : vector<1x256x1xf32> to vector<256x1xf32>
    %42 = arith.truncf %41 : vector<256x1xf32> to vector<256x1xbf16>
    %43 = vector.broadcast %42 : vector<256x1xbf16> to vector<256x128xbf16>
    %44 = arith.mulf %43, %3 : vector<256x128xbf16>
    %c0_24 = arith.constant 0 : index
    %c768 = arith.constant 768 : index
    %45 = vector.load %arg8[%c0_24, %c768] : memref<256x1024xbf16, #tpu.memory_space<vmem>>, vector<256x128xbf16>
    tpu.vector_store %arg8[%c0_24, %c768], %44 {strides = array<i32>} : memref<256x1024xbf16, #tpu.memory_space<vmem>>, vector<256x128xbf16>,
    %c0_25 = arith.constant 0 : index
    %c0_26 = arith.constant 0 : index
    %c7 = arith.constant 7 : index
    %46 = vector.load %arg3[%c0_25, %c0_26, %c7] : memref<1x256x8xf32, #tpu.memory_space<vmem>>, vector<1x256x1xf32>
    %47 = vector.shape_cast %46 : vector<1x256x1xf32> to vector<256x1xf32>
    %48 = arith.truncf %47 : vector<256x1xf32> to vector<256x1xbf16>
    %49 = vector.broadcast %48 : vector<256x1xbf16> to vector<256x128xbf16>
    %50 = arith.mulf %49, %3 : vector<256x128xbf16>
    %c0_27 = arith.constant 0 : index
    %c896 = arith.constant 896 : index
    %51 = vector.load %arg8[%c0_27, %c896] : memref<256x1024xbf16, #tpu.memory_space<vmem>>, vector<256x128xbf16>
    tpu.vector_store %arg8[%c0_27, %c896], %50 {strides = array<i32>} : memref<256x1024xbf16, #tpu.memory_space<vmem>>, vector<256x128xbf16>,
    %c0_28 = arith.constant 0 : index
    %c0_29 = arith.constant 0 : index
    %52 = vector.load %arg6[%c0_28, %c0_29] : memref<256x128xf32, #tpu.memory_space<vmem>>, vector<256x128xf32>
    %c0_30 = arith.constant 0 : index
    %c0_31 = arith.constant 0 : index
    %53 = vector.load %arg8[%c0_30, %c0_31] : memref<256x1024xbf16, #tpu.memory_space<vmem>>, vector<256x1024xbf16>
    %c0_32 = arith.constant 0 : index
    %c0_33 = arith.constant 0 : index
    %54 = vector.load %arg5[%c0_32, %c0_33] : memref<1024x128xbf16, #tpu.memory_space<vmem>>, vector<1024x128xbf16>
    %cst = arith.constant dense<0.000000e+00> : vector<256x128xf32>
    %55 = tpu.matmul %53, %54, %cst {dimension_numbers = #tpu.dot_dimension_numbers<[1], [0], [0], [1], [0, 0, 1, 1], [], []>} : vector<256x1024xbf16>, vector<1024x128xbf16>, vector<256x128xf32> -> vector<256x128xf32>
    %56 = arith.addf %52, %55 : vector<256x128xf32>
    %c0_34 = arith.constant 0 : index
    %c0_35 = arith.constant 0 : index
    %57 = vector.load %arg6[%c0_34, %c0_35] : memref<256x128xf32, #tpu.memory_space<vmem>>, vector<256x128xf32>
    tpu.vector_store %arg6[%c0_34, %c0_35], %56 {strides = array<i32>} : memref<256x128xf32, #tpu.memory_space<vmem>>, vector<256x128xf32>,
    return
  }
  func.func @transform_0(%arg0: i32, %arg1: i32) -> (i32, i32) {
    %c0_i32 = arith.constant 0 : i32
    %c0_i32_0 = arith.constant 0 : i32
    return %arg0, %c0_i32 : i32, i32
  }
  func.func @transform_1(%arg0: i32, %arg1: i32) -> (i32, i32, i32) {
    %c0_i32 = arith.constant 0 : i32
    %c0_i32_0 = arith.constant 0 : i32
    return %arg1, %arg0, %c0_i32 : i32, i32, i32
  }
  func.func @transform_2(%arg0: i32, %arg1: i32) -> (i32, i32) {
    %c0_i32 = arith.constant 0 : i32
    %c0_i32_0 = arith.constant 0 : i32
    %c0_i32_1 = arith.constant 0 : i32
    return %c0_i32, %c0_i32_0 : i32, i32
  }
  func.func @transform_3(%arg0: i32, %arg1: i32) -> (i32, i32) {
    %c0_i32 = arith.constant 0 : i32
    %c0_i32_0 = arith.constant 0 : i32
    return %arg1, %c0_i32 : i32, i32
  }
  func.func @transform_4(%arg0: i32, %arg1: i32) -> (i32, i32) {
    %c0_i32 = arith.constant 0 : i32
    %c0_i32_0 = arith.constant 0 : i32
    return %arg0, %c0_i32 : i32, i32
  }
}

</mosaic_0001>

<llo_original>
// kernel: tpu_custom_call.1
$region0: #{tpu_custom_call.1}
  #allocation0 [shape = 'u32[]', space=smem, size = 0x4, offset = 0x4, fixed_abs, tag = 'smem constant byte address 0x4 - core index']
  #allocation1 [shape = 'u32[72,128]{1,0:T(1,128)}', space=vmem, size = 0x9000, scoped, tag = 'internal scratch']
  #allocation2 [shape = 'bf16[256,128]{1,0:T(8,128)(2,1)}', space=vmem, size = 0x10000, scoped, tag = 'scratch operand']
  #allocation3 [shape = 'bf16[256,1024]{1,0:T(8,128)(2,1)}', space=vmem, size = 0x80000, scoped, tag = 'scratch operand']
  %s0 = inlined_call_operand.vmem [shape: f32[256,128], index: 0, kind: input, shape index: {}]
  %s1 = inlined_call_operand.vmem [shape: f32[4,256,8], index: 1, kind: input, shape index: {}]
  %s2 = inlined_call_operand.vmem [shape: f32[2,128], index: 2, kind: input, shape index: {}]
  %s3 = inlined_call_operand.hbm [shape: bf16[4096,128], index: 3, kind: input, shape index: {}]
  %s4 = inlined_call_operand.hbm [shape: f32[256,128], index: 4, kind: output, shape index: {}]
  %s5 = sld [smem:[#allocation0]]
  $region57: #{tpu_custom_call.1} parent=0
    _
  %s7 = ssub.s32 1, %s5
  %s8 = scalar_select 0, %s7, %s5
  $region1: #{tpu_custom_call.1} parent=0
    #allocation4 [shape = 'u8[524288]{0}', space=vmem, size = 0x80000, scoped, tag = 'input window, operand 3']
    #allocation5 [shape = 's32[2]{0}', space=sflag, size = 0x8, scoped, tag = 'scoped memory for tpu_custom_call.1']
    #allocation6 [shape = 's32[2]{0}', space=sflag, size = 0x8, scoped, tag = 'scoped memory for tpu_custom_call.1']
    #allocation7 [shape = 'u8[131072]{0}', space=vmem, size = 0x20000, scoped, tag = 'output window, operand 0, single buffered']
    %9 = vsyncpa [#allocation5], 0
    %s10 = scalar_lea.sflag [#allocation5], 1
    %11 = vsyncpa %s10, 0
    %12 = vsyncpa [#allocation6], 0
    loop: start=0, step=1, limit=6
    $region2: #{tpu_custom_call.1} parent=1 // loop_pre_header
      _
    $region3: #{tpu_custom_call.1} parent=1 // loop_header
      %s14 = sphi 0, %s18
      %p15 = scmp.ge.s32.totalorder %s14, 6
      %s21 = sphi 0, %s33
      %s22 = sphi 0, %s29
      %s23 = sphi 0, %s21
      %s24 = sphi 0, %s22
      %s25 = sphi 0, %s23
      %s26 = sphi 0, %s24
      %s36 = sphi 0, %s38
      %s39 = sphi 0, %s36
      %s40 = sphi 0, %s39
      %s56 = sphi 0, %s40
      %s64 = sphi 0, %s66
      %s67 = sphi 0, %s64
      %s68 = sphi 0, %s67
      %s84 = sphi 0, %s68
      %s88 = sphi 0, %s88
      %s90 = sphi 0, %s88
      %s91 = sphi 0, %s90
      %s105 = sphi 0, %s91
      %s111 = sphi 0, %s113
      %s114 = sphi 0, %s111
      %s115 = sphi 0, %s114
      %s131 = sphi 0, %s115
      %s137 = sphi 0, %s139
      %s140 = sphi 0, %s137
      %s141 = sphi 0, %s140
      %s157 = sphi 0, %s141
    $region4: #{tpu_custom_call.1} parent=1 // loop_header_branch
      %17 = sbr.rel (%p15) target = $region8
    $region5: #{tpu_custom_call.1} parent=1 // loop_body
      %s19 = ssub.s32 %s14, 1
      %s20 = ssub.s32 %s14, 2
      %s27 = sadd.s32 1, %s22
      %p28 = scmp.ge.s32.totalorder %s27, 4
      %s29 = scalar_select %p28, 0, %s27
      %s30 = sadd.s32 1, %s21
      %s31 = scalar_select %p28, %s30, %s21
      %p32 = scmp.ge.s32.totalorder %s31, 1
      %s33 = scalar_select %p32, 0, %s31
      %s34 = ssub.s32 %s21, %s33
      %p35 = scmp.eq.s32.totalorder %s34, 0
      %s37 = sadd.s32 %s36, 1
      %s38 = scalar_select %p35, %s36, %s37
      %p41 = pneg %p35
      %p42 = scmp.eq.s32.totalorder %s14, 3
      %p43 = por %p41, %p42
      %p44 = scmp.ne.s32.totalorder %s36, %s39
      %p45 = scmp.eq.s32.totalorder %s14, 0
      %p46 = por %p44, %p45
      %p47 = scmp.ne.s32.totalorder %s36, %s39
      %p48 = scmp.eq.s32.totalorder %s19, 3
      %p49 = por %p47, %p48
      %p50 = scmp.ne.s32.totalorder %s39, %s40
      %p51 = scmp.eq.s32.totalorder %s19, 0
      %p52 = por %p50, %p51
      %p53 = scmp.ne.s32.totalorder %s39, %s40
      %p54 = scmp.eq.s32.totalorder %s20, 3
      %p55 = por %p53, %p54
      %p57 = scmp.ne.s32.totalorder %s40, %s56
      %p58 = scmp.eq.s32.totalorder %s20, 0
      %p59 = por %p57, %p58
      %s60 = ssub.s32 %s22, %s29
      %s61 = ssub.s32 %s21, %s33
      %s62 = sor.u32 %s60, %s61
      %p63 = scmp.eq.s32.totalorder %s62, 0
      %s65 = sadd.s32 %s64, 1
      %s66 = scalar_select %p63, %s64, %s65
      %p69 = pneg %p63
      %p70 = scmp.eq.s32.totalorder %s14, 3
      %p71 = por %p69, %p70
      %p72 = scmp.ne.s32.totalorder %s64, %s67
      %p73 = scmp.eq.s32.totalorder %s14, 0
      %p74 = por %p72, %p73
      %p75 = scmp.ne.s32.totalorder %s64, %s67
      %p76 = scmp.eq.s32.totalorder %s19, 3
      %p77 = por %p75, %p76
      %p78 = scmp.ne.s32.totalorder %s67, %s68
      %p79 = scmp.eq.s32.totalorder %s19, 0
      %p80 = por %p78, %p79
      %p81 = scmp.ne.s32.totalorder %s67, %s68
      %p82 = scmp.eq.s32.totalorder %s20, 3
      %p83 = por %p81, %p82
      %p85 = scmp.ne.s32.totalorder %s68, %s84
      %p86 = scmp.eq.s32.totalorder %s20, 0
      %p87 = por %p85, %p86
      %s89 = sadd.s32 %s88, 1
      %p92 = scmp.eq.s32.totalorder %s14, 3
      %p93 = scmp.ne.s32.totalorder %s88, %s90
      %p94 = scmp.eq.s32.totalorder %s14, 0
      %p95 = por %p93, %p94
      %p96 = scmp.ne.s32.totalorder %s88, %s90
      %p97 = scmp.eq.s32.totalorder %s19, 3
      %p98 = por %p96, %p97
      %p99 = scmp.ne.s32.totalorder %s90, %s91
      %p100 = scmp.eq.s32.totalorder %s19, 0
      %p101 = por %p99, %p100
      %p102 = scmp.ne.s32.totalorder %s90, %s91
      %p103 = scmp.eq.s32.totalorder %s20, 3
      %p104 = por %p102, %p103
      %p106 = scmp.ne.s32.totalorder %s91, %s105
      %p107 = scmp.eq.s32.totalorder %s20, 0
      %p108 = por %p106, %p107
      %s109 = ssub.s32 %s22, %s29
      %p110 = scmp.eq.s32.totalorder %s109, 0
      %s112 = sadd.s32 %s111, 1
      %s113 = scalar_select %p110, %s111, %s112
      %p116 = pneg %p110
      %p117 = scmp.eq.s32.totalorder %s14, 3
      %p118 = por %p116, %p117
      %p119 = scmp.ne.s32.totalorder %s111, %s114
      %p120 = scmp.eq.s32.totalorder %s14, 0
      %p121 = por %p119, %p120
      %p122 = scmp.ne.s32.totalorder %s111, %s114
      %p123 = scmp.eq.s32.totalorder %s19, 3
      %p124 = por %p122, %p123
      %p125 = scmp.ne.s32.totalorder %s114, %s115
      %p126 = scmp.eq.s32.totalorder %s19, 0
      %p127 = por %p125, %p126
      %p128 = scmp.ne.s32.totalorder %s114, %s115
      %p129 = scmp.eq.s32.totalorder %s20, 3
      %p130 = por %p128, %p129
      %p132 = scmp.ne.s32.totalorder %s115, %s131
      %p133 = scmp.eq.s32.totalorder %s20, 0
      %p134 = por %p132, %p133
      %s135 = ssub.s32 %s21, %s33
      %p136 = scmp.eq.s32.totalorder %s135, 0
      %s138 = sadd.s32 %s137, 1
      %s139 = scalar_select %p136, %s137, %s138
      %p142 = pneg %p136
      %p143 = scmp.eq.s32.totalorder %s14, 3
      %p144 = por %p142, %p143
      %p145 = scmp.ne.s32.totalorder %s137, %s140
      %p146 = scmp.eq.s32.totalorder %s14, 0
      %p147 = por %p145, %p146
      %p148 = scmp.ne.s32.totalorder %s137, %s140
      %p149 = scmp.eq.s32.totalorder %s19, 3
      %p150 = por %p148, %p149
      %p151 = scmp.ne.s32.totalorder %s140, %s141
      %p152 = scmp.eq.s32.totalorder %s19, 0
      %p153 = por %p151, %p152
      %p154 = scmp.ne.s32.totalorder %s140, %s141
      %p155 = scmp.eq.s32.totalorder %s20, 3
      %p156 = por %p154, %p155
      %p158 = scmp.ne.s32.totalorder %s141, %s157
      %p159 = scmp.eq.s32.totalorder %s20, 0
      %p160 = por %p158, %p159
      %p161 = scmp.le.s32.totalorder 1, %s14
      %p162 = scmp.lt.s32.totalorder %s14, 5
      %p163 = pnand %p161, %p162
      %p164 = pneg %p163
      // Predicated region
      $region9: #{tpu_custom_call.1} parent=5 // pred_check
        _
      $region10: #{tpu_custom_call.1} parent=5 // pred_check_branch
        %166 = sbr.rel (%p163) target = $region12
      $region11: #{tpu_custom_call.1} parent=5 // pred_region
        %s167 = ssub.s32 %s14, 1
        // Predicated region
        $region13: #{tpu_custom_call.1} parent=11 // pred_check
          %p168 = pneg %p52
        $region14: #{tpu_custom_call.1} parent=11 // pred_check_branch
          %170 = sbr.rel (%p168) target = $region16
        $region15: #{tpu_custom_call.1} parent=11 // pred_region
          %s171 = smul.u32 32, %s23
          %p172 = scmp.lt.s32.totalorder %s171, 31
          %s173 = scalar_select %p172, %s171, 31
          %s174 = smul.addr %s173, 8
          %s175 = scalar_lea.vmem %s0, %s174
          %s176 = smul.u32 32, %s23
        $region16: #{tpu_custom_call.1} parent=11 // pred_fallthru
          _
        // Predicated region
        $region17: #{tpu_custom_call.1} parent=11 // pred_check
          %p177 = pneg %p101
        $region18: #{tpu_custom_call.1} parent=11 // pred_check_branch
          %179 = sbr.rel (%p177) target = $region20
        $region19: #{tpu_custom_call.1} parent=11 // pred_region
          _
        $region20: #{tpu_custom_call.1} parent=11 // pred_fallthru
          _
      $region12: #{tpu_custom_call.1} parent=5 // pred_fallthru
        _
      %p180 = scmp.lt.s32.totalorder %s14, 4
      // Predicated region
      $region21: #{tpu_custom_call.1} parent=5 // pred_check
        %p181 = pneg %p180
      $region22: #{tpu_custom_call.1} parent=5 // pred_check_branch
        %183 = sbr.rel (%p181) target = $region24
      $region23: #{tpu_custom_call.1} parent=5 // pred_region
        // Predicated region
        $region25: #{tpu_custom_call.1} parent=23 // pred_check
          %p184 = pneg %p74
        $region26: #{tpu_custom_call.1} parent=23 // pred_check_branch
          %186 = sbr.rel (%p184) target = $region28
        $region27: #{tpu_custom_call.1} parent=23 // pred_region
          %s187 = smul.u32 32, %s21
          %p188 = scmp.lt.s32.totalorder %s22, 3
          %s189 = scalar_select %p188, %s22, 3
          %p190 = scmp.lt.s32.totalorder %s187, 31
          %s191 = scalar_select %p190, %s187, 31
          %s192 = smul.addr %s189, 32
          %s193 = sadd.s32 %s191, %s192
          %s194 = smul.addr %s193, 8
          %s195 = scalar_lea.vmem %s1, %s194
          %s196 = smul.u32 32, %s21
        $region28: #{tpu_custom_call.1} parent=23 // pred_fallthru
          _
        // Predicated region
        $region29: #{tpu_custom_call.1} parent=23 // pred_check
          %p197 = pneg %p121
        $region30: #{tpu_custom_call.1} parent=23 // pred_check_branch
          %199 = sbr.rel (%p197) target = $region32
        $region31: #{tpu_custom_call.1} parent=23 // pred_region
          %s200 = sand.u32 %s111, 1
          %s201 = scalar_lea.sflag [#allocation5], %s200
          %s202 = sand.u32 %s111, 1
          %s203 = smul.addr %s202, 512
          %s204 = scalar_lea.vmem [#allocation4], %s203
          %s205 = smul.u32 128, %s22
          %207 = vsyncadd %s201, 0
          %s208 = smul.addr %s205, 4
          %s209 = scalar_lea.hbm %s3, %s208
          %s210 = sshll.u32 %s209, 4
          %s211 = int_to_ptr.hbm [resolvable:$true] %s210
          %s212 = sshll.u32 %s204, 4
          %s213 = int_to_ptr.vmem [resolvable:$true] %s212
          %218 = dma.hbm_to_vmem [thread:$0]  %s211, 8192, %s213, %s201, 64, 64, 4
        $region32: #{tpu_custom_call.1} parent=23 // pred_fallthru
          _
      $region24: #{tpu_custom_call.1} parent=5 // pred_fallthru
        _
      %p219 = scmp.le.s32.totalorder 1, %s14
      %p220 = scmp.lt.s32.totalorder %s14, 5
      %p221 = pnand %p219, %p220
      %p222 = pneg %p221
      // Predicated region
      $region33: #{tpu_custom_call.1} parent=5 // pred_check
        _
      $region34: #{tpu_custom_call.1} parent=5 // pred_check_branch
        %224 = sbr.rel (%p221) target = $region36
      $region35: #{tpu_custom_call.1} parent=5 // pred_region
        %s225 = ssub.s32 %s14, 1
        %s226 = sand.u32 %s114, 1
        %s227 = scalar_lea.sflag [#allocation5], %s226
        %s228 = sand.u32 %s114, 1
        %s229 = smul.addr %s228, 512
        %s230 = scalar_lea.vmem [#allocation4], %s229
        // Predicated region
        $region37: #{tpu_custom_call.1} parent=35 // pred_check
          %p231 = pneg %p127
        $region38: #{tpu_custom_call.1} parent=35 // pred_check_branch
          %233 = sbr.rel (%p231) target = $region40
        $region39: #{tpu_custom_call.1} parent=35 // pred_region
          %235 = dma.done %s227, 8192
        $region40: #{tpu_custom_call.1} parent=35 // pred_fallthru
          _
        %s236 = smul.u32 32, %s23
        %p237 = scmp.lt.s32.totalorder %s236, 31
        %s238 = scalar_select %p237, %s236, 31
        %s239 = smul.addr %s238, 8
        %s240 = scalar_lea.vmem %s0, %s239
        %p241 = pneg %p52
        %p242 = pneg %p49
        %s243 = smul.u32 32, %s23
        %p244 = scmp.lt.s32.totalorder %s24, 3
        %s245 = scalar_select %p244, %s24, 3
        %p246 = scmp.lt.s32.totalorder %s243, 31
        %s247 = scalar_select %p246, %s243, 31
        %s248 = smul.addr %s245, 32
        %s249 = sadd.s32 %s247, %s248
        %s250 = smul.addr %s249, 8
        %s251 = scalar_lea.vmem %s1, %s250
        %p252 = pneg %p80
        %p253 = pneg %p77
        %p254 = pneg %p101
        %p255 = pneg %p98
        %s256 = sand.u32 %s114, 1
        %s257 = scalar_lea.sflag [#allocation5], %s256
        %s258 = sand.u32 %s114, 1
        %s259 = smul.addr %s258, 512
        %s260 = scalar_lea.vmem [#allocation4], %s259
        %p261 = pneg %p127
        %p262 = pneg %p124
        %p263 = pneg %p153
        %p264 = pneg %p150
        %s265 = smul.u32 32, %s23
        %p266 = scmp.lt.s32.totalorder %s265, 31
        %s267 = scalar_select %p266, %s265, 31
        %s268 = smul.addr %s267, 8
        %s269 = scalar_lea.vmem %s0, %s268
        %s270 = smul.u32 32, %s23
        %s271 = smul.u32 32, %s23
        %p272 = scmp.lt.s32.totalorder %s24, 3
        %s273 = scalar_select %p272, %s24, 3
        %p274 = scmp.lt.s32.totalorder %s271, 31
        %s275 = scalar_select %p274, %s271, 31
        %s276 = smul.addr %s273, 32
        %s277 = sadd.s32 %s275, %s276
        %s278 = smul.addr %s277, 8
        %s279 = scalar_lea.vmem %s1, %s278
        %s280 = smul.u32 32, %s23
        %s281 = smul.u32 128, %s24
        %s282 = smul.u32 32, %s23
        %p283 = scmp.eq.s32.totalorder %s24, 0
        // Predicated region
        $region41: #{tpu_custom_call.1} parent=35 // pred_check
          %p284 = pneg %p283
        $region42: #{tpu_custom_call.1} parent=35 // pred_check_branch
          %286 = sbr.rel (%p284) target = $region44
        $region43: #{tpu_custom_call.1} parent=35 // pred_region
          %v287 = vld [vmem:[%s269] sm:$0xff]
          %v288 = vld [vmem:[%s269 + $0x8] sm:$0xff]
          %v289 = vld [vmem:[%s269 + $0x10] sm:$0xff]
          %v290 = vld [vmem:[%s269 + $0x18] sm:$0xff]
          %v291 = vld [vmem:[%s269 + $0x20] sm:$0xff]
          %v292 = vld [vmem:[%s269 + $0x28] sm:$0xff]
          %v293 = vld [vmem:[%s269 + $0x30] sm:$0xff]
          %v294 = vld [vmem:[%s269 + $0x38] sm:$0xff]
          %v295 = vld [vmem:[%s269 + $0x40] sm:$0xff]
          %v296 = vld [vmem:[%s269 + $0x48] sm:$0xff]
          %v297 = vld [vmem:[%s269 + $0x50] sm:$0xff]
          %v298 = vld [vmem:[%s269 + $0x58] sm:$0xff]
          %v299 = vld [vmem:[%s269 + $0x60] sm:$0xff]
          %v300 = vld [vmem:[%s269 + $0x68] sm:$0xff]
          %v301 = vld [vmem:[%s269 + $0x70] sm:$0xff]
          %v302 = vld [vmem:[%s269 + $0x78] sm:$0xff]
          %v303 = vld [vmem:[%s269 + $0x80] sm:$0xff]
          %v304 = vld [vmem:[%s269 + $0x88] sm:$0xff]
          %v305 = vld [vmem:[%s269 + $0x90] sm:$0xff]
          %v306 = vld [vmem:[%s269 + $0x98] sm:$0xff]
          %v307 = vld [vmem:[%s269 + $0xa0] sm:$0xff]
          %v308 = vld [vmem:[%s269 + $0xa8] sm:$0xff]
          %v309 = vld [vmem:[%s269 + $0xb0] sm:$0xff]
          %v310 = vld [vmem:[%s269 + $0xb8] sm:$0xff]
          %v311 = vld [vmem:[%s269 + $0xc0] sm:$0xff]
          %v312 = vld [vmem:[%s269 + $0xc8] sm:$0xff]
          %v313 = vld [vmem:[%s269 + $0xd0] sm:$0xff]
          %v314 = vld [vmem:[%s269 + $0xd8] sm:$0xff]
          %v315 = vld [vmem:[%s269 + $0xe0] sm:$0xff]
          %v316 = vld [vmem:[%s269 + $0xe8] sm:$0xff]
          %v317 = vld [vmem:[%s269 + $0xf0] sm:$0xff]
          %v318 = vld [vmem:[%s269 + $0xf8] sm:$0xff]
          %v319 = vld [vmem:[%s2] sm:$0x1]
          %v320 = vperm.slane %v319, 0
          %v321 = vmul.f32 %v287, %v320
          %v322 = vmul.f32 %v288, %v320
          %v323 = vmul.f32 %v289, %v320
          %v324 = vmul.f32 %v290, %v320
          %v325 = vmul.f32 %v291, %v320
          %v326 = vmul.f32 %v292, %v320
          %v327 = vmul.f32 %v293, %v320
          %v328 = vmul.f32 %v294, %v320
          %v329 = vmul.f32 %v295, %v320
          %v330 = vmul.f32 %v296, %v320
          %v331 = vmul.f32 %v297, %v320
          %v332 = vmul.f32 %v298, %v320
          %v333 = vmul.f32 %v299, %v320
          %v334 = vmul.f32 %v300, %v320
          %v335 = vmul.f32 %v301, %v320
          %v336 = vmul.f32 %v302, %v320
          %v337 = vmul.f32 %v303, %v320
          %v338 = vmul.f32 %v304, %v320
          %v339 = vmul.f32 %v305, %v320
          %v340 = vmul.f32 %v306, %v320
          %v341 = vmul.f32 %v307, %v320
          %v342 = vmul.f32 %v308, %v320
          %v343 = vmul.f32 %v309, %v320
          %v344 = vmul.f32 %v310, %v320
          %v345 = vmul.f32 %v311, %v320
          %v346 = vmul.f32 %v312, %v320
          %v347 = vmul.f32 %v313, %v320
          %v348 = vmul.f32 %v314, %v320
          %v349 = vmul.f32 %v315, %v320
          %v350 = vmul.f32 %v316, %v320
          %v351 = vmul.f32 %v317, %v320
          %v352 = vmul.f32 %v318, %v320
          %v353 = vld [vmem:[%s2 + $0x1] sm:$0x1]
          %v354 = vperm.slane %v353, 0
          %v355 = vadd.f32 %v321, %v354
          %v356 = vadd.f32 %v322, %v354
          %v357 = vadd.f32 %v323, %v354
          %v358 = vadd.f32 %v324, %v354
          %v359 = vadd.f32 %v325, %v354
          %v360 = vadd.f32 %v326, %v354
          %v361 = vadd.f32 %v327, %v354
          %v362 = vadd.f32 %v328, %v354
          %v363 = vadd.f32 %v329, %v354
          %v364 = vadd.f32 %v330, %v354
          %v365 = vadd.f32 %v331, %v354
          %v366 = vadd.f32 %v332, %v354
          %v367 = vadd.f32 %v333, %v354
          %v368 = vadd.f32 %v334, %v354
          %v369 = vadd.f32 %v335, %v354
          %v370 = vadd.f32 %v336, %v354
          %v371 = vadd.f32 %v337, %v354
          %v372 = vadd.f32 %v338, %v354
          %v373 = vadd.f32 %v339, %v354
          %v374 = vadd.f32 %v340, %v354
          %v375 = vadd.f32 %v341, %v354
          %v376 = vadd.f32 %v342, %v354
          %v377 = vadd.f32 %v343, %v354
          %v378 = vadd.f32 %v344, %v354
          %v379 = vadd.f32 %v345, %v354
          %v380 = vadd.f32 %v346, %v354
          %v381 = vadd.f32 %v347, %v354
          %v382 = vadd.f32 %v348, %v354
          %v383 = vadd.f32 %v349, %v354
          %v384 = vadd.f32 %v350, %v354
          %v385 = vadd.f32 %v351, %v354
          %v386 = vadd.f32 %v352, %v354
          %v387 = vpack.c.bf16 %v355, %v355
          %v388 = vpack.c.bf16 %v356, %v356
          %v389 = vpack.c.bf16 %v357, %v357
          %v390 = vpack.c.bf16 %v358, %v358
          %v391 = vpack.c.bf16 %v359, %v359
          %v392 = vpack.c.bf16 %v360, %v360
          %v393 = vpack.c.bf16 %v361, %v361
          %v394 = vpack.c.bf16 %v362, %v362
          %v395 = vpack.c.bf16 %v363, %v363
          %v396 = vpack.c.bf16 %v364, %v364
          %v397 = vpack.c.bf16 %v365, %v365
          %v398 = vpack.c.bf16 %v366, %v366
          %v399 = vpack.c.bf16 %v367, %v367
          %v400 = vpack.c.bf16 %v368, %v368
          %v401 = vpack.c.bf16 %v369, %v369
          %v402 = vpack.c.bf16 %v370, %v370
          %v403 = vpack.c.bf16 %v371, %v371
          %v404 = vpack.c.bf16 %v372, %v372
          %v405 = vpack.c.bf16 %v373, %v373
          %v406 = vpack.c.bf16 %v374, %v374
          %v407 = vpack.c.bf16 %v375, %v375
          %v408 = vpack.c.bf16 %v376, %v376
          %v409 = vpack.c.bf16 %v377, %v377
          %v410 = vpack.c.bf16 %v378, %v378
          %v411 = vpack.c.bf16 %v379, %v379
          %v412 = vpack.c.bf16 %v380, %v380
          %v413 = vpack.c.bf16 %v381, %v381
          %v414 = vpack.c.bf16 %v382, %v382
          %v415 = vpack.c.bf16 %v383, %v383
          %v416 = vpack.c.bf16 %v384, %v384
          %v417 = vpack.c.bf16 %v385, %v385
          %v418 = vpack.c.bf16 %v386, %v386
          %419 = vst [vmem:[#allocation2] sm:$0xf] %v387
          %420 = vst [vmem:[#allocation2 + $0x4] sm:$0xf] %v388
          %421 = vst [vmem:[#allocation2 + $0x8] sm:$0xf] %v389
          %422 = vst [vmem:[#allocation2 + $0xc] sm:$0xf] %v390
          %423 = vst [vmem:[#allocation2 + $0x10] sm:$0xf] %v391
          %424 = vst [vmem:[#allocation2 + $0x14] sm:$0xf] %v392
          %425 = vst [vmem:[#allocation2 + $0x18] sm:$0xf] %v393
          %426 = vst [vmem:[#allocation2 + $0x1c] sm:$0xf] %v394
          %427 = vst [vmem:[#allocation2 + $0x20] sm:$0xf] %v395
          %428 = vst [vmem:[#allocation2 + $0x24] sm:$0xf] %v396
          %429 = vst [vmem:[#allocation2 + $0x28] sm:$0xf] %v397
          %430 = vst [vmem:[#allocation2 + $0x2c] sm:$0xf] %v398
          %431 = vst [vmem:[#allocation2 + $0x30] sm:$0xf] %v399
          %432 = vst [vmem:[#allocation2 + $0x34] sm:$0xf] %v400
          %433 = vst [vmem:[#allocation2 + $0x38] sm:$0xf] %v401
          %434 = vst [vmem:[#allocation2 + $0x3c] sm:$0xf] %v402
          %435 = vst [vmem:[#allocation2 + $0x40] sm:$0xf] %v403
          %436 = vst [vmem:[#allocation2 + $0x44] sm:$0xf] %v404
          %437 = vst [vmem:[#allocation2 + $0x48] sm:$0xf] %v405
          %438 = vst [vmem:[#allocation2 + $0x4c] sm:$0xf] %v406
          %439 = vst [vmem:[#allocation2 + $0x50] sm:$0xf] %v407
          %440 = vst [vmem:[#allocation2 + $0x54] sm:$0xf] %v408
          %441 = vst [vmem:[#allocation2 + $0x58] sm:$0xf] %v409
          %442 = vst [vmem:[#allocation2 + $0x5c] sm:$0xf] %v410
          %443 = vst [vmem:[#allocation2 + $0x60] sm:$0xf] %v411
          %444 = vst [vmem:[#allocation2 + $0x64] sm:$0xf] %v412
          %445 = vst [vmem:[#allocation2 + $0x68] sm:$0xf] %v413
          %446 = vst [vmem:[#allocation2 + $0x6c] sm:$0xf] %v414
          %447 = vst [vmem:[#allocation2 + $0x70] sm:$0xf] %v415
          %448 = vst [vmem:[#allocation2 + $0x74] sm:$0xf] %v416
          %449 = vst [vmem:[#allocation2 + $0x78] sm:$0xf] %v417
          %450 = vst [vmem:[#allocation2 + $0x7c] sm:$0xf] %v418
          %451 = vst [vmem:[#allocation7] sm:$0xff] 0.0
          %452 = vst [vmem:[#allocation7 + $0x8] sm:$0xff] 0.0
          %453 = vst [vmem:[#allocation7 + $0x10] sm:$0xff] 0.0
          %454 = vst [vmem:[#allocation7 + $0x18] sm:$0xff] 0.0
          %455 = vst [vmem:[#allocation7 + $0x20] sm:$0xff] 0.0
          %456 = vst [vmem:[#allocation7 + $0x28] sm:$0xff] 0.0
          %457 = vst [vmem:[#allocation7 + $0x30] sm:$0xff] 0.0
          %458 = vst [vmem:[#allocation7 + $0x38] sm:$0xff] 0.0
          %459 = vst [vmem:[#allocation7 + $0x40] sm:$0xff] 0.0
          %460 = vst [vmem:[#allocation7 + $0x48] sm:$0xff] 0.0
          %461 = vst [vmem:[#allocation7 + $0x50] sm:$0xff] 0.0
          %462 = vst [vmem:[#allocation7 + $0x58] sm:$0xff] 0.0
          %463 = vst [vmem:[#allocation7 + $0x60] sm:$0xff] 0.0
          %464 = vst [vmem:[#allocation7 + $0x68] sm:$0xff] 0.0
          %465 = vst [vmem:[#allocation7 + $0x70] sm:$0xff] 0.0
          %466 = vst [vmem:[#allocation7 + $0x78] sm:$0xff] 0.0
          %467 = vst [vmem:[#allocation7 + $0x80] sm:$0xff] 0.0
          %468 = vst [vmem:[#allocation7 + $0x88] sm:$0xff] 0.0
          %469 = vst [vmem:[#allocation7 + $0x90] sm:$0xff] 0.0
          %470 = vst [vmem:[#allocation7 + $0x98] sm:$0xff] 0.0
          %471 = vst [vmem:[#allocation7 + $0xa0] sm:$0xff] 0.0
          %472 = vst [vmem:[#allocation7 + $0xa8] sm:$0xff] 0.0
          %473 = vst [vmem:[#allocation7 + $0xb0] sm:$0xff] 0.0
          %474 = vst [vmem:[#allocation7 + $0xb8] sm:$0xff] 0.0
          %475 = vst [vmem:[#allocation7 + $0xc0] sm:$0xff] 0.0
          %476 = vst [vmem:[#allocation7 + $0xc8] sm:$0xff] 0.0
          %477 = vst [vmem:[#allocation7 + $0xd0] sm:$0xff] 0.0
          %478 = vst [vmem:[#allocation7 + $0xd8] sm:$0xff] 0.0
          %479 = vst [vmem:[#allocation7 + $0xe0] sm:$0xff] 0.0
          %480 = vst [vmem:[#allocation7 + $0xe8] sm:$0xff] 0.0
          %481 = vst [vmem:[#allocation7 + $0xf0] sm:$0xff] 0.0
          %482 = vst [vmem:[#allocation7 + $0xf8] sm:$0xff] 0.0
        $region44: #{tpu_custom_call.1} parent=35 // pred_fallthru
          _
        %v483 = vld [vmem:[#allocation2] sm:$0xf]
        %v484 = vld [vmem:[#allocation2 + $0x4] sm:$0xf]
        %v485 = vld [vmem:[#allocation2 + $0x8] sm:$0xf]
        %v486 = vld [vmem:[#allocation2 + $0xc] sm:$0xf]
        %v487 = vld [vmem:[#allocation2 + $0x10] sm:$0xf]
        %v488 = vld [vmem:[#allocation2 + $0x14] sm:$0xf]
        %v489 = vld [vmem:[#allocation2 + $0x18] sm:$0xf]
        %v490 = vld [vmem:[#allocation2 + $0x1c] sm:$0xf]
        %v491 = vld [vmem:[#allocation2 + $0x20] sm:$0xf]
        %v492 = vld [vmem:[#allocation2 + $0x24] sm:$0xf]
        %v493 = vld [vmem:[#allocation2 + $0x28] sm:$0xf]
        %v494 = vld [vmem:[#allocation2 + $0x2c] sm:$0xf]
        %v495 = vld [vmem:[#allocation2 + $0x30] sm:$0xf]
        %v496 = vld [vmem:[#allocation2 + $0x34] sm:$0xf]
        %v497 = vld [vmem:[#allocation2 + $0x38] sm:$0xf]
        %v498 = vld [vmem:[#allocation2 + $0x3c] sm:$0xf]
        %v499 = vld [vmem:[#allocation2 + $0x40] sm:$0xf]
        %v500 = vld [vmem:[#allocation2 + $0x44] sm:$0xf]
        %v501 = vld [vmem:[#allocation2 + $0x48] sm:$0xf]
        %v502 = vld [vmem:[#allocation2 + $0x4c] sm:$0xf]
        %v503 = vld [vmem:[#allocation2 + $0x50] sm:$0xf]
        %v504 = vld [vmem:[#allocation2 + $0x54] sm:$0xf]
        %v505 = vld [vmem:[#allocation2 + $0x58] sm:$0xf]
        %v506 = vld [vmem:[#allocation2 + $0x5c] sm:$0xf]
        %v507 = vld [vmem:[#allocation2 + $0x60] sm:$0xf]
        %v508 = vld [vmem:[#allocation2 + $0x64] sm:$0xf]
        %v509 = vld [vmem:[#allocation2 + $0x68] sm:$0xf]
        %v510 = vld [vmem:[#allocation2 + $0x6c] sm:$0xf]
        %v511 = vld [vmem:[#allocation2 + $0x70] sm:$0xf]
        %v512 = vld [vmem:[#allocation2 + $0x74] sm:$0xf]
        %v513 = vld [vmem:[#allocation2 + $0x78] sm:$0xf]
        %v514 = vld [vmem:[#allocation2 + $0x7c] sm:$0xf]
        %v515 = vld [vmem:[%s279] sm:$0xff]
        %v516 = vld [vmem:[%s279 + $0x8] sm:$0xff]
        %v517 = vld [vmem:[%s279 + $0x10] sm:$0xff]
        %v518 = vld [vmem:[%s279 + $0x18] sm:$0xff]
        %v519 = vld [vmem:[%s279 + $0x20] sm:$0xff]
        %v520 = vld [vmem:[%s279 + $0x28] sm:$0xff]
        %v521 = vld [vmem:[%s279 + $0x30] sm:$0xff]
        %v522 = vld [vmem:[%s279 + $0x38] sm:$0xff]
        %v523 = vld [vmem:[%s279 + $0x40] sm:$0xff]
        %v524 = vld [vmem:[%s279 + $0x48] sm:$0xff]
        %v525 = vld [vmem:[%s279 + $0x50] sm:$0xff]
        %v526 = vld [vmem:[%s279 + $0x58] sm:$0xff]
        %v527 = vld [vmem:[%s279 + $0x60] sm:$0xff]
        %v528 = vld [vmem:[%s279 + $0x68] sm:$0xff]
        %v529 = vld [vmem:[%s279 + $0x70] sm:$0xff]
        %v530 = vld [vmem:[%s279 + $0x78] sm:$0xff]
        %v531 = vld [vmem:[%s279 + $0x80] sm:$0xff]
        %v532 = vld [vmem:[%s279 + $0x88] sm:$0xff]
        %v533 = vld [vmem:[%s279 + $0x90] sm:$0xff]
        %v534 = vld [vmem:[%s279 + $0x98] sm:$0xff]
        %v535 = vld [vmem:[%s279 + $0xa0] sm:$0xff]
        %v536 = vld [vmem:[%s279 + $0xa8] sm:$0xff]
        %v537 = vld [vmem:[%s279 + $0xb0] sm:$0xff]
        %v538 = vld [vmem:[%s279 + $0xb8] sm:$0xff]
        %v539 = vld [vmem:[%s279 + $0xc0] sm:$0xff]
        %v540 = vld [vmem:[%s279 + $0xc8] sm:$0xff]
        %v541 = vld [vmem:[%s279 + $0xd0] sm:$0xff]
        %v542 = vld [vmem:[%s279 + $0xd8] sm:$0xff]
        %v543 = vld [vmem:[%s279 + $0xe0] sm:$0xff]
        %v544 = vld [vmem:[%s279 + $0xe8] sm:$0xff]
        %v545 = vld [vmem:[%s279 + $0xf0] sm:$0xff]
        %v546 = vld [vmem:[%s279 + $0xf8] sm:$0xff]
        %v547 = vpack.c.bf16 %v515, %v515
        %v548 = vpack.c.bf16 %v516, %v516
        %v549 = vpack.c.bf16 %v517, %v517
        %v550 = vpack.c.bf16 %v518, %v518
        %v551 = vpack.c.bf16 %v519, %v519
        %v552 = vpack.c.bf16 %v520, %v520
        %v553 = vpack.c.bf16 %v521, %v521
        %v554 = vpack.c.bf16 %v522, %v522
        %v555 = vpack.c.bf16 %v523, %v523
        %v556 = vpack.c.bf16 %v524, %v524
        %v557 = vpack.c.bf16 %v525, %v525
        %v558 = vpack.c.bf16 %v526, %v526
        %v559 = vpack.c.bf16 %v527, %v527
        %v560 = vpack.c.bf16 %v528, %v528
        %v561 = vpack.c.bf16 %v529, %v529
        %v562 = vpack.c.bf16 %v530, %v530
        %v563 = vpack.c.bf16 %v531, %v531
        %v564 = vpack.c.bf16 %v532, %v532
        %v565 = vpack.c.bf16 %v533, %v533
        %v566 = vpack.c.bf16 %v534, %v534
        %v567 = vpack.c.bf16 %v535, %v535
        %v568 = vpack.c.bf16 %v536, %v536
        %v569 = vpack.c.bf16 %v537, %v537
        %v570 = vpack.c.bf16 %v538, %v538
        %v571 = vpack.c.bf16 %v539, %v539
        %v572 = vpack.c.bf16 %v540, %v540
        %v573 = vpack.c.bf16 %v541, %v541
        %v574 = vpack.c.bf16 %v542, %v542
        %v575 = vpack.c.bf16 %v543, %v543
        %v576 = vpack.c.bf16 %v544, %v544
        %v577 = vpack.c.bf16 %v545, %v545
        %v578 = vpack.c.bf16 %v546, %v546
        %580 = vset.pattern.permute.xlu0 0
        %581 = vperm.xlu0 %580, %v547
        %v582 = vpop.permute.xlu0 %581
        %v585 = vunpack.c.l.s4 839922192
        %v586 = vunpack.c.0.s8 %v585
        %v587 = vperm.slane %v582, %v586
        %589 = vset.pattern.permute.xlu0 0
        %590 = vperm.xlu0 %589, %v548
        %v591 = vpop.permute.xlu0 %590
        %v594 = vunpack.c.l.s4 839922192
        %v595 = vunpack.c.0.s8 %v594
        %v596 = vperm.slane %v591, %v595
        %598 = vset.pattern.permute.xlu0 0
        %599 = vperm.xlu0 %598, %v549
        %v600 = vpop.permute.xlu0 %599
        %v603 = vunpack.c.l.s4 839922192
        %v604 = vunpack.c.0.s8 %v603
        %v605 = vperm.slane %v600, %v604
        %607 = vset.pattern.permute.xlu0 0
        %608 = vperm.xlu0 %607, %v550
        %v609 = vpop.permute.xlu0 %608
        %v612 = vunpack.c.l.s4 839922192
        %v613 = vunpack.c.0.s8 %v612
        %v614 = vperm.slane %v609, %v613
        %616 = vset.pattern.permute.xlu0 0
        %617 = vperm.xlu0 %616, %v551
        %v618 = vpop.permute.xlu0 %617
        %v621 = vunpack.c.l.s4 839922192
        %v622 = vunpack.c.0.s8 %v621
        %v623 = vperm.slane %v618, %v622
        %625 = vset.pattern.permute.xlu0 0
        %626 = vperm.xlu0 %625, %v552
        %v627 = vpop.permute.xlu0 %626
        %v630 = vunpack.c.l.s4 839922192
        %v631 = vunpack.c.0.s8 %v630
        %v632 = vperm.slane %v627, %v631
        %634 = vset.pattern.permute.xlu0 0
        %635 = vperm.xlu0 %634, %v553
        %v636 = vpop.permute.xlu0 %635
        %v639 = vunpack.c.l.s4 839922192
        %v640 = vunpack.c.0.s8 %v639
        %v641 = vperm.slane %v636, %v640
        %643 = vset.pattern.permute.xlu0 0
        %644 = vperm.xlu0 %643, %v554
        %v645 = vpop.permute.xlu0 %644
        %v648 = vunpack.c.l.s4 839922192
        %v649 = vunpack.c.0.s8 %v648
        %v650 = vperm.slane %v645, %v649
        %652 = vset.pattern.permute.xlu0 0
        %653 = vperm.xlu0 %652, %v555
        %v654 = vpop.permute.xlu0 %653
        %v657 = vunpack.c.l.s4 839922192
        %v658 = vunpack.c.0.s8 %v657
        %v659 = vperm.slane %v654, %v658
        %661 = vset.pattern.permute.xlu0 0
        %662 = vperm.xlu0 %661, %v556
        %v663 = vpop.permute.xlu0 %662
        %v666 = vunpack.c.l.s4 839922192
        %v667 = vunpack.c.0.s8 %v666
        %v668 = vperm.slane %v663, %v667
        %670 = vset.pattern.permute.xlu0 0
        %671 = vperm.xlu0 %670, %v557
        %v672 = vpop.permute.xlu0 %671
        %v675 = vunpack.c.l.s4 839922192
        %v676 = vunpack.c.0.s8 %v675
        %v677 = vperm.slane %v672, %v676
        %679 = vset.pattern.permute.xlu0 0
        %680 = vperm.xlu0 %679, %v558
        %v681 = vpop.permute.xlu0 %680
        %v684 = vunpack.c.l.s4 839922192
        %v685 = vunpack.c.0.s8 %v684
        %v686 = vperm.slane %v681, %v685
        %688 = vset.pattern.permute.xlu0 0
        %689 = vperm.xlu0 %688, %v559
        %v690 = vpop.permute.xlu0 %689
        %v693 = vunpack.c.l.s4 839922192
        %v694 = vunpack.c.0.s8 %v693
        %v695 = vperm.slane %v690, %v694
        %697 = vset.pattern.permute.xlu0 0
        %698 = vperm.xlu0 %697, %v560
        %v699 = vpop.permute.xlu0 %698
        %v702 = vunpack.c.l.s4 839922192
        %v703 = vunpack.c.0.s8 %v702
        %v704 = vperm.slane %v699, %v703
        %706 = vset.pattern.permute.xlu0 0
        %707 = vperm.xlu0 %706, %v561
        %v708 = vpop.permute.xlu0 %707
        %v711 = vunpack.c.l.s4 839922192
        %v712 = vunpack.c.0.s8 %v711
        %v713 = vperm.slane %v708, %v712
        %715 = vset.pattern.permute.xlu0 0
        %716 = vperm.xlu0 %715, %v562
        %v717 = vpop.permute.xlu0 %716
        %v720 = vunpack.c.l.s4 839922192
        %v721 = vunpack.c.0.s8 %v720
        %v722 = vperm.slane %v717, %v721
        %724 = vset.pattern.permute.xlu0 0
        %725 = vperm.xlu0 %724, %v563
        %v726 = vpop.permute.xlu0 %725
        %v729 = vunpack.c.l.s4 839922192
        %v730 = vunpack.c.0.s8 %v729
        %v731 = vperm.slane %v726, %v730
        %733 = vset.pattern.permute.xlu0 0
        %734 = vperm.xlu0 %733, %v564
        %v735 = vpop.permute.xlu0 %734
        %v738 = vunpack.c.l.s4 839922192
        %v739 = vunpack.c.0.s8 %v738
        %v740 = vperm.slane %v735, %v739
        %742 = vset.pattern.permute.xlu0 0
        %743 = vperm.xlu0 %742, %v565
        %v744 = vpop.permute.xlu0 %743
        %v747 = vunpack.c.l.s4 839922192
        %v748 = vunpack.c.0.s8 %v747
        %v749 = vperm.slane %v744, %v748
        %751 = vset.pattern.permute.xlu0 0
        %752 = vperm.xlu0 %751, %v566
        %v753 = vpop.permute.xlu0 %752
        %v756 = vunpack.c.l.s4 839922192
        %v757 = vunpack.c.0.s8 %v756
        %v758 = vperm.slane %v753, %v757
        %760 = vset.pattern.permute.xlu0 0
        %761 = vperm.xlu0 %760, %v567
        %v762 = vpop.permute.xlu0 %761
        %v765 = vunpack.c.l.s4 839922192
        %v766 = vunpack.c.0.s8 %v765
        %v767 = vperm.slane %v762, %v766
        %769 = vset.pattern.permute.xlu0 0
        %770 = vperm.xlu0 %769, %v568
        %v771 = vpop.permute.xlu0 %770
        %v774 = vunpack.c.l.s4 839922192
        %v775 = vunpack.c.0.s8 %v774
        %v776 = vperm.slane %v771, %v775
        %778 = vset.pattern.permute.xlu0 0
        %779 = vperm.xlu0 %778, %v569
        %v780 = vpop.permute.xlu0 %779
        %v783 = vunpack.c.l.s4 839922192
        %v784 = vunpack.c.0.s8 %v783
        %v785 = vperm.slane %v780, %v784
        %787 = vset.pattern.permute.xlu0 0
        %788 = vperm.xlu0 %787, %v570
        %v789 = vpop.permute.xlu0 %788
        %v792 = vunpack.c.l.s4 839922192
        %v793 = vunpack.c.0.s8 %v792
        %v794 = vperm.slane %v789, %v793
        %796 = vset.pattern.permute.xlu0 0
        %797 = vperm.xlu0 %796, %v571
        %v798 = vpop.permute.xlu0 %797
        %v801 = vunpack.c.l.s4 839922192
        %v802 = vunpack.c.0.s8 %v801
        %v803 = vperm.slane %v798, %v802
        %805 = vset.pattern.permute.xlu0 0
        %806 = vperm.xlu0 %805, %v572
        %v807 = vpop.permute.xlu0 %806
        %v810 = vunpack.c.l.s4 839922192
        %v811 = vunpack.c.0.s8 %v810
        %v812 = vperm.slane %v807, %v811
        %814 = vset.pattern.permute.xlu0 0
        %815 = vperm.xlu0 %814, %v573
        %v816 = vpop.permute.xlu0 %815
        %v819 = vunpack.c.l.s4 839922192
        %v820 = vunpack.c.0.s8 %v819
        %v821 = vperm.slane %v816, %v820
        %823 = vset.pattern.permute.xlu0 0
        %824 = vperm.xlu0 %823, %v574
        %v825 = vpop.permute.xlu0 %824
        %v828 = vunpack.c.l.s4 839922192
        %v829 = vunpack.c.0.s8 %v828
        %v830 = vperm.slane %v825, %v829
        %832 = vset.pattern.permute.xlu0 0
        %833 = vperm.xlu0 %832, %v575
        %v834 = vpop.permute.xlu0 %833
        %v837 = vunpack.c.l.s4 839922192
        %v838 = vunpack.c.0.s8 %v837
        %v839 = vperm.slane %v834, %v838
        %841 = vset.pattern.permute.xlu0 0
        %842 = vperm.xlu0 %841, %v576
        %v843 = vpop.permute.xlu0 %842
        %v846 = vunpack.c.l.s4 839922192
        %v847 = vunpack.c.0.s8 %v846
        %v848 = vperm.slane %v843, %v847
        %850 = vset.pattern.permute.xlu0 0
        %851 = vperm.xlu0 %850, %v577
        %v852 = vpop.permute.xlu0 %851
        %v855 = vunpack.c.l.s4 839922192
        %v856 = vunpack.c.0.s8 %v855
        %v857 = vperm.slane %v852, %v856
        %859 = vset.pattern.permute.xlu0 0
        %860 = vperm.xlu0 %859, %v578
        %v861 = vpop.permute.xlu0 %860
        %v864 = vunpack.c.l.s4 839922192
        %v865 = vunpack.c.0.s8 %v864
        %v866 = vperm.slane %v861, %v865
        %v867 = vunpack.c.l.bf16 %v587
        %v868 = vunpack.c.l.bf16 %v596
        %v869 = vunpack.c.l.bf16 %v605
        %v870 = vunpack.c.l.bf16 %v614
        %v871 = vunpack.c.l.bf16 %v623
        %v872 = vunpack.c.l.bf16 %v632
        %v873 = vunpack.c.l.bf16 %v641
        %v874 = vunpack.c.l.bf16 %v650
        %v875 = vunpack.c.l.bf16 %v659
        %v876 = vunpack.c.l.bf16 %v668
        %v877 = vunpack.c.l.bf16 %v677
        %v878 = vunpack.c.l.bf16 %v686
        %v879 = vunpack.c.l.bf16 %v695
        %v880 = vunpack.c.l.bf16 %v704
        %v881 = vunpack.c.l.bf16 %v713
        %v882 = vunpack.c.l.bf16 %v722
        %v883 = vunpack.c.l.bf16 %v731
        %v884 = vunpack.c.l.bf16 %v740
        %v885 = vunpack.c.l.bf16 %v749
        %v886 = vunpack.c.l.bf16 %v758
        %v887 = vunpack.c.l.bf16 %v767
        %v888 = vunpack.c.l.bf16 %v776
        %v889 = vunpack.c.l.bf16 %v785
        %v890 = vunpack.c.l.bf16 %v794
        %v891 = vunpack.c.l.bf16 %v803
        %v892 = vunpack.c.l.bf16 %v812
        %v893 = vunpack.c.l.bf16 %v821
        %v894 = vunpack.c.l.bf16 %v830
        %v895 = vunpack.c.l.bf16 %v839
        %v896 = vunpack.c.l.bf16 %v848
        %v897 = vunpack.c.l.bf16 %v857
        %v898 = vunpack.c.l.bf16 %v866
        %v899 = vunpack.c.l.bf16 %v483
        %v900 = vunpack.c.l.bf16 %v484
        %v901 = vunpack.c.l.bf16 %v485
        %v902 = vunpack.c.l.bf16 %v486
        %v903 = vunpack.c.l.bf16 %v487
        %v904 = vunpack.c.l.bf16 %v488
        %v905 = vunpack.c.l.bf16 %v489
        %v906 = vunpack.c.l.bf16 %v490
        %v907 = vunpack.c.l.bf16 %v491
        %v908 = vunpack.c.l.bf16 %v492
        %v909 = vunpack.c.l.bf16 %v493
        %v910 = vunpack.c.l.bf16 %v494
        %v911 = vunpack.c.l.bf16 %v495
        %v912 = vunpack.c.l.bf16 %v496
        %v913 = vunpack.c.l.bf16 %v497
        %v914 = vunpack.c.l.bf16 %v498
        %v915 = vunpack.c.l.bf16 %v499
        %v916 = vunpack.c.l.bf16 %v500
        %v917 = vunpack.c.l.bf16 %v501
        %v918 = vunpack.c.l.bf16 %v502
        %v919 = vunpack.c.l.bf16 %v503
        %v920 = vunpack.c.l.bf16 %v504
        %v921 = vunpack.c.l.bf16 %v505
        %v922 = vunpack.c.l.bf16 %v506
        %v923 = vunpack.c.l.bf16 %v507
        %v924 = vunpack.c.l.bf16 %v508
        %v925 = vunpack.c.l.bf16 %v509
        %v926 = vunpack.c.l.bf16 %v510
        %v927 = vunpack.c.l.bf16 %v511
        %v928 = vunpack.c.l.bf16 %v512
        %v929 = vunpack.c.l.bf16 %v513
        %v930 = vunpack.c.l.bf16 %v514
        %v931 = vmul.f32 %v867, %v899
        %v932 = vmul.f32 %v868, %v900
        %v933 = vmul.f32 %v869, %v901
        %v934 = vmul.f32 %v870, %v902
        %v935 = vmul.f32 %v871, %v903
        %v936 = vmul.f32 %v872, %v904
        %v937 = vmul.f32 %v873, %v905
        %v938 = vmul.f32 %v874, %v906
        %v939 = vmul.f32 %v875, %v907
        %v940 = vmul.f32 %v876, %v908
        %v941 = vmul.f32 %v877, %v909
        %v942 = vmul.f32 %v878, %v910
        %v943 = vmul.f32 %v879, %v911
        %v944 = vmul.f32 %v880, %v912
        %v945 = vmul.f32 %v881, %v913
        %v946 = vmul.f32 %v882, %v914
        %v947 = vmul.f32 %v883, %v915
        %v948 = vmul.f32 %v884, %v916
        %v949 = vmul.f32 %v885, %v917
        %v950 = vmul.f32 %v886, %v918
        %v951 = vmul.f32 %v887, %v919
        %v952 = vmul.f32 %v888, %v920
        %v953 = vmul.f32 %v889, %v921
        %v954 = vmul.f32 %v890, %v922
        %v955 = vmul.f32 %v891, %v923
        %v956 = vmul.f32 %v892, %v924
        %v957 = vmul.f32 %v893, %v925
        %v958 = vmul.f32 %v894, %v926
        %v959 = vmul.f32 %v895, %v927
        %v960 = vmul.f32 %v896, %v928
        %v961 = vmul.f32 %v897, %v929
        %v962 = vmul.f32 %v898, %v930
        %v963 = vpack.c.bf16 %v931, %v931
        %v964 = vpack.c.bf16 %v932, %v932
        %v965 = vpack.c.bf16 %v933, %v933
        %v966 = vpack.c.bf16 %v934, %v934
        %v967 = vpack.c.bf16 %v935, %v935
        %v968 = vpack.c.bf16 %v936, %v936
        %v969 = vpack.c.bf16 %v937, %v937
        %v970 = vpack.c.bf16 %v938, %v938
        %v971 = vpack.c.bf16 %v939, %v939
        %v972 = vpack.c.bf16 %v940, %v940
        %v973 = vpack.c.bf16 %v941, %v941
        %v974 = vpack.c.bf16 %v942, %v942
        %v975 = vpack.c.bf16 %v943, %v943
        %v976 = vpack.c.bf16 %v944, %v944
        %v977 = vpack.c.bf16 %v945, %v945
        %v978 = vpack.c.bf16 %v946, %v946
        %v979 = vpack.c.bf16 %v947, %v947
        %v980 = vpack.c.bf16 %v948, %v948
        %v981 = vpack.c.bf16 %v949, %v949
        %v982 = vpack.c.bf16 %v950, %v950
        %v983 = vpack.c.bf16 %v951, %v951
        %v984 = vpack.c.bf16 %v952, %v952
        %v985 = vpack.c.bf16 %v953, %v953
        %v986 = vpack.c.bf16 %v954, %v954
        %v987 = vpack.c.bf16 %v955, %v955
        %v988 = vpack.c.bf16 %v956, %v956
        %v989 = vpack.c.bf16 %v957, %v957
        %v990 = vpack.c.bf16 %v958, %v958
        %v991 = vpack.c.bf16 %v959, %v959
        %v992 = vpack.c.bf16 %v960, %v960
        %v993 = vpack.c.bf16 %v961, %v961
        %v994 = vpack.c.bf16 %v962, %v962
        %995 = vst [vmem:[#allocation3] sm:$0xf] %v963
        %996 = vst [vmem:[#allocation3 + $0x20] sm:$0xf] %v964
        %997 = vst [vmem:[#allocation3 + $0x40] sm:$0xf] %v965
        %998 = vst [vmem:[#allocation3 + $0x60] sm:$0xf] %v966
        %999 = vst [vmem:[#allocation3 + $0x80] sm:$0xf] %v967
        %1000 = vst [vmem:[#allocation3 + $0xa0] sm:$0xf] %v968
        %1001 = vst [vmem:[#allocation3 + $0xc0] sm:$0xf] %v969
        %1002 = vst [vmem:[#allocation3 + $0xe0] sm:$0xf] %v970
        %1003 = vst [vmem:[#allocation3 + $0x100] sm:$0xf] %v971
        %1004 = vst [vmem:[#allocation3 + $0x120] sm:$0xf] %v972
        %1005 = vst [vmem:[#allocation3 + $0x140] sm:$0xf] %v973
        %1006 = vst [vmem:[#allocation3 + $0x160] sm:$0xf] %v974
        %1007 = vst [vmem:[#allocation3 + $0x180] sm:$0xf] %v975
        %1008 = vst [vmem:[#allocation3 + $0x1a0] sm:$0xf] %v976
        %1009 = vst [vmem:[#allocation3 + $0x1c0] sm:$0xf] %v977
        %1010 = vst [vmem:[#allocation3 + $0x1e0] sm:$0xf] %v978
        %1011 = vst [vmem:[#allocation3 + $0x200] sm:$0xf] %v979
        %1012 = vst [vmem:[#allocation3 + $0x220] sm:$0xf] %v980
        %1013 = vst [vmem:[#allocation3 + $0x240] sm:$0xf] %v981
        %1014 = vst [vmem:[#allocation3 + $0x260] sm:$0xf] %v982
        %1015 = vst [vmem:[#allocation3 + $0x280] sm:$0xf] %v983
        %1016 = vst [vmem:[#allocation3 + $0x2a0] sm:$0xf] %v984
        %1017 = vst [vmem:[#allocation3 + $0x2c0] sm:$0xf] %v985
        %1018 = vst [vmem:[#allocation3 + $0x2e0] sm:$0xf] %v986
        %1019 = vst [vmem:[#allocation3 + $0x300] sm:$0xf] %v987
        %1020 = vst [vmem:[#allocation3 + $0x320] sm:$0xf] %v988
        %1021 = vst [vmem:[#allocation3 + $0x340] sm:$0xf] %v989
        %1022 = vst [vmem:[#allocation3 + $0x360] sm:$0xf] %v990
        %1023 = vst [vmem:[#allocation3 + $0x380] sm:$0xf] %v991
        %1024 = vst [vmem:[#allocation3 + $0x3a0] sm:$0xf] %v992
        %1025 = vst [vmem:[#allocation3 + $0x3c0] sm:$0xf] %v993
        %1026 = vst [vmem:[#allocation3 + $0x3e0] sm:$0xf] %v994
        %v1027 = vld [vmem:[%s279] sm:$0xff]
        %v1028 = vld [vmem:[%s279 + $0x8] sm:$0xff]
        %v1029 = vld [vmem:[%s279 + $0x10] sm:$0xff]
        %v1030 = vld [vmem:[%s279 + $0x18] sm:$0xff]
        %v1031 = vld [vmem:[%s279 + $0x20] sm:$0xff]
        %v1032 = vld [vmem:[%s279 + $0x28] sm:$0xff]
        %v1033 = vld [vmem:[%s279 + $0x30] sm:$0xff]
        %v1034 = vld [vmem:[%s279 + $0x38] sm:$0xff]
        %v1035 = vld [vmem:[%s279 + $0x40] sm:$0xff]
        %v1036 = vld [vmem:[%s279 + $0x48] sm:$0xff]
        %v1037 = vld [vmem:[%s279 + $0x50] sm:$0xff]
        %v1038 = vld [vmem:[%s279 + $0x58] sm:$0xff]
        %v1039 = vld [vmem:[%s279 + $0x60] sm:$0xff]
        %v1040 = vld [vmem:[%s279 + $0x68] sm:$0xff]
        %v1041 = vld [vmem:[%s279 + $0x70] sm:$0xff]
        %v1042 = vld [vmem:[%s279 + $0x78] sm:$0xff]
        %v1043 = vld [vmem:[%s279 + $0x80] sm:$0xff]
        %v1044 = vld [vmem:[%s279 + $0x88] sm:$0xff]
        %v1045 = vld [vmem:[%s279 + $0x90] sm:$0xff]
        %v1046 = vld [vmem:[%s279 + $0x98] sm:$0xff]
        %v1047 = vld [vmem:[%s279 + $0xa0] sm:$0xff]
        %v1048 = vld [vmem:[%s279 + $0xa8] sm:$0xff]
        %v1049 = vld [vmem:[%s279 + $0xb0] sm:$0xff]
        %v1050 = vld [vmem:[%s279 + $0xb8] sm:$0xff]
        %v1051 = vld [vmem:[%s279 + $0xc0] sm:$0xff]
        %v1052 = vld [vmem:[%s279 + $0xc8] sm:$0xff]
        %v1053 = vld [vmem:[%s279 + $0xd0] sm:$0xff]
        %v1054 = vld [vmem:[%s279 + $0xd8] sm:$0xff]
        %v1055 = vld [vmem:[%s279 + $0xe0] sm:$0xff]
        %v1056 = vld [vmem:[%s279 + $0xe8] sm:$0xff]
        %v1057 = vld [vmem:[%s279 + $0xf0] sm:$0xff]
        %v1058 = vld [vmem:[%s279 + $0xf8] sm:$0xff]
        %v1059 = vpack.c.bf16 %v1027, %v1027
        %v1060 = vpack.c.bf16 %v1028, %v1028
        %v1061 = vpack.c.bf16 %v1029, %v1029
        %v1062 = vpack.c.bf16 %v1030, %v1030
        %v1063 = vpack.c.bf16 %v1031, %v1031
        %v1064 = vpack.c.bf16 %v1032, %v1032
        %v1065 = vpack.c.bf16 %v1033, %v1033
        %v1066 = vpack.c.bf16 %v1034, %v1034
        %v1067 = vpack.c.bf16 %v1035, %v1035
        %v1068 = vpack.c.bf16 %v1036, %v1036
        %v1069 = vpack.c.bf16 %v1037, %v1037
        %v1070 = vpack.c.bf16 %v1038, %v1038
        %v1071 = vpack.c.bf16 %v1039, %v1039
        %v1072 = vpack.c.bf16 %v1040, %v1040
        %v1073 = vpack.c.bf16 %v1041, %v1041
        %v1074 = vpack.c.bf16 %v1042, %v1042
        %v1075 = vpack.c.bf16 %v1043, %v1043
        %v1076 = vpack.c.bf16 %v1044, %v1044
        %v1077 = vpack.c.bf16 %v1045, %v1045
        %v1078 = vpack.c.bf16 %v1046, %v1046
        %v1079 = vpack.c.bf16 %v1047, %v1047
        %v1080 = vpack.c.bf16 %v1048, %v1048
        %v1081 = vpack.c.bf16 %v1049, %v1049
        %v1082 = vpack.c.bf16 %v1050, %v1050
        %v1083 = vpack.c.bf16 %v1051, %v1051
        %v1084 = vpack.c.bf16 %v1052, %v1052
        %v1085 = vpack.c.bf16 %v1053, %v1053
        %v1086 = vpack.c.bf16 %v1054, %v1054
        %v1087 = vpack.c.bf16 %v1055, %v1055
        %v1088 = vpack.c.bf16 %v1056, %v1056
        %v1089 = vpack.c.bf16 %v1057, %v1057
        %v1090 = vpack.c.bf16 %v1058, %v1058
        %1092 = vset.pattern.permute.xlu0 1
        %1093 = vperm.xlu0 %1092, %v1059
        %v1094 = vpop.permute.xlu0 %1093
        %v1097 = vunpack.c.l.s4 839922192
        %v1098 = vunpack.c.0.s8 %v1097
        %v1099 = vperm.slane %v1094, %v1098
        %1101 = vset.pattern.permute.xlu0 1
        %1102 = vperm.xlu0 %1101, %v1060
        %v1103 = vpop.permute.xlu0 %1102
        %v1106 = vunpack.c.l.s4 839922192
        %v1107 = vunpack.c.0.s8 %v1106
        %v1108 = vperm.slane %v1103, %v1107
        %1110 = vset.pattern.permute.xlu0 1
        %1111 = vperm.xlu0 %1110, %v1061
        %v1112 = vpop.permute.xlu0 %1111
        %v1115 = vunpack.c.l.s4 839922192
        %v1116 = vunpack.c.0.s8 %v1115
        %v1117 = vperm.slane %v1112, %v1116
        %1119 = vset.pattern.permute.xlu0 1
        %1120 = vperm.xlu0 %1119, %v1062
        %v1121 = vpop.permute.xlu0 %1120
        %v1124 = vunpack.c.l.s4 839922192
        %v1125 = vunpack.c.0.s8 %v1124
        %v1126 = vperm.slane %v1121, %v1125
        %1128 = vset.pattern.permute.xlu0 1
        %1129 = vperm.xlu0 %1128, %v1063
        %v1130 = vpop.permute.xlu0 %1129
        %v1133 = vunpack.c.l.s4 839922192
        %v1134 = vunpack.c.0.s8 %v1133
        %v1135 = vperm.slane %v1130, %v1134
        %1137 = vset.pattern.permute.xlu0 1
        %1138 = vperm.xlu0 %1137, %v1064
        %v1139 = vpop.permute.xlu0 %1138
        %v1142 = vunpack.c.l.s4 839922192
        %v1143 = vunpack.c.0.s8 %v1142
        %v1144 = vperm.slane %v1139, %v1143
        %1146 = vset.pattern.permute.xlu0 1
        %1147 = vperm.xlu0 %1146, %v1065
        %v1148 = vpop.permute.xlu0 %1147
        %v1151 = vunpack.c.l.s4 839922192
        %v1152 = vunpack.c.0.s8 %v1151
        %v1153 = vperm.slane %v1148, %v1152
        %1155 = vset.pattern.permute.xlu0 1
        %1156 = vperm.xlu0 %1155, %v1066
        %v1157 = vpop.permute.xlu0 %1156
        %v1160 = vunpack.c.l.s4 839922192
        %v1161 = vunpack.c.0.s8 %v1160
        %v1162 = vperm.slane %v1157, %v1161
        %1164 = vset.pattern.permute.xlu0 1
        %1165 = vperm.xlu0 %1164, %v1067
        %v1166 = vpop.permute.xlu0 %1165
        %v1169 = vunpack.c.l.s4 839922192
        %v1170 = vunpack.c.0.s8 %v1169
        %v1171 = vperm.slane %v1166, %v1170
        %1173 = vset.pattern.permute.xlu0 1
        %1174 = vperm.xlu0 %1173, %v1068
        %v1175 = vpop.permute.xlu0 %1174
        %v1178 = vunpack.c.l.s4 839922192
        %v1179 = vunpack.c.0.s8 %v1178
        %v1180 = vperm.slane %v1175, %v1179
        %1182 = vset.pattern.permute.xlu0 1
        %1183 = vperm.xlu0 %1182, %v1069
        %v1184 = vpop.permute.xlu0 %1183
        %v1187 = vunpack.c.l.s4 839922192
        %v1188 = vunpack.c.0.s8 %v1187
        %v1189 = vperm.slane %v1184, %v1188
        %1191 = vset.pattern.permute.xlu0 1
        %1192 = vperm.xlu0 %1191, %v1070
        %v1193 = vpop.permute.xlu0 %1192
        %v1196 = vunpack.c.l.s4 839922192
        %v1197 = vunpack.c.0.s8 %v1196
        %v1198 = vperm.slane %v1193, %v1197
        %1200 = vset.pattern.permute.xlu0 1
        %1201 = vperm.xlu0 %1200, %v1071
        %v1202 = vpop.permute.xlu0 %1201
        %v1205 = vunpack.c.l.s4 839922192
        %v1206 = vunpack.c.0.s8 %v1205
        %v1207 = vperm.slane %v1202, %v1206
        %1209 = vset.pattern.permute.xlu0 1
        %1210 = vperm.xlu0 %1209, %v1072
        %v1211 = vpop.permute.xlu0 %1210
        %v1214 = vunpack.c.l.s4 839922192
        %v1215 = vunpack.c.0.s8 %v1214
        %v1216 = vperm.slane %v1211, %v1215
        %1218 = vset.pattern.permute.xlu0 1
        %1219 = vperm.xlu0 %1218, %v1073
        %v1220 = vpop.permute.xlu0 %1219
        %v1223 = vunpack.c.l.s4 839922192
        %v1224 = vunpack.c.0.s8 %v1223
        %v1225 = vperm.slane %v1220, %v1224
        %1227 = vset.pattern.permute.xlu0 1
        %1228 = vperm.xlu0 %1227, %v1074
        %v1229 = vpop.permute.xlu0 %1228
        %v1232 = vunpack.c.l.s4 839922192
        %v1233 = vunpack.c.0.s8 %v1232
        %v1234 = vperm.slane %v1229, %v1233
        %1236 = vset.pattern.permute.xlu0 1
        %1237 = vperm.xlu0 %1236, %v1075
        %v1238 = vpop.permute.xlu0 %1237
        %v1241 = vunpack.c.l.s4 839922192
        %v1242 = vunpack.c.0.s8 %v1241
        %v1243 = vperm.slane %v1238, %v1242
        %1245 = vset.pattern.permute.xlu0 1
        %1246 = vperm.xlu0 %1245, %v1076
        %v1247 = vpop.permute.xlu0 %1246
        %v1250 = vunpack.c.l.s4 839922192
        %v1251 = vunpack.c.0.s8 %v1250
        %v1252 = vperm.slane %v1247, %v1251
        %1254 = vset.pattern.permute.xlu0 1
        %1255 = vperm.xlu0 %1254, %v1077
        %v1256 = vpop.permute.xlu0 %1255
        %v1259 = vunpack.c.l.s4 839922192
        %v1260 = vunpack.c.0.s8 %v1259
        %v1261 = vperm.slane %v1256, %v1260
        %1263 = vset.pattern.permute.xlu0 1
        %1264 = vperm.xlu0 %1263, %v1078
        %v1265 = vpop.permute.xlu0 %1264
        %v1268 = vunpack.c.l.s4 839922192
        %v1269 = vunpack.c.0.s8 %v1268
        %v1270 = vperm.slane %v1265, %v1269
        %1272 = vset.pattern.permute.xlu0 1
        %1273 = vperm.xlu0 %1272, %v1079
        %v1274 = vpop.permute.xlu0 %1273
        %v1277 = vunpack.c.l.s4 839922192
        %v1278 = vunpack.c.0.s8 %v1277
        %v1279 = vperm.slane %v1274, %v1278
        %1281 = vset.pattern.permute.xlu0 1
        %1282 = vperm.xlu0 %1281, %v1080
        %v1283 = vpop.permute.xlu0 %1282
        %v1286 = vunpack.c.l.s4 839922192
        %v1287 = vunpack.c.0.s8 %v1286
        %v1288 = vperm.slane %v1283, %v1287
        %1290 = vset.pattern.permute.xlu0 1
        %1291 = vperm.xlu0 %1290, %v1081
        %v1292 = vpop.permute.xlu0 %1291
        %v1295 = vunpack.c.l.s4 839922192
        %v1296 = vunpack.c.0.s8 %v1295
        %v1297 = vperm.slane %v1292, %v1296
        %1299 = vset.pattern.permute.xlu0 1
        %1300 = vperm.xlu0 %1299, %v1082
        %v1301 = vpop.permute.xlu0 %1300
        %v1304 = vunpack.c.l.s4 839922192
        %v1305 = vunpack.c.0.s8 %v1304
        %v1306 = vperm.slane %v1301, %v1305
        %1308 = vset.pattern.permute.xlu0 1
        %1309 = vperm.xlu0 %1308, %v1083
        %v1310 = vpop.permute.xlu0 %1309
        %v1313 = vunpack.c.l.s4 839922192
        %v1314 = vunpack.c.0.s8 %v1313
        %v1315 = vperm.slane %v1310, %v1314
        %1317 = vset.pattern.permute.xlu0 1
        %1318 = vperm.xlu0 %1317, %v1084
        %v1319 = vpop.permute.xlu0 %1318
        %v1322 = vunpack.c.l.s4 839922192
        %v1323 = vunpack.c.0.s8 %v1322
        %v1324 = vperm.slane %v1319, %v1323
        %1326 = vset.pattern.permute.xlu0 1
        %1327 = vperm.xlu0 %1326, %v1085
        %v1328 = vpop.permute.xlu0 %1327
        %v1331 = vunpack.c.l.s4 839922192
        %v1332 = vunpack.c.0.s8 %v1331
        %v1333 = vperm.slane %v1328, %v1332
        %1335 = vset.pattern.permute.xlu0 1
        %1336 = vperm.xlu0 %1335, %v1086
        %v1337 = vpop.permute.xlu0 %1336
        %v1340 = vunpack.c.l.s4 839922192
        %v1341 = vunpack.c.0.s8 %v1340
        %v1342 = vperm.slane %v1337, %v1341
        %1344 = vset.pattern.permute.xlu0 1
        %1345 = vperm.xlu0 %1344, %v1087
        %v1346 = vpop.permute.xlu0 %1345
        %v1349 = vunpack.c.l.s4 839922192
        %v1350 = vunpack.c.0.s8 %v1349
        %v1351 = vperm.slane %v1346, %v1350
        %1353 = vset.pattern.permute.xlu0 1
        %1354 = vperm.xlu0 %1353, %v1088
        %v1355 = vpop.permute.xlu0 %1354
        %v1358 = vunpack.c.l.s4 839922192
        %v1359 = vunpack.c.0.s8 %v1358
        %v1360 = vperm.slane %v1355, %v1359
        %1362 = vset.pattern.permute.xlu0 1
        %1363 = vperm.xlu0 %1362, %v1089
        %v1364 = vpop.permute.xlu0 %1363
        %v1367 = vunpack.c.l.s4 839922192
        %v1368 = vunpack.c.0.s8 %v1367
        %v1369 = vperm.slane %v1364, %v1368
        %1371 = vset.pattern.permute.xlu0 1
        %1372 = vperm.xlu0 %1371, %v1090
        %v1373 = vpop.permute.xlu0 %1372
        %v1376 = vunpack.c.l.s4 839922192
        %v1377 = vunpack.c.0.s8 %v1376
        %v1378 = vperm.slane %v1373, %v1377
        %v1379 = vunpack.c.l.bf16 %v1099
        %v1380 = vunpack.c.l.bf16 %v1108
        %v1381 = vunpack.c.l.bf16 %v1117
        %v1382 = vunpack.c.l.bf16 %v1126
        %v1383 = vunpack.c.l.bf16 %v1135
        %v1384 = vunpack.c.l.bf16 %v1144
        %v1385 = vunpack.c.l.bf16 %v1153
        %v1386 = vunpack.c.l.bf16 %v1162
        %v1387 = vunpack.c.l.bf16 %v1171
        %v1388 = vunpack.c.l.bf16 %v1180
        %v1389 = vunpack.c.l.bf16 %v1189
        %v1390 = vunpack.c.l.bf16 %v1198
        %v1391 = vunpack.c.l.bf16 %v1207
        %v1392 = vunpack.c.l.bf16 %v1216
        %v1393 = vunpack.c.l.bf16 %v1225
        %v1394 = vunpack.c.l.bf16 %v1234
        %v1395 = vunpack.c.l.bf16 %v1243
        %v1396 = vunpack.c.l.bf16 %v1252
        %v1397 = vunpack.c.l.bf16 %v1261
        %v1398 = vunpack.c.l.bf16 %v1270
        %v1399 = vunpack.c.l.bf16 %v1279
        %v1400 = vunpack.c.l.bf16 %v1288
        %v1401 = vunpack.c.l.bf16 %v1297
        %v1402 = vunpack.c.l.bf16 %v1306
        %v1403 = vunpack.c.l.bf16 %v1315
        %v1404 = vunpack.c.l.bf16 %v1324
        %v1405 = vunpack.c.l.bf16 %v1333
        %v1406 = vunpack.c.l.bf16 %v1342
        %v1407 = vunpack.c.l.bf16 %v1351
        %v1408 = vunpack.c.l.bf16 %v1360
        %v1409 = vunpack.c.l.bf16 %v1369
        %v1410 = vunpack.c.l.bf16 %v1378
        %v1411 = vmul.f32 %v1379, %v899
        %v1412 = vmul.f32 %v1380, %v900
        %v1413 = vmul.f32 %v1381, %v901
        %v1414 = vmul.f32 %v1382, %v902
        %v1415 = vmul.f32 %v1383, %v903
        %v1416 = vmul.f32 %v1384, %v904
        %v1417 = vmul.f32 %v1385, %v905
        %v1418 = vmul.f32 %v1386, %v906
        %v1419 = vmul.f32 %v1387, %v907
        %v1420 = vmul.f32 %v1388, %v908
        %v1421 = vmul.f32 %v1389, %v909
        %v1422 = vmul.f32 %v1390, %v910
        %v1423 = vmul.f32 %v1391, %v911
        %v1424 = vmul.f32 %v1392, %v912
        %v1425 = vmul.f32 %v1393, %v913
        %v1426 = vmul.f32 %v1394, %v914
        %v1427 = vmul.f32 %v1395, %v915
        %v1428 = vmul.f32 %v1396, %v916
        %v1429 = vmul.f32 %v1397, %v917
        %v1430 = vmul.f32 %v1398, %v918
        %v1431 = vmul.f32 %v1399, %v919
        %v1432 = vmul.f32 %v1400, %v920
        %v1433 = vmul.f32 %v1401, %v921
        %v1434 = vmul.f32 %v1402, %v922
        %v1435 = vmul.f32 %v1403, %v923
        %v1436 = vmul.f32 %v1404, %v924
        %v1437 = vmul.f32 %v1405, %v925
        %v1438 = vmul.f32 %v1406, %v926
        %v1439 = vmul.f32 %v1407, %v927
        %v1440 = vmul.f32 %v1408, %v928
        %v1441 = vmul.f32 %v1409, %v929
        %v1442 = vmul.f32 %v1410, %v930
        %v1443 = vpack.c.bf16 %v1411, %v1411
        %v1444 = vpack.c.bf16 %v1412, %v1412
        %v1445 = vpack.c.bf16 %v1413, %v1413
        %v1446 = vpack.c.bf16 %v1414, %v1414
        %v1447 = vpack.c.bf16 %v1415, %v1415
        %v1448 = vpack.c.bf16 %v1416, %v1416
        %v1449 = vpack.c.bf16 %v1417, %v1417
        %v1450 = vpack.c.bf16 %v1418, %v1418
        %v1451 = vpack.c.bf16 %v1419, %v1419
        %v1452 = vpack.c.bf16 %v1420, %v1420
        %v1453 = vpack.c.bf16 %v1421, %v1421
        %v1454 = vpack.c.bf16 %v1422, %v1422
        %v1455 = vpack.c.bf16 %v1423, %v1423
        %v1456 = vpack.c.bf16 %v1424, %v1424
        %v1457 = vpack.c.bf16 %v1425, %v1425
        %v1458 = vpack.c.bf16 %v1426, %v1426
        %v1459 = vpack.c.bf16 %v1427, %v1427
        %v1460 = vpack.c.bf16 %v1428, %v1428
        %v1461 = vpack.c.bf16 %v1429, %v1429
        %v1462 = vpack.c.bf16 %v1430, %v1430
        %v1463 = vpack.c.bf16 %v1431, %v1431
        %v1464 = vpack.c.bf16 %v1432, %v1432
        %v1465 = vpack.c.bf16 %v1433, %v1433
        %v1466 = vpack.c.bf16 %v1434, %v1434
        %v1467 = vpack.c.bf16 %v1435, %v1435
        %v1468 = vpack.c.bf16 %v1436, %v1436
        %v1469 = vpack.c.bf16 %v1437, %v1437
        %v1470 = vpack.c.bf16 %v1438, %v1438
        %v1471 = vpack.c.bf16 %v1439, %v1439
        %v1472 = vpack.c.bf16 %v1440, %v1440
        %v1473 = vpack.c.bf16 %v1441, %v1441
        %v1474 = vpack.c.bf16 %v1442, %v1442
        %1475 = vst [vmem:[#allocation3 + $0x4] sm:$0xf] %v1443
        %1476 = vst [vmem:[#allocation3 + $0x24] sm:$0xf] %v1444
        %1477 = vst [vmem:[#allocation3 + $0x44] sm:$0xf] %v1445
        %1478 = vst [vmem:[#allocation3 + $0x64] sm:$0xf] %v1446
        %1479 = vst [vmem:[#allocation3 + $0x84] sm:$0xf] %v1447
        %1480 = vst [vmem:[#allocation3 + $0xa4] sm:$0xf] %v1448
        %1481 = vst [vmem:[#allocation3 + $0xc4] sm:$0xf] %v1449
        %1482 = vst [vmem:[#allocation3 + $0xe4] sm:$0xf] %v1450
        %1483 = vst [vmem:[#allocation3 + $0x104] sm:$0xf] %v1451
        %1484 = vst [vmem:[#allocation3 + $0x124] sm:$0xf] %v1452
        %1485 = vst [vmem:[#allocation3 + $0x144] sm:$0xf] %v1453
        %1486 = vst [vmem:[#allocation3 + $0x164] sm:$0xf] %v1454
        %1487 = vst [vmem:[#allocation3 + $0x184] sm:$0xf] %v1455
        %1488 = vst [vmem:[#allocation3 + $0x1a4] sm:$0xf] %v1456
        %1489 = vst [vmem:[#allocation3 + $0x1c4] sm:$0xf] %v1457
        %1490 = vst [vmem:[#allocation3 + $0x1e4] sm:$0xf] %v1458
        %1491 = vst [vmem:[#allocation3 + $0x204] sm:$0xf] %v1459
        %1492 = vst [vmem:[#allocation3 + $0x224] sm:$0xf] %v1460
        %1493 = vst [vmem:[#allocation3 + $0x244] sm:$0xf] %v1461
        %1494 = vst [vmem:[#allocation3 + $0x264] sm:$0xf] %v1462
        %1495 = vst [vmem:[#allocation3 + $0x284] sm:$0xf] %v1463
        %1496 = vst [vmem:[#allocation3 + $0x2a4] sm:$0xf] %v1464
        %1497 = vst [vmem:[#allocation3 + $0x2c4] sm:$0xf] %v1465
        %1498 = vst [vmem:[#allocation3 + $0x2e4] sm:$0xf] %v1466
        %1499 = vst [vmem:[#allocation3 + $0x304] sm:$0xf] %v1467
        %1500 = vst [vmem:[#allocation3 + $0x324] sm:$0xf] %v1468
        %1501 = vst [vmem:[#allocation3 + $0x344] sm:$0xf] %v1469
        %1502 = vst [vmem:[#allocation3 + $0x364] sm:$0xf] %v1470
        %1503 = vst [vmem:[#allocation3 + $0x384] sm:$0xf] %v1471
        %1504 = vst [vmem:[#allocation3 + $0x3a4] sm:$0xf] %v1472
        %1505 = vst [vmem:[#allocation3 + $0x3c4] sm:$0xf] %v1473
        %1506 = vst [vmem:[#allocation3 + $0x3e4] sm:$0xf] %v1474
        %v1507 = vld [vmem:[%s279] sm:$0xff]
        %v1508 = vld [vmem:[%s279 + $0x8] sm:$0xff]
        %v1509 = vld [vmem:[%s279 + $0x10] sm:$0xff]
        %v1510 = vld [vmem:[%s279 + $0x18] sm:$0xff]
        %v1511 = vld [vmem:[%s279 + $0x20] sm:$0xff]
        %v1512 = vld [vmem:[%s279 + $0x28] sm:$0xff]
        %v1513 = vld [vmem:[%s279 + $0x30] sm:$0xff]
        %v1514 = vld [vmem:[%s279 + $0x38] sm:$0xff]
        %v1515 = vld [vmem:[%s279 + $0x40] sm:$0xff]
        %v1516 = vld [vmem:[%s279 + $0x48] sm:$0xff]
        %v1517 = vld [vmem:[%s279 + $0x50] sm:$0xff]
        %v1518 = vld [vmem:[%s279 + $0x58] sm:$0xff]
        %v1519 = vld [vmem:[%s279 + $0x60] sm:$0xff]
        %v1520 = vld [vmem:[%s279 + $0x68] sm:$0xff]
        %v1521 = vld [vmem:[%s279 + $0x70] sm:$0xff]
        %v1522 = vld [vmem:[%s279 + $0x78] sm:$0xff]
        %v1523 = vld [vmem:[%s279 + $0x80] sm:$0xff]
        %v1524 = vld [vmem:[%s279 + $0x88] sm:$0xff]
        %v1525 = vld [vmem:[%s279 + $0x90] sm:$0xff]
        %v1526 = vld [vmem:[%s279 + $0x98] sm:$0xff]
        %v1527 = vld [vmem:[%s279 + $0xa0] sm:$0xff]
        %v1528 = vld [vmem:[%s279 + $0xa8] sm:$0xff]
        %v1529 = vld [vmem:[%s279 + $0xb0] sm:$0xff]
        %v1530 = vld [vmem:[%s279 + $0xb8] sm:$0xff]
        %v1531 = vld [vmem:[%s279 + $0xc0] sm:$0xff]
        %v1532 = vld [vmem:[%s279 + $0xc8] sm:$0xff]
        %v1533 = vld [vmem:[%s279 + $0xd0] sm:$0xff]
        %v1534 = vld [vmem:[%s279 + $0xd8] sm:$0xff]
        %v1535 = vld [vmem:[%s279 + $0xe0] sm:$0xff]
        %v1536 = vld [vmem:[%s279 + $0xe8] sm:$0xff]
        %v1537 = vld [vmem:[%s279 + $0xf0] sm:$0xff]
        %v1538 = vld [vmem:[%s279 + $0xf8] sm:$0xff]
        %v1539 = vpack.c.bf16 %v1507, %v1507
        %v1540 = vpack.c.bf16 %v1508, %v1508
        %v1541 = vpack.c.bf16 %v1509, %v1509
        %v1542 = vpack.c.bf16 %v1510, %v1510
        %v1543 = vpack.c.bf16 %v1511, %v1511
        %v1544 = vpack.c.bf16 %v1512, %v1512
        %v1545 = vpack.c.bf16 %v1513, %v1513
        %v1546 = vpack.c.bf16 %v1514, %v1514
        %v1547 = vpack.c.bf16 %v1515, %v1515
        %v1548 = vpack.c.bf16 %v1516, %v1516
        %v1549 = vpack.c.bf16 %v1517, %v1517
        %v1550 = vpack.c.bf16 %v1518, %v1518
        %v1551 = vpack.c.bf16 %v1519, %v1519
        %v1552 = vpack.c.bf16 %v1520, %v1520
        %v1553 = vpack.c.bf16 %v1521, %v1521
        %v1554 = vpack.c.bf16 %v1522, %v1522
        %v1555 = vpack.c.bf16 %v1523, %v1523
        %v1556 = vpack.c.bf16 %v1524, %v1524
        %v1557 = vpack.c.bf16 %v1525, %v1525
        %v1558 = vpack.c.bf16 %v1526, %v1526
        %v1559 = vpack.c.bf16 %v1527, %v1527
        %v1560 = vpack.c.bf16 %v1528, %v1528
        %v1561 = vpack.c.bf16 %v1529, %v1529
        %v1562 = vpack.c.bf16 %v1530, %v1530
        %v1563 = vpack.c.bf16 %v1531, %v1531
        %v1564 = vpack.c.bf16 %v1532, %v1532
        %v1565 = vpack.c.bf16 %v1533, %v1533
        %v1566 = vpack.c.bf16 %v1534, %v1534
        %v1567 = vpack.c.bf16 %v1535, %v1535
        %v1568 = vpack.c.bf16 %v1536, %v1536
        %v1569 = vpack.c.bf16 %v1537, %v1537
        %v1570 = vpack.c.bf16 %v1538, %v1538
        %1572 = vset.pattern.permute.xlu0 2
        %1573 = vperm.xlu0 %1572, %v1539
        %v1574 = vpop.permute.xlu0 %1573
        %v1577 = vunpack.c.l.s4 839922192
        %v1578 = vunpack.c.0.s8 %v1577
        %v1579 = vperm.slane %v1574, %v1578
        %1581 = vset.pattern.permute.xlu0 2
        %1582 = vperm.xlu0 %1581, %v1540
        %v1583 = vpop.permute.xlu0 %1582
        %v1586 = vunpack.c.l.s4 839922192
        %v1587 = vunpack.c.0.s8 %v1586
        %v1588 = vperm.slane %v1583, %v1587
        %1590 = vset.pattern.permute.xlu0 2
        %1591 = vperm.xlu0 %1590, %v1541
        %v1592 = vpop.permute.xlu0 %1591
        %v1595 = vunpack.c.l.s4 839922192
        %v1596 = vunpack.c.0.s8 %v1595
        %v1597 = vperm.slane %v1592, %v1596
        %1599 = vset.pattern.permute.xlu0 2
        %1600 = vperm.xlu0 %1599, %v1542
        %v1601 = vpop.permute.xlu0 %1600
        %v1604 = vunpack.c.l.s4 839922192
        %v1605 = vunpack.c.0.s8 %v1604
        %v1606 = vperm.slane %v1601, %v1605
        %1608 = vset.pattern.permute.xlu0 2
        %1609 = vperm.xlu0 %1608, %v1543
        %v1610 = vpop.permute.xlu0 %1609
        %v1613 = vunpack.c.l.s4 839922192
        %v1614 = vunpack.c.0.s8 %v1613
        %v1615 = vperm.slane %v1610, %v1614
        %1617 = vset.pattern.permute.xlu0 2
        %1618 = vperm.xlu0 %1617, %v1544
        %v1619 = vpop.permute.xlu0 %1618
        %v1622 = vunpack.c.l.s4 839922192
        %v1623 = vunpack.c.0.s8 %v1622
        %v1624 = vperm.slane %v1619, %v1623
        %1626 = vset.pattern.permute.xlu0 2
        %1627 = vperm.xlu0 %1626, %v1545
        %v1628 = vpop.permute.xlu0 %1627
        %v1631 = vunpack.c.l.s4 839922192
        %v1632 = vunpack.c.0.s8 %v1631
        %v1633 = vperm.slane %v1628, %v1632
        %1635 = vset.pattern.permute.xlu0 2
        %1636 = vperm.xlu0 %1635, %v1546
        %v1637 = vpop.permute.xlu0 %1636
        %v1640 = vunpack.c.l.s4 839922192
        %v1641 = vunpack.c.0.s8 %v1640
        %v1642 = vperm.slane %v1637, %v1641
        %1644 = vset.pattern.permute.xlu0 2
        %1645 = vperm.xlu0 %1644, %v1547
        %v1646 = vpop.permute.xlu0 %1645
        %v1649 = vunpack.c.l.s4 839922192
        %v1650 = vunpack.c.0.s8 %v1649
        %v1651 = vperm.slane %v1646, %v1650
        %1653 = vset.pattern.permute.xlu0 2
        %1654 = vperm.xlu0 %1653, %v1548
        %v1655 = vpop.permute.xlu0 %1654
        %v1658 = vunpack.c.l.s4 839922192
        %v1659 = vunpack.c.0.s8 %v1658
        %v1660 = vperm.slane %v1655, %v1659
        %1662 = vset.pattern.permute.xlu0 2
        %1663 = vperm.xlu0 %1662, %v1549
        %v1664 = vpop.permute.xlu0 %1663
        %v1667 = vunpack.c.l.s4 839922192
        %v1668 = vunpack.c.0.s8 %v1667
        %v1669 = vperm.slane %v1664, %v1668
        %1671 = vset.pattern.permute.xlu0 2
        %1672 = vperm.xlu0 %1671, %v1550
        %v1673 = vpop.permute.xlu0 %1672
        %v1676 = vunpack.c.l.s4 839922192
        %v1677 = vunpack.c.0.s8 %v1676
        %v1678 = vperm.slane %v1673, %v1677
        %1680 = vset.pattern.permute.xlu0 2
        %1681 = vperm.xlu0 %1680, %v1551
        %v1682 = vpop.permute.xlu0 %1681
        %v1685 = vunpack.c.l.s4 839922192
        %v1686 = vunpack.c.0.s8 %v1685
        %v1687 = vperm.slane %v1682, %v1686
        %1689 = vset.pattern.permute.xlu0 2
        %1690 = vperm.xlu0 %1689, %v1552
        %v1691 = vpop.permute.xlu0 %1690
        %v1694 = vunpack.c.l.s4 839922192
        %v1695 = vunpack.c.0.s8 %v1694
        %v1696 = vperm.slane %v1691, %v1695
        %1698 = vset.pattern.permute.xlu0 2
        %1699 = vperm.xlu0 %1698, %v1553
        %v1700 = vpop.permute.xlu0 %1699
        %v1703 = vunpack.c.l.s4 839922192
        %v1704 = vunpack.c.0.s8 %v1703
        %v1705 = vperm.slane %v1700, %v1704
        %1707 = vset.pattern.permute.xlu0 2
        %1708 = vperm.xlu0 %1707, %v1554
        %v1709 = vpop.permute.xlu0 %1708
        %v1712 = vunpack.c.l.s4 839922192
        %v1713 = vunpack.c.0.s8 %v1712
        %v1714 = vperm.slane %v1709, %v1713
        %1716 = vset.pattern.permute.xlu0 2
        %1717 = vperm.xlu0 %1716, %v1555
        %v1718 = vpop.permute.xlu0 %1717
        %v1721 = vunpack.c.l.s4 839922192
        %v1722 = vunpack.c.0.s8 %v1721
        %v1723 = vperm.slane %v1718, %v1722
        %1725 = vset.pattern.permute.xlu0 2
        %1726 = vperm.xlu0 %1725, %v1556
        %v1727 = vpop.permute.xlu0 %1726
        %v1730 = vunpack.c.l.s4 839922192
        %v1731 = vunpack.c.0.s8 %v1730
        %v1732 = vperm.slane %v1727, %v1731
        %1734 = vset.pattern.permute.xlu0 2
        %1735 = vperm.xlu0 %1734, %v1557
        %v1736 = vpop.permute.xlu0 %1735
        %v1739 = vunpack.c.l.s4 839922192
        %v1740 = vunpack.c.0.s8 %v1739
        %v1741 = vperm.slane %v1736, %v1740
        %1743 = vset.pattern.permute.xlu0 2
        %1744 = vperm.xlu0 %1743, %v1558
        %v1745 = vpop.permute.xlu0 %1744
        %v1748 = vunpack.c.l.s4 839922192
        %v1749 = vunpack.c.0.s8 %v1748
        %v1750 = vperm.slane %v1745, %v1749
        %1752 = vset.pattern.permute.xlu0 2
        %1753 = vperm.xlu0 %1752, %v1559
        %v1754 = vpop.permute.xlu0 %1753
        %v1757 = vunpack.c.l.s4 839922192
        %v1758 = vunpack.c.0.s8 %v1757
        %v1759 = vperm.slane %v1754, %v1758
        %1761 = vset.pattern.permute.xlu0 2
        %1762 = vperm.xlu0 %1761, %v1560
        %v1763 = vpop.permute.xlu0 %1762
        %v1766 = vunpack.c.l.s4 839922192
        %v1767 = vunpack.c.0.s8 %v1766
        %v1768 = vperm.slane %v1763, %v1767
        %1770 = vset.pattern.permute.xlu0 2
        %1771 = vperm.xlu0 %1770, %v1561
        %v1772 = vpop.permute.xlu0 %1771
        %v1775 = vunpack.c.l.s4 839922192
        %v1776 = vunpack.c.0.s8 %v1775
        %v1777 = vperm.slane %v1772, %v1776
        %1779 = vset.pattern.permute.xlu0 2
        %1780 = vperm.xlu0 %1779, %v1562
        %v1781 = vpop.permute.xlu0 %1780
        %v1784 = vunpack.c.l.s4 839922192
        %v1785 = vunpack.c.0.s8 %v1784
        %v1786 = vperm.slane %v1781, %v1785
        %1788 = vset.pattern.permute.xlu0 2
        %1789 = vperm.xlu0 %1788, %v1563
        %v1790 = vpop.permute.xlu0 %1789
        %v1793 = vunpack.c.l.s4 839922192
        %v1794 = vunpack.c.0.s8 %v1793
        %v1795 = vperm.slane %v1790, %v1794
        %1797 = vset.pattern.permute.xlu0 2
        %1798 = vperm.xlu0 %1797, %v1564
        %v1799 = vpop.permute.xlu0 %1798
        %v1802 = vunpack.c.l.s4 839922192
        %v1803 = vunpack.c.0.s8 %v1802
        %v1804 = vperm.slane %v1799, %v1803
        %1806 = vset.pattern.permute.xlu0 2
        %1807 = vperm.xlu0 %1806, %v1565
        %v1808 = vpop.permute.xlu0 %1807
        %v1811 = vunpack.c.l.s4 839922192
        %v1812 = vunpack.c.0.s8 %v1811
        %v1813 = vperm.slane %v1808, %v1812
        %1815 = vset.pattern.permute.xlu0 2
        %1816 = vperm.xlu0 %1815, %v1566
        %v1817 = vpop.permute.xlu0 %1816
        %v1820 = vunpack.c.l.s4 839922192
        %v1821 = vunpack.c.0.s8 %v1820
        %v1822 = vperm.slane %v1817, %v1821
        %1824 = vset.pattern.permute.xlu0 2
        %1825 = vperm.xlu0 %1824, %v1567
        %v1826 = vpop.permute.xlu0 %1825
        %v1829 = vunpack.c.l.s4 839922192
        %v1830 = vunpack.c.0.s8 %v1829
        %v1831 = vperm.slane %v1826, %v1830
        %1833 = vset.pattern.permute.xlu0 2
        %1834 = vperm.xlu0 %1833, %v1568
        %v1835 = vpop.permute.xlu0 %1834
        %v1838 = vunpack.c.l.s4 839922192
        %v1839 = vunpack.c.0.s8 %v1838
        %v1840 = vperm.slane %v1835, %v1839
        %1842 = vset.pattern.permute.xlu0 2
        %1843 = vperm.xlu0 %1842, %v1569
        %v1844 = vpop.permute.xlu0 %1843
        %v1847 = vunpack.c.l.s4 839922192
        %v1848 = vunpack.c.0.s8 %v1847
        %v1849 = vperm.slane %v1844, %v1848
        %1851 = vset.pattern.permute.xlu0 2
        %1852 = vperm.xlu0 %1851, %v1570
        %v1853 = vpop.permute.xlu0 %1852
        %v1856 = vunpack.c.l.s4 839922192
        %v1857 = vunpack.c.0.s8 %v1856
        %v1858 = vperm.slane %v1853, %v1857
        %v1859 = vunpack.c.l.bf16 %v1579
        %v1860 = vunpack.c.l.bf16 %v1588
        %v1861 = vunpack.c.l.bf16 %v1597
        %v1862 = vunpack.c.l.bf16 %v1606
        %v1863 = vunpack.c.l.bf16 %v1615
        %v1864 = vunpack.c.l.bf16 %v1624
        %v1865 = vunpack.c.l.bf16 %v1633
        %v1866 = vunpack.c.l.bf16 %v1642
        %v1867 = vunpack.c.l.bf16 %v1651
        %v1868 = vunpack.c.l.bf16 %v1660
        %v1869 = vunpack.c.l.bf16 %v1669
        %v1870 = vunpack.c.l.bf16 %v1678
        %v1871 = vunpack.c.l.bf16 %v1687
        %v1872 = vunpack.c.l.bf16 %v1696
        %v1873 = vunpack.c.l.bf16 %v1705
        %v1874 = vunpack.c.l.bf16 %v1714
        %v1875 = vunpack.c.l.bf16 %v1723
        %v1876 = vunpack.c.l.bf16 %v1732
        %v1877 = vunpack.c.l.bf16 %v1741
        %v1878 = vunpack.c.l.bf16 %v1750
        %v1879 = vunpack.c.l.bf16 %v1759
        %v1880 = vunpack.c.l.bf16 %v1768
        %v1881 = vunpack.c.l.bf16 %v1777
        %v1882 = vunpack.c.l.bf16 %v1786
        %v1883 = vunpack.c.l.bf16 %v1795
        %v1884 = vunpack.c.l.bf16 %v1804
        %v1885 = vunpack.c.l.bf16 %v1813
        %v1886 = vunpack.c.l.bf16 %v1822
        %v1887 = vunpack.c.l.bf16 %v1831
        %v1888 = vunpack.c.l.bf16 %v1840
        %v1889 = vunpack.c.l.bf16 %v1849
        %v1890 = vunpack.c.l.bf16 %v1858
        %v1891 = vmul.f32 %v1859, %v899
        %v1892 = vmul.f32 %v1860, %v900
        %v1893 = vmul.f32 %v1861, %v901
        %v1894 = vmul.f32 %v1862, %v902
        %v1895 = vmul.f32 %v1863, %v903
        %v1896 = vmul.f32 %v1864, %v904
        %v1897 = vmul.f32 %v1865, %v905
        %v1898 = vmul.f32 %v1866, %v906
        %v1899 = vmul.f32 %v1867, %v907
        %v1900 = vmul.f32 %v1868, %v908
        %v1901 = vmul.f32 %v1869, %v909
        %v1902 = vmul.f32 %v1870, %v910
        %v1903 = vmul.f32 %v1871, %v911
        %v1904 = vmul.f32 %v1872, %v912
        %v1905 = vmul.f32 %v1873, %v913
        %v1906 = vmul.f32 %v1874, %v914
        %v1907 = vmul.f32 %v1875, %v915
        %v1908 = vmul.f32 %v1876, %v916
        %v1909 = vmul.f32 %v1877, %v917
        %v1910 = vmul.f32 %v1878, %v918
        %v1911 = vmul.f32 %v1879, %v919
        %v1912 = vmul.f32 %v1880, %v920
        %v1913 = vmul.f32 %v1881, %v921
        %v1914 = vmul.f32 %v1882, %v922
        %v1915 = vmul.f32 %v1883, %v923
        %v1916 = vmul.f32 %v1884, %v924
        %v1917 = vmul.f32 %v1885, %v925
        %v1918 = vmul.f32 %v1886, %v926
        %v1919 = vmul.f32 %v1887, %v927
        %v1920 = vmul.f32 %v1888, %v928
        %v1921 = vmul.f32 %v1889, %v929
        %v1922 = vmul.f32 %v1890, %v930
        %v1923 = vpack.c.bf16 %v1891, %v1891
        %v1924 = vpack.c.bf16 %v1892, %v1892
        %v1925 = vpack.c.bf16 %v1893, %v1893
        %v1926 = vpack.c.bf16 %v1894, %v1894
        %v1927 = vpack.c.bf16 %v1895, %v1895
        %v1928 = vpack.c.bf16 %v1896, %v1896
        %v1929 = vpack.c.bf16 %v1897, %v1897
        %v1930 = vpack.c.bf16 %v1898, %v1898
        %v1931 = vpack.c.bf16 %v1899, %v1899
        %v1932 = vpack.c.bf16 %v1900, %v1900
        %v1933 = vpack.c.bf16 %v1901, %v1901
        %v1934 = vpack.c.bf16 %v1902, %v1902
        %v1935 = vpack.c.bf16 %v1903, %v1903
        %v1936 = vpack.c.bf16 %v1904, %v1904
        %v1937 = vpack.c.bf16 %v1905, %v1905
        %v1938 = vpack.c.bf16 %v1906, %v1906
        %v1939 = vpack.c.bf16 %v1907, %v1907
        %v1940 = vpack.c.bf16 %v1908, %v1908
        %v1941 = vpack.c.bf16 %v1909, %v1909
        %v1942 = vpack.c.bf16 %v1910, %v1910
        %v1943 = vpack.c.bf16 %v1911, %v1911
        %v1944 = vpack.c.bf16 %v1912, %v1912
        %v1945 = vpack.c.bf16 %v1913, %v1913
        %v1946 = vpack.c.bf16 %v1914, %v1914
        %v1947 = vpack.c.bf16 %v1915, %v1915
        %v1948 = vpack.c.bf16 %v1916, %v1916
        %v1949 = vpack.c.bf16 %v1917, %v1917
        %v1950 = vpack.c.bf16 %v1918, %v1918
        %v1951 = vpack.c.bf16 %v1919, %v1919
        %v1952 = vpack.c.bf16 %v1920, %v1920
        %v1953 = vpack.c.bf16 %v1921, %v1921
        %v1954 = vpack.c.bf16 %v1922, %v1922
        %1955 = vst [vmem:[#allocation3 + $0x8] sm:$0xf] %v1923
        %1956 = vst [vmem:[#allocation3 + $0x28] sm:$0xf] %v1924
        %1957 = vst [vmem:[#allocation3 + $0x48] sm:$0xf] %v1925
        %1958 = vst [vmem:[#allocation3 + $0x68] sm:$0xf] %v1926
        %1959 = vst [vmem:[#allocation3 + $0x88] sm:$0xf] %v1927
        %1960 = vst [vmem:[#allocation3 + $0xa8] sm:$0xf] %v1928
        %1961 = vst [vmem:[#allocation3 + $0xc8] sm:$0xf] %v1929
        %1962 = vst [vmem:[#allocation3 + $0xe8] sm:$0xf] %v1930
        %1963 = vst [vmem:[#allocation3 + $0x108] sm:$0xf] %v1931
        %1964 = vst [vmem:[#allocation3 + $0x128] sm:$0xf] %v1932
        %1965 = vst [vmem:[#allocation3 + $0x148] sm:$0xf] %v1933
        %1966 = vst [vmem:[#allocation3 + $0x168] sm:$0xf] %v1934
        %1967 = vst [vmem:[#allocation3 + $0x188] sm:$0xf] %v1935
        %1968 = vst [vmem:[#allocation3 + $0x1a8] sm:$0xf] %v1936
        %1969 = vst [vmem:[#allocation3 + $0x1c8] sm:$0xf] %v1937
        %1970 = vst [vmem:[#allocation3 + $0x1e8] sm:$0xf] %v1938
        %1971 = vst [vmem:[#allocation3 + $0x208] sm:$0xf] %v1939
        %1972 = vst [vmem:[#allocation3 + $0x228] sm:$0xf] %v1940
        %1973 = vst [vmem:[#allocation3 + $0x248] sm:$0xf] %v1941
        %1974 = vst [vmem:[#allocation3 + $0x268] sm:$0xf] %v1942
        %1975 = vst [vmem:[#allocation3 + $0x288] sm:$0xf] %v1943
        %1976 = vst [vmem:[#allocation3 + $0x2a8] sm:$0xf] %v1944
        %1977 = vst [vmem:[#allocation3 + $0x2c8] sm:$0xf] %v1945
        %1978 = vst [vmem:[#allocation3 + $0x2e8] sm:$0xf] %v1946
        %1979 = vst [vmem:[#allocation3 + $0x308] sm:$0xf] %v1947
        %1980 = vst [vmem:[#allocation3 + $0x328] sm:$0xf] %v1948
        %1981 = vst [vmem:[#allocation3 + $0x348] sm:$0xf] %v1949
        %1982 = vst [vmem:[#allocation3 + $0x368] sm:$0xf] %v1950
        %1983 = vst [vmem:[#allocation3 + $0x388] sm:$0xf] %v1951
        %1984 = vst [vmem:[#allocation3 + $0x3a8] sm:$0xf] %v1952
        %1985 = vst [vmem:[#allocation3 + $0x3c8] sm:$0xf] %v1953
        %1986 = vst [vmem:[#allocation3 + $0x3e8] sm:$0xf] %v1954
        %v1987 = vld [vmem:[%s279] sm:$0xff]
        %v1988 = vld [vmem:[%s279 + $0x8] sm:$0xff]
        %v1989 = vld [vmem:[%s279 + $0x10] sm:$0xff]
        %v1990 = vld [vmem:[%s279 + $0x18] sm:$0xff]
        %v1991 = vld [vmem:[%s279 + $0x20] sm:$0xff]
        %v1992 = vld [vmem:[%s279 + $0x28] sm:$0xff]
        %v1993 = vld [vmem:[%s279 + $0x30] sm:$0xff]
        %v1994 = vld [vmem:[%s279 + $0x38] sm:$0xff]
        %v1995 = vld [vmem:[%s279 + $0x40] sm:$0xff]
        %v1996 = vld [vmem:[%s279 + $0x48] sm:$0xff]
        %v1997 = vld [vmem:[%s279 + $0x50] sm:$0xff]
        %v1998 = vld [vmem:[%s279 + $0x58] sm:$0xff]
        %v1999 = vld [vmem:[%s279 + $0x60] sm:$0xff]
        %v2000 = vld [vmem:[%s279 + $0x68] sm:$0xff]
        %v2001 = vld [vmem:[%s279 + $0x70] sm:$0xff]
        %v2002 = vld [vmem:[%s279 + $0x78] sm:$0xff]
        %v2003 = vld [vmem:[%s279 + $0x80] sm:$0xff]
        %v2004 = vld [vmem:[%s279 + $0x88] sm:$0xff]
        %v2005 = vld [vmem:[%s279 + $0x90] sm:$0xff]
        %v2006 = vld [vmem:[%s279 + $0x98] sm:$0xff]
        %v2007 = vld [vmem:[%s279 + $0xa0] sm:$0xff]
        %v2008 = vld [vmem:[%s279 + $0xa8] sm:$0xff]
        %v2009 = vld [vmem:[%s279 + $0xb0] sm:$0xff]
        %v2010 = vld [vmem:[%s279 + $0xb8] sm:$0xff]
        %v2011 = vld [vmem:[%s279 + $0xc0] sm:$0xff]
        %v2012 = vld [vmem:[%s279 + $0xc8] sm:$0xff]
        %v2013 = vld [vmem:[%s279 + $0xd0] sm:$0xff]
        %v2014 = vld [vmem:[%s279 + $0xd8] sm:$0xff]
        %v2015 = vld [vmem:[%s279 + $0xe0] sm:$0xff]
        %v2016 = vld [vmem:[%s279 + $0xe8] sm:$0xff]
        %v2017 = vld [vmem:[%s279 + $0xf0] sm:$0xff]
        %v2018 = vld [vmem:[%s279 + $0xf8] sm:$0xff]
        %v2019 = vpack.c.bf16 %v1987, %v1987
        %v2020 = vpack.c.bf16 %v1988, %v1988
        %v2021 = vpack.c.bf16 %v1989, %v1989
        %v2022 = vpack.c.bf16 %v1990, %v1990
        %v2023 = vpack.c.bf16 %v1991, %v1991
        %v2024 = vpack.c.bf16 %v1992, %v1992
        %v2025 = vpack.c.bf16 %v1993, %v1993
        %v2026 = vpack.c.bf16 %v1994, %v1994
        %v2027 = vpack.c.bf16 %v1995, %v1995
        %v2028 = vpack.c.bf16 %v1996, %v1996
        %v2029 = vpack.c.bf16 %v1997, %v1997
        %v2030 = vpack.c.bf16 %v1998, %v1998
        %v2031 = vpack.c.bf16 %v1999, %v1999
        %v2032 = vpack.c.bf16 %v2000, %v2000
        %v2033 = vpack.c.bf16 %v2001, %v2001
        %v2034 = vpack.c.bf16 %v2002, %v2002
        %v2035 = vpack.c.bf16 %v2003, %v2003
        %v2036 = vpack.c.bf16 %v2004, %v2004
        %v2037 = vpack.c.bf16 %v2005, %v2005
        %v2038 = vpack.c.bf16 %v2006, %v2006
        %v2039 = vpack.c.bf16 %v2007, %v2007
        %v2040 = vpack.c.bf16 %v2008, %v2008
        %v2041 = vpack.c.bf16 %v2009, %v2009
        %v2042 = vpack.c.bf16 %v2010, %v2010
        %v2043 = vpack.c.bf16 %v2011, %v2011
        %v2044 = vpack.c.bf16 %v2012, %v2012
        %v2045 = vpack.c.bf16 %v2013, %v2013
        %v2046 = vpack.c.bf16 %v2014, %v2014
        %v2047 = vpack.c.bf16 %v2015, %v2015
        %v2048 = vpack.c.bf16 %v2016, %v2016
        %v2049 = vpack.c.bf16 %v2017, %v2017
        %v2050 = vpack.c.bf16 %v2018, %v2018
        %2052 = vset.pattern.permute.xlu0 3
        %2053 = vperm.xlu0 %2052, %v2019
        %v2054 = vpop.permute.xlu0 %2053
        %v2057 = vunpack.c.l.s4 839922192
        %v2058 = vunpack.c.0.s8 %v2057
        %v2059 = vperm.slane %v2054, %v2058
        %2061 = vset.pattern.permute.xlu0 3
        %2062 = vperm.xlu0 %2061, %v2020
        %v2063 = vpop.permute.xlu0 %2062
        %v2066 = vunpack.c.l.s4 839922192
        %v2067 = vunpack.c.0.s8 %v2066
        %v2068 = vperm.slane %v2063, %v2067
        %2070 = vset.pattern.permute.xlu0 3
        %2071 = vperm.xlu0 %2070, %v2021
        %v2072 = vpop.permute.xlu0 %2071
        %v2075 = vunpack.c.l.s4 839922192
        %v2076 = vunpack.c.0.s8 %v2075
        %v2077 = vperm.slane %v2072, %v2076
        %2079 = vset.pattern.permute.xlu0 3
        %2080 = vperm.xlu0 %2079, %v2022
        %v2081 = vpop.permute.xlu0 %2080
        %v2084 = vunpack.c.l.s4 839922192
        %v2085 = vunpack.c.0.s8 %v2084
        %v2086 = vperm.slane %v2081, %v2085
        %2088 = vset.pattern.permute.xlu0 3
        %2089 = vperm.xlu0 %2088, %v2023
        %v2090 = vpop.permute.xlu0 %2089
        %v2093 = vunpack.c.l.s4 839922192
        %v2094 = vunpack.c.0.s8 %v2093
        %v2095 = vperm.slane %v2090, %v2094
        %2097 = vset.pattern.permute.xlu0 3
        %2098 = vperm.xlu0 %2097, %v2024
        %v2099 = vpop.permute.xlu0 %2098
        %v2102 = vunpack.c.l.s4 839922192
        %v2103 = vunpack.c.0.s8 %v2102
        %v2104 = vperm.slane %v2099, %v2103
        %2106 = vset.pattern.permute.xlu0 3
        %2107 = vperm.xlu0 %2106, %v2025
        %v2108 = vpop.permute.xlu0 %2107
        %v2111 = vunpack.c.l.s4 839922192
        %v2112 = vunpack.c.0.s8 %v2111
        %v2113 = vperm.slane %v2108, %v2112
        %2115 = vset.pattern.permute.xlu0 3
        %2116 = vperm.xlu0 %2115, %v2026
        %v2117 = vpop.permute.xlu0 %2116
        %v2120 = vunpack.c.l.s4 839922192
        %v2121 = vunpack.c.0.s8 %v2120
        %v2122 = vperm.slane %v2117, %v2121
        %2124 = vset.pattern.permute.xlu0 3
        %2125 = vperm.xlu0 %2124, %v2027
        %v2126 = vpop.permute.xlu0 %2125
        %v2129 = vunpack.c.l.s4 839922192
        %v2130 = vunpack.c.0.s8 %v2129
        %v2131 = vperm.slane %v2126, %v2130
        %2133 = vset.pattern.permute.xlu0 3
        %2134 = vperm.xlu0 %2133, %v2028
        %v2135 = vpop.permute.xlu0 %2134
        %v2138 = vunpack.c.l.s4 839922192
        %v2139 = vunpack.c.0.s8 %v2138
        %v2140 = vperm.slane %v2135, %v2139
        %2142 = vset.pattern.permute.xlu0 3
        %2143 = vperm.xlu0 %2142, %v2029
        %v2144 = vpop.permute.xlu0 %2143
        %v2147 = vunpack.c.l.s4 839922192
        %v2148 = vunpack.c.0.s8 %v2147
        %v2149 = vperm.slane %v2144, %v2148
        %2151 = vset.pattern.permute.xlu0 3
        %2152 = vperm.xlu0 %2151, %v2030
        %v2153 = vpop.permute.xlu0 %2152
        %v2156 = vunpack.c.l.s4 839922192
        %v2157 = vunpack.c.0.s8 %v2156
        %v2158 = vperm.slane %v2153, %v2157
        %2160 = vset.pattern.permute.xlu0 3
        %2161 = vperm.xlu0 %2160, %v2031
        %v2162 = vpop.permute.xlu0 %2161
        %v2165 = vunpack.c.l.s4 839922192
        %v2166 = vunpack.c.0.s8 %v2165
        %v2167 = vperm.slane %v2162, %v2166
        %2169 = vset.pattern.permute.xlu0 3
        %2170 = vperm.xlu0 %2169, %v2032
        %v2171 = vpop.permute.xlu0 %2170
        %v2174 = vunpack.c.l.s4 839922192
        %v2175 = vunpack.c.0.s8 %v2174
        %v2176 = vperm.slane %v2171, %v2175
        %2178 = vset.pattern.permute.xlu0 3
        %2179 = vperm.xlu0 %2178, %v2033
        %v2180 = vpop.permute.xlu0 %2179
        %v2183 = vunpack.c.l.s4 839922192
        %v2184 = vunpack.c.0.s8 %v2183
        %v2185 = vperm.slane %v2180, %v2184
        %2187 = vset.pattern.permute.xlu0 3
        %2188 = vperm.xlu0 %2187, %v2034
        %v2189 = vpop.permute.xlu0 %2188
        %v2192 = vunpack.c.l.s4 839922192
        %v2193 = vunpack.c.0.s8 %v2192
        %v2194 = vperm.slane %v2189, %v2193
        %2196 = vset.pattern.permute.xlu0 3
        %2197 = vperm.xlu0 %2196, %v2035
        %v2198 = vpop.permute.xlu0 %2197
        %v2201 = vunpack.c.l.s4 839922192
        %v2202 = vunpack.c.0.s8 %v2201
        %v2203 = vperm.slane %v2198, %v2202
        %2205 = vset.pattern.permute.xlu0 3
        %2206 = vperm.xlu0 %2205, %v2036
        %v2207 = vpop.permute.xlu0 %2206
        %v2210 = vunpack.c.l.s4 839922192
        %v2211 = vunpack.c.0.s8 %v2210
        %v2212 = vperm.slane %v2207, %v2211
        %2214 = vset.pattern.permute.xlu0 3
        %2215 = vperm.xlu0 %2214, %v2037
        %v2216 = vpop.permute.xlu0 %2215
        %v2219 = vunpack.c.l.s4 839922192
        %v2220 = vunpack.c.0.s8 %v2219
        %v2221 = vperm.slane %v2216, %v2220
        %2223 = vset.pattern.permute.xlu0 3
        %2224 = vperm.xlu0 %2223, %v2038
        %v2225 = vpop.permute.xlu0 %2224
        %v2228 = vunpack.c.l.s4 839922192
        %v2229 = vunpack.c.0.s8 %v2228
        %v2230 = vperm.slane %v2225, %v2229
        %2232 = vset.pattern.permute.xlu0 3
        %2233 = vperm.xlu0 %2232, %v2039
        %v2234 = vpop.permute.xlu0 %2233
        %v2237 = vunpack.c.l.s4 839922192
        %v2238 = vunpack.c.0.s8 %v2237
        %v2239 = vperm.slane %v2234, %v2238
        %2241 = vset.pattern.permute.xlu0 3
        %2242 = vperm.xlu0 %2241, %v2040
        %v2243 = vpop.permute.xlu0 %2242
        %v2246 = vunpack.c.l.s4 839922192
        %v2247 = vunpack.c.0.s8 %v2246
        %v2248 = vperm.slane %v2243, %v2247
        %2250 = vset.pattern.permute.xlu0 3
        %2251 = vperm.xlu0 %2250, %v2041
        %v2252 = vpop.permute.xlu0 %2251
        %v2255 = vunpack.c.l.s4 839922192
        %v2256 = vunpack.c.0.s8 %v2255
        %v2257 = vperm.slane %v2252, %v2256
        %2259 = vset.pattern.permute.xlu0 3
        %2260 = vperm.xlu0 %2259, %v2042
        %v2261 = vpop.permute.xlu0 %2260
        %v2264 = vunpack.c.l.s4 839922192
        %v2265 = vunpack.c.0.s8 %v2264
        %v2266 = vperm.slane %v2261, %v2265
        %2268 = vset.pattern.permute.xlu0 3
        %2269 = vperm.xlu0 %2268, %v2043
        %v2270 = vpop.permute.xlu0 %2269
        %v2273 = vunpack.c.l.s4 839922192
        %v2274 = vunpack.c.0.s8 %v2273
        %v2275 = vperm.slane %v2270, %v2274
        %2277 = vset.pattern.permute.xlu0 3
        %2278 = vperm.xlu0 %2277, %v2044
        %v2279 = vpop.permute.xlu0 %2278
        %v2282 = vunpack.c.l.s4 839922192
        %v2283 = vunpack.c.0.s8 %v2282
        %v2284 = vperm.slane %v2279, %v2283
        %2286 = vset.pattern.permute.xlu0 3
        %2287 = vperm.xlu0 %2286, %v2045
        %v2288 = vpop.permute.xlu0 %2287
        %v2291 = vunpack.c.l.s4 839922192
        %v2292 = vunpack.c.0.s8 %v2291
        %v2293 = vperm.slane %v2288, %v2292
        %2295 = vset.pattern.permute.xlu0 3
        %2296 = vperm.xlu0 %2295, %v2046
        %v2297 = vpop.permute.xlu0 %2296
        %v2300 = vunpack.c.l.s4 839922192
        %v2301 = vunpack.c.0.s8 %v2300
        %v2302 = vperm.slane %v2297, %v2301
        %2304 = vset.pattern.permute.xlu0 3
        %2305 = vperm.xlu0 %2304, %v2047
        %v2306 = vpop.permute.xlu0 %2305
        %v2309 = vunpack.c.l.s4 839922192
        %v2310 = vunpack.c.0.s8 %v2309
        %v2311 = vperm.slane %v2306, %v2310
        %2313 = vset.pattern.permute.xlu0 3
        %2314 = vperm.xlu0 %2313, %v2048
        %v2315 = vpop.permute.xlu0 %2314
        %v2318 = vunpack.c.l.s4 839922192
        %v2319 = vunpack.c.0.s8 %v2318
        %v2320 = vperm.slane %v2315, %v2319
        %2322 = vset.pattern.permute.xlu0 3
        %2323 = vperm.xlu0 %2322, %v2049
        %v2324 = vpop.permute.xlu0 %2323
        %v2327 = vunpack.c.l.s4 839922192
        %v2328 = vunpack.c.0.s8 %v2327
        %v2329 = vperm.slane %v2324, %v2328
        %2331 = vset.pattern.permute.xlu0 3
        %2332 = vperm.xlu0 %2331, %v2050
        %v2333 = vpop.permute.xlu0 %2332
        %v2336 = vunpack.c.l.s4 839922192
        %v2337 = vunpack.c.0.s8 %v2336
        %v2338 = vperm.slane %v2333, %v2337
        %v2339 = vunpack.c.l.bf16 %v2059
        %v2340 = vunpack.c.l.bf16 %v2068
        %v2341 = vunpack.c.l.bf16 %v2077
        %v2342 = vunpack.c.l.bf16 %v2086
        %v2343 = vunpack.c.l.bf16 %v2095
        %v2344 = vunpack.c.l.bf16 %v2104
        %v2345 = vunpack.c.l.bf16 %v2113
        %v2346 = vunpack.c.l.bf16 %v2122
        %v2347 = vunpack.c.l.bf16 %v2131
        %v2348 = vunpack.c.l.bf16 %v2140
        %v2349 = vunpack.c.l.bf16 %v2149
        %v2350 = vunpack.c.l.bf16 %v2158
        %v2351 = vunpack.c.l.bf16 %v2167
        %v2352 = vunpack.c.l.bf16 %v2176
        %v2353 = vunpack.c.l.bf16 %v2185
        %v2354 = vunpack.c.l.bf16 %v2194
        %v2355 = vunpack.c.l.bf16 %v2203
        %v2356 = vunpack.c.l.bf16 %v2212
        %v2357 = vunpack.c.l.bf16 %v2221
        %v2358 = vunpack.c.l.bf16 %v2230
        %v2359 = vunpack.c.l.bf16 %v2239
        %v2360 = vunpack.c.l.bf16 %v2248
        %v2361 = vunpack.c.l.bf16 %v2257
        %v2362 = vunpack.c.l.bf16 %v2266
        %v2363 = vunpack.c.l.bf16 %v2275
        %v2364 = vunpack.c.l.bf16 %v2284
        %v2365 = vunpack.c.l.bf16 %v2293
        %v2366 = vunpack.c.l.bf16 %v2302
        %v2367 = vunpack.c.l.bf16 %v2311
        %v2368 = vunpack.c.l.bf16 %v2320
        %v2369 = vunpack.c.l.bf16 %v2329
        %v2370 = vunpack.c.l.bf16 %v2338
        %v2371 = vmul.f32 %v2339, %v899
        %v2372 = vmul.f32 %v2340, %v900
        %v2373 = vmul.f32 %v2341, %v901
        %v2374 = vmul.f32 %v2342, %v902
        %v2375 = vmul.f32 %v2343, %v903
        %v2376 = vmul.f32 %v2344, %v904
        %v2377 = vmul.f32 %v2345, %v905
        %v2378 = vmul.f32 %v2346, %v906
        %v2379 = vmul.f32 %v2347, %v907
        %v2380 = vmul.f32 %v2348, %v908
        %v2381 = vmul.f32 %v2349, %v909
        %v2382 = vmul.f32 %v2350, %v910
        %v2383 = vmul.f32 %v2351, %v911
        %v2384 = vmul.f32 %v2352, %v912
        %v2385 = vmul.f32 %v2353, %v913
        %v2386 = vmul.f32 %v2354, %v914
        %v2387 = vmul.f32 %v2355, %v915
        %v2388 = vmul.f32 %v2356, %v916
        %v2389 = vmul.f32 %v2357, %v917
        %v2390 = vmul.f32 %v2358, %v918
        %v2391 = vmul.f32 %v2359, %v919
        %v2392 = vmul.f32 %v2360, %v920
        %v2393 = vmul.f32 %v2361, %v921
        %v2394 = vmul.f32 %v2362, %v922
        %v2395 = vmul.f32 %v2363, %v923
        %v2396 = vmul.f32 %v2364, %v924
        %v2397 = vmul.f32 %v2365, %v925
        %v2398 = vmul.f32 %v2366, %v926
        %v2399 = vmul.f32 %v2367, %v927
        %v2400 = vmul.f32 %v2368, %v928
        %v2401 = vmul.f32 %v2369, %v929
        %v2402 = vmul.f32 %v2370, %v930
        %v2403 = vpack.c.bf16 %v2371, %v2371
        %v2404 = vpack.c.bf16 %v2372, %v2372
        %v2405 = vpack.c.bf16 %v2373, %v2373
        %v2406 = vpack.c.bf16 %v2374, %v2374
        %v2407 = vpack.c.bf16 %v2375, %v2375
        %v2408 = vpack.c.bf16 %v2376, %v2376
        %v2409 = vpack.c.bf16 %v2377, %v2377
        %v2410 = vpack.c.bf16 %v2378, %v2378
        %v2411 = vpack.c.bf16 %v2379, %v2379
        %v2412 = vpack.c.bf16 %v2380, %v2380
        %v2413 = vpack.c.bf16 %v2381, %v2381
        %v2414 = vpack.c.bf16 %v2382, %v2382
        %v2415 = vpack.c.bf16 %v2383, %v2383
        %v2416 = vpack.c.bf16 %v2384, %v2384
        %v2417 = vpack.c.bf16 %v2385, %v2385
        %v2418 = vpack.c.bf16 %v2386, %v2386
        %v2419 = vpack.c.bf16 %v2387, %v2387
        %v2420 = vpack.c.bf16 %v2388, %v2388
        %v2421 = vpack.c.bf16 %v2389, %v2389
        %v2422 = vpack.c.bf16 %v2390, %v2390
        %v2423 = vpack.c.bf16 %v2391, %v2391
        %v2424 = vpack.c.bf16 %v2392, %v2392
        %v2425 = vpack.c.bf16 %v2393, %v2393
        %v2426 = vpack.c.bf16 %v2394, %v2394
        %v2427 = vpack.c.bf16 %v2395, %v2395
        %v2428 = vpack.c.bf16 %v2396, %v2396
        %v2429 = vpack.c.bf16 %v2397, %v2397
        %v2430 = vpack.c.bf16 %v2398, %v2398
        %v2431 = vpack.c.bf16 %v2399, %v2399
        %v2432 = vpack.c.bf16 %v2400, %v2400
        %v2433 = vpack.c.bf16 %v2401, %v2401
        %v2434 = vpack.c.bf16 %v2402, %v2402
        %2435 = vst [vmem:[#allocation3 + $0xc] sm:$0xf] %v2403
        %2436 = vst [vmem:[#allocation3 + $0x2c] sm:$0xf] %v2404
        %2437 = vst [vmem:[#allocation3 + $0x4c] sm:$0xf] %v2405
        %2438 = vst [vmem:[#allocation3 + $0x6c] sm:$0xf] %v2406
        %2439 = vst [vmem:[#allocation3 + $0x8c] sm:$0xf] %v2407
        %2440 = vst [vmem:[#allocation3 + $0xac] sm:$0xf] %v2408
        %2441 = vst [vmem:[#allocation3 + $0xcc] sm:$0xf] %v2409
        %2442 = vst [vmem:[#allocation3 + $0xec] sm:$0xf] %v2410
        %2443 = vst [vmem:[#allocation3 + $0x10c] sm:$0xf] %v2411
        %2444 = vst [vmem:[#allocation3 + $0x12c] sm:$0xf] %v2412
        %2445 = vst [vmem:[#allocation3 + $0x14c] sm:$0xf] %v2413
        %2446 = vst [vmem:[#allocation3 + $0x16c] sm:$0xf] %v2414
        %2447 = vst [vmem:[#allocation3 + $0x18c] sm:$0xf] %v2415
        %2448 = vst [vmem:[#allocation3 + $0x1ac] sm:$0xf] %v2416
        %2449 = vst [vmem:[#allocation3 + $0x1cc] sm:$0xf] %v2417
        %2450 = vst [vmem:[#allocation3 + $0x1ec] sm:$0xf] %v2418
        %2451 = vst [vmem:[#allocation3 + $0x20c] sm:$0xf] %v2419
        %2452 = vst [vmem:[#allocation3 + $0x22c] sm:$0xf] %v2420
        %2453 = vst [vmem:[#allocation3 + $0x24c] sm:$0xf] %v2421
        %2454 = vst [vmem:[#allocation3 + $0x26c] sm:$0xf] %v2422
        %2455 = vst [vmem:[#allocation3 + $0x28c] sm:$0xf] %v2423
        %2456 = vst [vmem:[#allocation3 + $0x2ac] sm:$0xf] %v2424
        %2457 = vst [vmem:[#allocation3 + $0x2cc] sm:$0xf] %v2425
        %2458 = vst [vmem:[#allocation3 + $0x2ec] sm:$0xf] %v2426
        %2459 = vst [vmem:[#allocation3 + $0x30c] sm:$0xf] %v2427
        %2460 = vst [vmem:[#allocation3 + $0x32c] sm:$0xf] %v2428
        %2461 = vst [vmem:[#allocation3 + $0x34c] sm:$0xf] %v2429
        %2462 = vst [vmem:[#allocation3 + $0x36c] sm:$0xf] %v2430
        %2463 = vst [vmem:[#allocation3 + $0x38c] sm:$0xf] %v2431
        %2464 = vst [vmem:[#allocation3 + $0x3ac] sm:$0xf] %v2432
        %2465 = vst [vmem:[#allocation3 + $0x3cc] sm:$0xf] %v2433
        %2466 = vst [vmem:[#allocation3 + $0x3ec] sm:$0xf] %v2434
        %v2467 = vld [vmem:[%s279] sm:$0xff]
        %v2468 = vld [vmem:[%s279 + $0x8] sm:$0xff]
        %v2469 = vld [vmem:[%s279 + $0x10] sm:$0xff]
        %v2470 = vld [vmem:[%s279 + $0x18] sm:$0xff]
        %v2471 = vld [vmem:[%s279 + $0x20] sm:$0xff]
        %v2472 = vld [vmem:[%s279 + $0x28] sm:$0xff]
        %v2473 = vld [vmem:[%s279 + $0x30] sm:$0xff]
        %v2474 = vld [vmem:[%s279 + $0x38] sm:$0xff]
        %v2475 = vld [vmem:[%s279 + $0x40] sm:$0xff]
        %v2476 = vld [vmem:[%s279 + $0x48] sm:$0xff]
        %v2477 = vld [vmem:[%s279 + $0x50] sm:$0xff]
        %v2478 = vld [vmem:[%s279 + $0x58] sm:$0xff]
        %v2479 = vld [vmem:[%s279 + $0x60] sm:$0xff]
        %v2480 = vld [vmem:[%s279 + $0x68] sm:$0xff]
        %v2481 = vld [vmem:[%s279 + $0x70] sm:$0xff]
        %v2482 = vld [vmem:[%s279 + $0x78] sm:$0xff]
        %v2483 = vld [vmem:[%s279 + $0x80] sm:$0xff]
        %v2484 = vld [vmem:[%s279 + $0x88] sm:$0xff]
        %v2485 = vld [vmem:[%s279 + $0x90] sm:$0xff]
        %v2486 = vld [vmem:[%s279 + $0x98] sm:$0xff]
        %v2487 = vld [vmem:[%s279 + $0xa0] sm:$0xff]
        %v2488 = vld [vmem:[%s279 + $0xa8] sm:$0xff]
        %v2489 = vld [vmem:[%s279 + $0xb0] sm:$0xff]
        %v2490 = vld [vmem:[%s279 + $0xb8] sm:$0xff]
        %v2491 = vld [vmem:[%s279 + $0xc0] sm:$0xff]
        %v2492 = vld [vmem:[%s279 + $0xc8] sm:$0xff]
        %v2493 = vld [vmem:[%s279 + $0xd0] sm:$0xff]
        %v2494 = vld [vmem:[%s279 + $0xd8] sm:$0xff]
        %v2495 = vld [vmem:[%s279 + $0xe0] sm:$0xff]
        %v2496 = vld [vmem:[%s279 + $0xe8] sm:$0xff]
        %v2497 = vld [vmem:[%s279 + $0xf0] sm:$0xff]
        %v2498 = vld [vmem:[%s279 + $0xf8] sm:$0xff]
        %v2499 = vpack.c.bf16 %v2467, %v2467
        %v2500 = vpack.c.bf16 %v2468, %v2468
        %v2501 = vpack.c.bf16 %v2469, %v2469
        %v2502 = vpack.c.bf16 %v2470, %v2470
        %v2503 = vpack.c.bf16 %v2471, %v2471
        %v2504 = vpack.c.bf16 %v2472, %v2472
        %v2505 = vpack.c.bf16 %v2473, %v2473
        %v2506 = vpack.c.bf16 %v2474, %v2474
        %v2507 = vpack.c.bf16 %v2475, %v2475
        %v2508 = vpack.c.bf16 %v2476, %v2476
        %v2509 = vpack.c.bf16 %v2477, %v2477
        %v2510 = vpack.c.bf16 %v2478, %v2478
        %v2511 = vpack.c.bf16 %v2479, %v2479
        %v2512 = vpack.c.bf16 %v2480, %v2480
        %v2513 = vpack.c.bf16 %v2481, %v2481
        %v2514 = vpack.c.bf16 %v2482, %v2482
        %v2515 = vpack.c.bf16 %v2483, %v2483
        %v2516 = vpack.c.bf16 %v2484, %v2484
        %v2517 = vpack.c.bf16 %v2485, %v2485
        %v2518 = vpack.c.bf16 %v2486, %v2486
        %v2519 = vpack.c.bf16 %v2487, %v2487
        %v2520 = vpack.c.bf16 %v2488, %v2488
        %v2521 = vpack.c.bf16 %v2489, %v2489
        %v2522 = vpack.c.bf16 %v2490, %v2490
        %v2523 = vpack.c.bf16 %v2491, %v2491
        %v2524 = vpack.c.bf16 %v2492, %v2492
        %v2525 = vpack.c.bf16 %v2493, %v2493
        %v2526 = vpack.c.bf16 %v2494, %v2494
        %v2527 = vpack.c.bf16 %v2495, %v2495
        %v2528 = vpack.c.bf16 %v2496, %v2496
        %v2529 = vpack.c.bf16 %v2497, %v2497
        %v2530 = vpack.c.bf16 %v2498, %v2498
        %2532 = vset.pattern.permute.xlu0 4
        %2533 = vperm.xlu0 %2532, %v2499
        %v2534 = vpop.permute.xlu0 %2533
        %v2537 = vunpack.c.l.s4 839922192
        %v2538 = vunpack.c.0.s8 %v2537
        %v2539 = vperm.slane %v2534, %v2538
        %2541 = vset.pattern.permute.xlu0 4
        %2542 = vperm.xlu0 %2541, %v2500
        %v2543 = vpop.permute.xlu0 %2542
        %v2546 = vunpack.c.l.s4 839922192
        %v2547 = vunpack.c.0.s8 %v2546
        %v2548 = vperm.slane %v2543, %v2547
        %2550 = vset.pattern.permute.xlu0 4
        %2551 = vperm.xlu0 %2550, %v2501
        %v2552 = vpop.permute.xlu0 %2551
        %v2555 = vunpack.c.l.s4 839922192
        %v2556 = vunpack.c.0.s8 %v2555
        %v2557 = vperm.slane %v2552, %v2556
        %2559 = vset.pattern.permute.xlu0 4
        %2560 = vperm.xlu0 %2559, %v2502
        %v2561 = vpop.permute.xlu0 %2560
        %v2564 = vunpack.c.l.s4 839922192
        %v2565 = vunpack.c.0.s8 %v2564
        %v2566 = vperm.slane %v2561, %v2565
        %2568 = vset.pattern.permute.xlu0 4
        %2569 = vperm.xlu0 %2568, %v2503
        %v2570 = vpop.permute.xlu0 %2569
        %v2573 = vunpack.c.l.s4 839922192
        %v2574 = vunpack.c.0.s8 %v2573
        %v2575 = vperm.slane %v2570, %v2574
        %2577 = vset.pattern.permute.xlu0 4
        %2578 = vperm.xlu0 %2577, %v2504
        %v2579 = vpop.permute.xlu0 %2578
        %v2582 = vunpack.c.l.s4 839922192
        %v2583 = vunpack.c.0.s8 %v2582
        %v2584 = vperm.slane %v2579, %v2583
        %2586 = vset.pattern.permute.xlu0 4
        %2587 = vperm.xlu0 %2586, %v2505
        %v2588 = vpop.permute.xlu0 %2587
        %v2591 = vunpack.c.l.s4 839922192
        %v2592 = vunpack.c.0.s8 %v2591
        %v2593 = vperm.slane %v2588, %v2592
        %2595 = vset.pattern.permute.xlu0 4
        %2596 = vperm.xlu0 %2595, %v2506
        %v2597 = vpop.permute.xlu0 %2596
        %v2600 = vunpack.c.l.s4 839922192
        %v2601 = vunpack.c.0.s8 %v2600
        %v2602 = vperm.slane %v2597, %v2601
        %2604 = vset.pattern.permute.xlu0 4
        %2605 = vperm.xlu0 %2604, %v2507
        %v2606 = vpop.permute.xlu0 %2605
        %v2609 = vunpack.c.l.s4 839922192
        %v2610 = vunpack.c.0.s8 %v2609
        %v2611 = vperm.slane %v2606, %v2610
        %2613 = vset.pattern.permute.xlu0 4
        %2614 = vperm.xlu0 %2613, %v2508
        %v2615 = vpop.permute.xlu0 %2614
        %v2618 = vunpack.c.l.s4 839922192
        %v2619 = vunpack.c.0.s8 %v2618
        %v2620 = vperm.slane %v2615, %v2619
        %2622 = vset.pattern.permute.xlu0 4
        %2623 = vperm.xlu0 %2622, %v2509
        %v2624 = vpop.permute.xlu0 %2623
        %v2627 = vunpack.c.l.s4 839922192
        %v2628 = vunpack.c.0.s8 %v2627
        %v2629 = vperm.slane %v2624, %v2628
        %2631 = vset.pattern.permute.xlu0 4
        %2632 = vperm.xlu0 %2631, %v2510
        %v2633 = vpop.permute.xlu0 %2632
        %v2636 = vunpack.c.l.s4 839922192
        %v2637 = vunpack.c.0.s8 %v2636
        %v2638 = vperm.slane %v2633, %v2637
        %2640 = vset.pattern.permute.xlu0 4
        %2641 = vperm.xlu0 %2640, %v2511
        %v2642 = vpop.permute.xlu0 %2641
        %v2645 = vunpack.c.l.s4 839922192
        %v2646 = vunpack.c.0.s8 %v2645
        %v2647 = vperm.slane %v2642, %v2646
        %2649 = vset.pattern.permute.xlu0 4
        %2650 = vperm.xlu0 %2649, %v2512
        %v2651 = vpop.permute.xlu0 %2650
        %v2654 = vunpack.c.l.s4 839922192
        %v2655 = vunpack.c.0.s8 %v2654
        %v2656 = vperm.slane %v2651, %v2655
        %2658 = vset.pattern.permute.xlu0 4
        %2659 = vperm.xlu0 %2658, %v2513
        %v2660 = vpop.permute.xlu0 %2659
        %v2663 = vunpack.c.l.s4 839922192
        %v2664 = vunpack.c.0.s8 %v2663
        %v2665 = vperm.slane %v2660, %v2664
        %2667 = vset.pattern.permute.xlu0 4
        %2668 = vperm.xlu0 %2667, %v2514
        %v2669 = vpop.permute.xlu0 %2668
        %v2672 = vunpack.c.l.s4 839922192
        %v2673 = vunpack.c.0.s8 %v2672
        %v2674 = vperm.slane %v2669, %v2673
        %2676 = vset.pattern.permute.xlu0 4
        %2677 = vperm.xlu0 %2676, %v2515
        %v2678 = vpop.permute.xlu0 %2677
        %v2681 = vunpack.c.l.s4 839922192
        %v2682 = vunpack.c.0.s8 %v2681
        %v2683 = vperm.slane %v2678, %v2682
        %2685 = vset.pattern.permute.xlu0 4
        %2686 = vperm.xlu0 %2685, %v2516
        %v2687 = vpop.permute.xlu0 %2686
        %v2690 = vunpack.c.l.s4 839922192
        %v2691 = vunpack.c.0.s8 %v2690
        %v2692 = vperm.slane %v2687, %v2691
        %2694 = vset.pattern.permute.xlu0 4
        %2695 = vperm.xlu0 %2694, %v2517
        %v2696 = vpop.permute.xlu0 %2695
        %v2699 = vunpack.c.l.s4 839922192
        %v2700 = vunpack.c.0.s8 %v2699
        %v2701 = vperm.slane %v2696, %v2700
        %2703 = vset.pattern.permute.xlu0 4
        %2704 = vperm.xlu0 %2703, %v2518
        %v2705 = vpop.permute.xlu0 %2704
        %v2708 = vunpack.c.l.s4 839922192
        %v2709 = vunpack.c.0.s8 %v2708
        %v2710 = vperm.slane %v2705, %v2709
        %2712 = vset.pattern.permute.xlu0 4
        %2713 = vperm.xlu0 %2712, %v2519
        %v2714 = vpop.permute.xlu0 %2713
        %v2717 = vunpack.c.l.s4 839922192
        %v2718 = vunpack.c.0.s8 %v2717
        %v2719 = vperm.slane %v2714, %v2718
        %2721 = vset.pattern.permute.xlu0 4
        %2722 = vperm.xlu0 %2721, %v2520
        %v2723 = vpop.permute.xlu0 %2722
        %v2726 = vunpack.c.l.s4 839922192
        %v2727 = vunpack.c.0.s8 %v2726
        %v2728 = vperm.slane %v2723, %v2727
        %2730 = vset.pattern.permute.xlu0 4
        %2731 = vperm.xlu0 %2730, %v2521
        %v2732 = vpop.permute.xlu0 %2731
        %v2735 = vunpack.c.l.s4 839922192
        %v2736 = vunpack.c.0.s8 %v2735
        %v2737 = vperm.slane %v2732, %v2736
        %2739 = vset.pattern.permute.xlu0 4
        %2740 = vperm.xlu0 %2739, %v2522
        %v2741 = vpop.permute.xlu0 %2740
        %v2744 = vunpack.c.l.s4 839922192
        %v2745 = vunpack.c.0.s8 %v2744
        %v2746 = vperm.slane %v2741, %v2745
        %2748 = vset.pattern.permute.xlu0 4
        %2749 = vperm.xlu0 %2748, %v2523
        %v2750 = vpop.permute.xlu0 %2749
        %v2753 = vunpack.c.l.s4 839922192
        %v2754 = vunpack.c.0.s8 %v2753
        %v2755 = vperm.slane %v2750, %v2754
        %2757 = vset.pattern.permute.xlu0 4
        %2758 = vperm.xlu0 %2757, %v2524
        %v2759 = vpop.permute.xlu0 %2758
        %v2762 = vunpack.c.l.s4 839922192
        %v2763 = vunpack.c.0.s8 %v2762
        %v2764 = vperm.slane %v2759, %v2763
        %2766 = vset.pattern.permute.xlu0 4
        %2767 = vperm.xlu0 %2766, %v2525
        %v2768 = vpop.permute.xlu0 %2767
        %v2771 = vunpack.c.l.s4 839922192
        %v2772 = vunpack.c.0.s8 %v2771
        %v2773 = vperm.slane %v2768, %v2772
        %2775 = vset.pattern.permute.xlu0 4
        %2776 = vperm.xlu0 %2775, %v2526
        %v2777 = vpop.permute.xlu0 %2776
        %v2780 = vunpack.c.l.s4 839922192
        %v2781 = vunpack.c.0.s8 %v2780
        %v2782 = vperm.slane %v2777, %v2781
        %2784 = vset.pattern.permute.xlu0 4
        %2785 = vperm.xlu0 %2784, %v2527
        %v2786 = vpop.permute.xlu0 %2785
        %v2789 = vunpack.c.l.s4 839922192
        %v2790 = vunpack.c.0.s8 %v2789
        %v2791 = vperm.slane %v2786, %v2790
        %2793 = vset.pattern.permute.xlu0 4
        %2794 = vperm.xlu0 %2793, %v2528
        %v2795 = vpop.permute.xlu0 %2794
        %v2798 = vunpack.c.l.s4 839922192
        %v2799 = vunpack.c.0.s8 %v2798
        %v2800 = vperm.slane %v2795, %v2799
        %2802 = vset.pattern.permute.xlu0 4
        %2803 = vperm.xlu0 %2802, %v2529
        %v2804 = vpop.permute.xlu0 %2803
        %v2807 = vunpack.c.l.s4 839922192
        %v2808 = vunpack.c.0.s8 %v2807
        %v2809 = vperm.slane %v2804, %v2808
        %2811 = vset.pattern.permute.xlu0 4
        %2812 = vperm.xlu0 %2811, %v2530
        %v2813 = vpop.permute.xlu0 %2812
        %v2816 = vunpack.c.l.s4 839922192
        %v2817 = vunpack.c.0.s8 %v2816
        %v2818 = vperm.slane %v2813, %v2817
        %v2819 = vunpack.c.l.bf16 %v2539
        %v2820 = vunpack.c.l.bf16 %v2548
        %v2821 = vunpack.c.l.bf16 %v2557
        %v2822 = vunpack.c.l.bf16 %v2566
        %v2823 = vunpack.c.l.bf16 %v2575
        %v2824 = vunpack.c.l.bf16 %v2584
        %v2825 = vunpack.c.l.bf16 %v2593
        %v2826 = vunpack.c.l.bf16 %v2602
        %v2827 = vunpack.c.l.bf16 %v2611
        %v2828 = vunpack.c.l.bf16 %v2620
        %v2829 = vunpack.c.l.bf16 %v2629
        %v2830 = vunpack.c.l.bf16 %v2638
        %v2831 = vunpack.c.l.bf16 %v2647
        %v2832 = vunpack.c.l.bf16 %v2656
        %v2833 = vunpack.c.l.bf16 %v2665
        %v2834 = vunpack.c.l.bf16 %v2674
        %v2835 = vunpack.c.l.bf16 %v2683
        %v2836 = vunpack.c.l.bf16 %v2692
        %v2837 = vunpack.c.l.bf16 %v2701
        %v2838 = vunpack.c.l.bf16 %v2710
        %v2839 = vunpack.c.l.bf16 %v2719
        %v2840 = vunpack.c.l.bf16 %v2728
        %v2841 = vunpack.c.l.bf16 %v2737
        %v2842 = vunpack.c.l.bf16 %v2746
        %v2843 = vunpack.c.l.bf16 %v2755
        %v2844 = vunpack.c.l.bf16 %v2764
        %v2845 = vunpack.c.l.bf16 %v2773
        %v2846 = vunpack.c.l.bf16 %v2782
        %v2847 = vunpack.c.l.bf16 %v2791
        %v2848 = vunpack.c.l.bf16 %v2800
        %v2849 = vunpack.c.l.bf16 %v2809
        %v2850 = vunpack.c.l.bf16 %v2818
        %v2851 = vmul.f32 %v2819, %v899
        %v2852 = vmul.f32 %v2820, %v900
        %v2853 = vmul.f32 %v2821, %v901
        %v2854 = vmul.f32 %v2822, %v902
        %v2855 = vmul.f32 %v2823, %v903
        %v2856 = vmul.f32 %v2824, %v904
        %v2857 = vmul.f32 %v2825, %v905
        %v2858 = vmul.f32 %v2826, %v906
        %v2859 = vmul.f32 %v2827, %v907
        %v2860 = vmul.f32 %v2828, %v908
        %v2861 = vmul.f32 %v2829, %v909
        %v2862 = vmul.f32 %v2830, %v910
        %v2863 = vmul.f32 %v2831, %v911
        %v2864 = vmul.f32 %v2832, %v912
        %v2865 = vmul.f32 %v2833, %v913
        %v2866 = vmul.f32 %v2834, %v914
        %v2867 = vmul.f32 %v2835, %v915
        %v2868 = vmul.f32 %v2836, %v916
        %v2869 = vmul.f32 %v2837, %v917
        %v2870 = vmul.f32 %v2838, %v918
        %v2871 = vmul.f32 %v2839, %v919
        %v2872 = vmul.f32 %v2840, %v920
        %v2873 = vmul.f32 %v2841, %v921
        %v2874 = vmul.f32 %v2842, %v922
        %v2875 = vmul.f32 %v2843, %v923
        %v2876 = vmul.f32 %v2844, %v924
        %v2877 = vmul.f32 %v2845, %v925
        %v2878 = vmul.f32 %v2846, %v926
        %v2879 = vmul.f32 %v2847, %v927
        %v2880 = vmul.f32 %v2848, %v928
        %v2881 = vmul.f32 %v2849, %v929
        %v2882 = vmul.f32 %v2850, %v930
        %v2883 = vpack.c.bf16 %v2851, %v2851
        %v2884 = vpack.c.bf16 %v2852, %v2852
        %v2885 = vpack.c.bf16 %v2853, %v2853
        %v2886 = vpack.c.bf16 %v2854, %v2854
        %v2887 = vpack.c.bf16 %v2855, %v2855
        %v2888 = vpack.c.bf16 %v2856, %v2856
        %v2889 = vpack.c.bf16 %v2857, %v2857
        %v2890 = vpack.c.bf16 %v2858, %v2858
        %v2891 = vpack.c.bf16 %v2859, %v2859
        %v2892 = vpack.c.bf16 %v2860, %v2860
        %v2893 = vpack.c.bf16 %v2861, %v2861
        %v2894 = vpack.c.bf16 %v2862, %v2862
        %v2895 = vpack.c.bf16 %v2863, %v2863
        %v2896 = vpack.c.bf16 %v2864, %v2864
        %v2897 = vpack.c.bf16 %v2865, %v2865
        %v2898 = vpack.c.bf16 %v2866, %v2866
        %v2899 = vpack.c.bf16 %v2867, %v2867
        %v2900 = vpack.c.bf16 %v2868, %v2868
        %v2901 = vpack.c.bf16 %v2869, %v2869
        %v2902 = vpack.c.bf16 %v2870, %v2870
        %v2903 = vpack.c.bf16 %v2871, %v2871
        %v2904 = vpack.c.bf16 %v2872, %v2872
        %v2905 = vpack.c.bf16 %v2873, %v2873
        %v2906 = vpack.c.bf16 %v2874, %v2874
        %v2907 = vpack.c.bf16 %v2875, %v2875
        %v2908 = vpack.c.bf16 %v2876, %v2876
        %v2909 = vpack.c.bf16 %v2877, %v2877
        %v2910 = vpack.c.bf16 %v2878, %v2878
        %v2911 = vpack.c.bf16 %v2879, %v2879
        %v2912 = vpack.c.bf16 %v2880, %v2880
        %v2913 = vpack.c.bf16 %v2881, %v2881
        %v2914 = vpack.c.bf16 %v2882, %v2882
        %2915 = vst [vmem:[#allocation3 + $0x10] sm:$0xf] %v2883
        %2916 = vst [vmem:[#allocation3 + $0x30] sm:$0xf] %v2884
        %2917 = vst [vmem:[#allocation3 + $0x50] sm:$0xf] %v2885
        %2918 = vst [vmem:[#allocation3 + $0x70] sm:$0xf] %v2886
        %2919 = vst [vmem:[#allocation3 + $0x90] sm:$0xf] %v2887
        %2920 = vst [vmem:[#allocation3 + $0xb0] sm:$0xf] %v2888
        %2921 = vst [vmem:[#allocation3 + $0xd0] sm:$0xf] %v2889
        %2922 = vst [vmem:[#allocation3 + $0xf0] sm:$0xf] %v2890
        %2923 = vst [vmem:[#allocation3 + $0x110] sm:$0xf] %v2891
        %2924 = vst [vmem:[#allocation3 + $0x130] sm:$0xf] %v2892
        %2925 = vst [vmem:[#allocation3 + $0x150] sm:$0xf] %v2893
        %2926 = vst [vmem:[#allocation3 + $0x170] sm:$0xf] %v2894
        %2927 = vst [vmem:[#allocation3 + $0x190] sm:$0xf] %v2895
        %2928 = vst [vmem:[#allocation3 + $0x1b0] sm:$0xf] %v2896
        %2929 = vst [vmem:[#allocation3 + $0x1d0] sm:$0xf] %v2897
        %2930 = vst [vmem:[#allocation3 + $0x1f0] sm:$0xf] %v2898
        %2931 = vst [vmem:[#allocation3 + $0x210] sm:$0xf] %v2899
        %2932 = vst [vmem:[#allocation3 + $0x230] sm:$0xf] %v2900
        %2933 = vst [vmem:[#allocation3 + $0x250] sm:$0xf] %v2901
        %2934 = vst [vmem:[#allocation3 + $0x270] sm:$0xf] %v2902
        %2935 = vst [vmem:[#allocation3 + $0x290] sm:$0xf] %v2903
        %2936 = vst [vmem:[#allocation3 + $0x2b0] sm:$0xf] %v2904
        %2937 = vst [vmem:[#allocation3 + $0x2d0] sm:$0xf] %v2905
        %2938 = vst [vmem:[#allocation3 + $0x2f0] sm:$0xf] %v2906
        %2939 = vst [vmem:[#allocation3 + $0x310] sm:$0xf] %v2907
        %2940 = vst [vmem:[#allocation3 + $0x330] sm:$0xf] %v2908
        %2941 = vst [vmem:[#allocation3 + $0x350] sm:$0xf] %v2909
        %2942 = vst [vmem:[#allocation3 + $0x370] sm:$0xf] %v2910
        %2943 = vst [vmem:[#allocation3 + $0x390] sm:$0xf] %v2911
        %2944 = vst [vmem:[#allocation3 + $0x3b0] sm:$0xf] %v2912
        %2945 = vst [vmem:[#allocation3 + $0x3d0] sm:$0xf] %v2913
        %2946 = vst [vmem:[#allocation3 + $0x3f0] sm:$0xf] %v2914
        %v2947 = vld [vmem:[%s279] sm:$0xff]
        %v2948 = vld [vmem:[%s279 + $0x8] sm:$0xff]
        %v2949 = vld [vmem:[%s279 + $0x10] sm:$0xff]
        %v2950 = vld [vmem:[%s279 + $0x18] sm:$0xff]
        %v2951 = vld [vmem:[%s279 + $0x20] sm:$0xff]
        %v2952 = vld [vmem:[%s279 + $0x28] sm:$0xff]
        %v2953 = vld [vmem:[%s279 + $0x30] sm:$0xff]
        %v2954 = vld [vmem:[%s279 + $0x38] sm:$0xff]
        %v2955 = vld [vmem:[%s279 + $0x40] sm:$0xff]
        %v2956 = vld [vmem:[%s279 + $0x48] sm:$0xff]
        %v2957 = vld [vmem:[%s279 + $0x50] sm:$0xff]
        %v2958 = vld [vmem:[%s279 + $0x58] sm:$0xff]
        %v2959 = vld [vmem:[%s279 + $0x60] sm:$0xff]
        %v2960 = vld [vmem:[%s279 + $0x68] sm:$0xff]
        %v2961 = vld [vmem:[%s279 + $0x70] sm:$0xff]
        %v2962 = vld [vmem:[%s279 + $0x78] sm:$0xff]
        %v2963 = vld [vmem:[%s279 + $0x80] sm:$0xff]
        %v2964 = vld [vmem:[%s279 + $0x88] sm:$0xff]
        %v2965 = vld [vmem:[%s279 + $0x90] sm:$0xff]
        %v2966 = vld [vmem:[%s279 + $0x98] sm:$0xff]
        %v2967 = vld [vmem:[%s279 + $0xa0] sm:$0xff]
        %v2968 = vld [vmem:[%s279 + $0xa8] sm:$0xff]
        %v2969 = vld [vmem:[%s279 + $0xb0] sm:$0xff]
        %v2970 = vld [vmem:[%s279 + $0xb8] sm:$0xff]
        %v2971 = vld [vmem:[%s279 + $0xc0] sm:$0xff]
        %v2972 = vld [vmem:[%s279 + $0xc8] sm:$0xff]
        %v2973 = vld [vmem:[%s279 + $0xd0] sm:$0xff]
        %v2974 = vld [vmem:[%s279 + $0xd8] sm:$0xff]
        %v2975 = vld [vmem:[%s279 + $0xe0] sm:$0xff]
        %v2976 = vld [vmem:[%s279 + $0xe8] sm:$0xff]
        %v2977 = vld [vmem:[%s279 + $0xf0] sm:$0xff]
        %v2978 = vld [vmem:[%s279 + $0xf8] sm:$0xff]
        %v2979 = vpack.c.bf16 %v2947, %v2947
        %v2980 = vpack.c.bf16 %v2948, %v2948
        %v2981 = vpack.c.bf16 %v2949, %v2949
        %v2982 = vpack.c.bf16 %v2950, %v2950
        %v2983 = vpack.c.bf16 %v2951, %v2951
        %v2984 = vpack.c.bf16 %v2952, %v2952
        %v2985 = vpack.c.bf16 %v2953, %v2953
        %v2986 = vpack.c.bf16 %v2954, %v2954
        %v2987 = vpack.c.bf16 %v2955, %v2955
        %v2988 = vpack.c.bf16 %v2956, %v2956
        %v2989 = vpack.c.bf16 %v2957, %v2957
        %v2990 = vpack.c.bf16 %v2958, %v2958
        %v2991 = vpack.c.bf16 %v2959, %v2959
        %v2992 = vpack.c.bf16 %v2960, %v2960
        %v2993 = vpack.c.bf16 %v2961, %v2961
        %v2994 = vpack.c.bf16 %v2962, %v2962
        %v2995 = vpack.c.bf16 %v2963, %v2963
        %v2996 = vpack.c.bf16 %v2964, %v2964
        %v2997 = vpack.c.bf16 %v2965, %v2965
        %v2998 = vpack.c.bf16 %v2966, %v2966
        %v2999 = vpack.c.bf16 %v2967, %v2967
        %v3000 = vpack.c.bf16 %v2968, %v2968
        %v3001 = vpack.c.bf16 %v2969, %v2969
        %v3002 = vpack.c.bf16 %v2970, %v2970
        %v3003 = vpack.c.bf16 %v2971, %v2971
        %v3004 = vpack.c.bf16 %v2972, %v2972
        %v3005 = vpack.c.bf16 %v2973, %v2973
        %v3006 = vpack.c.bf16 %v2974, %v2974
        %v3007 = vpack.c.bf16 %v2975, %v2975
        %v3008 = vpack.c.bf16 %v2976, %v2976
        %v3009 = vpack.c.bf16 %v2977, %v2977
        %v3010 = vpack.c.bf16 %v2978, %v2978
        %3012 = vset.pattern.permute.xlu0 5
        %3013 = vperm.xlu0 %3012, %v2979
        %v3014 = vpop.permute.xlu0 %3013
        %v3017 = vunpack.c.l.s4 839922192
        %v3018 = vunpack.c.0.s8 %v3017
        %v3019 = vperm.slane %v3014, %v3018
        %3021 = vset.pattern.permute.xlu0 5
        %3022 = vperm.xlu0 %3021, %v2980
        %v3023 = vpop.permute.xlu0 %3022
        %v3026 = vunpack.c.l.s4 839922192
        %v3027 = vunpack.c.0.s8 %v3026
        %v3028 = vperm.slane %v3023, %v3027
        %3030 = vset.pattern.permute.xlu0 5
        %3031 = vperm.xlu0 %3030, %v2981
        %v3032 = vpop.permute.xlu0 %3031
        %v3035 = vunpack.c.l.s4 839922192
        %v3036 = vunpack.c.0.s8 %v3035
        %v3037 = vperm.slane %v3032, %v3036
        %3039 = vset.pattern.permute.xlu0 5
        %3040 = vperm.xlu0 %3039, %v2982
        %v3041 = vpop.permute.xlu0 %3040
        %v3044 = vunpack.c.l.s4 839922192
        %v3045 = vunpack.c.0.s8 %v3044
        %v3046 = vperm.slane %v3041, %v3045
        %3048 = vset.pattern.permute.xlu0 5
        %3049 = vperm.xlu0 %3048, %v2983
        %v3050 = vpop.permute.xlu0 %3049
        %v3053 = vunpack.c.l.s4 839922192
        %v3054 = vunpack.c.0.s8 %v3053
        %v3055 = vperm.slane %v3050, %v3054
        %3057 = vset.pattern.permute.xlu0 5
        %3058 = vperm.xlu0 %3057, %v2984
        %v3059 = vpop.permute.xlu0 %3058
        %v3062 = vunpack.c.l.s4 839922192
        %v3063 = vunpack.c.0.s8 %v3062
        %v3064 = vperm.slane %v3059, %v3063
        %3066 = vset.pattern.permute.xlu0 5
        %3067 = vperm.xlu0 %3066, %v2985
        %v3068 = vpop.permute.xlu0 %3067
        %v3071 = vunpack.c.l.s4 839922192
        %v3072 = vunpack.c.0.s8 %v3071
        %v3073 = vperm.slane %v3068, %v3072
        %3075 = vset.pattern.permute.xlu0 5
        %3076 = vperm.xlu0 %3075, %v2986
        %v3077 = vpop.permute.xlu0 %3076
        %v3080 = vunpack.c.l.s4 839922192
        %v3081 = vunpack.c.0.s8 %v3080
        %v3082 = vperm.slane %v3077, %v3081
        %3084 = vset.pattern.permute.xlu0 5
        %3085 = vperm.xlu0 %3084, %v2987
        %v3086 = vpop.permute.xlu0 %3085
        %v3089 = vunpack.c.l.s4 839922192
        %v3090 = vunpack.c.0.s8 %v3089
        %v3091 = vperm.slane %v3086, %v3090
        %3093 = vset.pattern.permute.xlu0 5
        %3094 = vperm.xlu0 %3093, %v2988
        %v3095 = vpop.permute.xlu0 %3094
        %v3098 = vunpack.c.l.s4 839922192
        %v3099 = vunpack.c.0.s8 %v3098
        %v3100 = vperm.slane %v3095, %v3099
        %3102 = vset.pattern.permute.xlu0 5
        %3103 = vperm.xlu0 %3102, %v2989
        %v3104 = vpop.permute.xlu0 %3103
        %v3107 = vunpack.c.l.s4 839922192
        %v3108 = vunpack.c.0.s8 %v3107
        %v3109 = vperm.slane %v3104, %v3108
        %3111 = vset.pattern.permute.xlu0 5
        %3112 = vperm.xlu0 %3111, %v2990
        %v3113 = vpop.permute.xlu0 %3112
        %v3116 = vunpack.c.l.s4 839922192
        %v3117 = vunpack.c.0.s8 %v3116
        %v3118 = vperm.slane %v3113, %v3117
        %3120 = vset.pattern.permute.xlu0 5
        %3121 = vperm.xlu0 %3120, %v2991
        %v3122 = vpop.permute.xlu0 %3121
        %v3125 = vunpack.c.l.s4 839922192
        %v3126 = vunpack.c.0.s8 %v3125
        %v3127 = vperm.slane %v3122, %v3126
        %3129 = vset.pattern.permute.xlu0 5
        %3130 = vperm.xlu0 %3129, %v2992
        %v3131 = vpop.permute.xlu0 %3130
        %v3134 = vunpack.c.l.s4 839922192
        %v3135 = vunpack.c.0.s8 %v3134
        %v3136 = vperm.slane %v3131, %v3135
        %3138 = vset.pattern.permute.xlu0 5
        %3139 = vperm.xlu0 %3138, %v2993
        %v3140 = vpop.permute.xlu0 %3139
        %v3143 = vunpack.c.l.s4 839922192
        %v3144 = vunpack.c.0.s8 %v3143
        %v3145 = vperm.slane %v3140, %v3144
        %3147 = vset.pattern.permute.xlu0 5
        %3148 = vperm.xlu0 %3147, %v2994
        %v3149 = vpop.permute.xlu0 %3148
        %v3152 = vunpack.c.l.s4 839922192
        %v3153 = vunpack.c.0.s8 %v3152
        %v3154 = vperm.slane %v3149, %v3153
        %3156 = vset.pattern.permute.xlu0 5
        %3157 = vperm.xlu0 %3156, %v2995
        %v3158 = vpop.permute.xlu0 %3157
        %v3161 = vunpack.c.l.s4 839922192
        %v3162 = vunpack.c.0.s8 %v3161
        %v3163 = vperm.slane %v3158, %v3162
        %3165 = vset.pattern.permute.xlu0 5
        %3166 = vperm.xlu0 %3165, %v2996
        %v3167 = vpop.permute.xlu0 %3166
        %v3170 = vunpack.c.l.s4 839922192
        %v3171 = vunpack.c.0.s8 %v3170
        %v3172 = vperm.slane %v3167, %v3171
        %3174 = vset.pattern.permute.xlu0 5
        %3175 = vperm.xlu0 %3174, %v2997
        %v3176 = vpop.permute.xlu0 %3175
        %v3179 = vunpack.c.l.s4 839922192
        %v3180 = vunpack.c.0.s8 %v3179
        %v3181 = vperm.slane %v3176, %v3180
        %3183 = vset.pattern.permute.xlu0 5
        %3184 = vperm.xlu0 %3183, %v2998
        %v3185 = vpop.permute.xlu0 %3184
        %v3188 = vunpack.c.l.s4 839922192
        %v3189 = vunpack.c.0.s8 %v3188
        %v3190 = vperm.slane %v3185, %v3189
        %3192 = vset.pattern.permute.xlu0 5
        %3193 = vperm.xlu0 %3192, %v2999
        %v3194 = vpop.permute.xlu0 %3193
        %v3197 = vunpack.c.l.s4 839922192
        %v3198 = vunpack.c.0.s8 %v3197
        %v3199 = vperm.slane %v3194, %v3198
        %3201 = vset.pattern.permute.xlu0 5
        %3202 = vperm.xlu0 %3201, %v3000
        %v3203 = vpop.permute.xlu0 %3202
        %v3206 = vunpack.c.l.s4 839922192
        %v3207 = vunpack.c.0.s8 %v3206
        %v3208 = vperm.slane %v3203, %v3207
        %3210 = vset.pattern.permute.xlu0 5
        %3211 = vperm.xlu0 %3210, %v3001
        %v3212 = vpop.permute.xlu0 %3211
        %v3215 = vunpack.c.l.s4 839922192
        %v3216 = vunpack.c.0.s8 %v3215
        %v3217 = vperm.slane %v3212, %v3216
        %3219 = vset.pattern.permute.xlu0 5
        %3220 = vperm.xlu0 %3219, %v3002
        %v3221 = vpop.permute.xlu0 %3220
        %v3224 = vunpack.c.l.s4 839922192
        %v3225 = vunpack.c.0.s8 %v3224
        %v3226 = vperm.slane %v3221, %v3225
        %3228 = vset.pattern.permute.xlu0 5
        %3229 = vperm.xlu0 %3228, %v3003
        %v3230 = vpop.permute.xlu0 %3229
        %v3233 = vunpack.c.l.s4 839922192
        %v3234 = vunpack.c.0.s8 %v3233
        %v3235 = vperm.slane %v3230, %v3234
        %3237 = vset.pattern.permute.xlu0 5
        %3238 = vperm.xlu0 %3237, %v3004
        %v3239 = vpop.permute.xlu0 %3238
        %v3242 = vunpack.c.l.s4 839922192
        %v3243 = vunpack.c.0.s8 %v3242
        %v3244 = vperm.slane %v3239, %v3243
        %3246 = vset.pattern.permute.xlu0 5
        %3247 = vperm.xlu0 %3246, %v3005
        %v3248 = vpop.permute.xlu0 %3247
        %v3251 = vunpack.c.l.s4 839922192
        %v3252 = vunpack.c.0.s8 %v3251
        %v3253 = vperm.slane %v3248, %v3252
        %3255 = vset.pattern.permute.xlu0 5
        %3256 = vperm.xlu0 %3255, %v3006
        %v3257 = vpop.permute.xlu0 %3256
        %v3260 = vunpack.c.l.s4 839922192
        %v3261 = vunpack.c.0.s8 %v3260
        %v3262 = vperm.slane %v3257, %v3261
        %3264 = vset.pattern.permute.xlu0 5
        %3265 = vperm.xlu0 %3264, %v3007
        %v3266 = vpop.permute.xlu0 %3265
        %v3269 = vunpack.c.l.s4 839922192
        %v3270 = vunpack.c.0.s8 %v3269
        %v3271 = vperm.slane %v3266, %v3270
        %3273 = vset.pattern.permute.xlu0 5
        %3274 = vperm.xlu0 %3273, %v3008
        %v3275 = vpop.permute.xlu0 %3274
        %v3278 = vunpack.c.l.s4 839922192
        %v3279 = vunpack.c.0.s8 %v3278
        %v3280 = vperm.slane %v3275, %v3279
        %3282 = vset.pattern.permute.xlu0 5
        %3283 = vperm.xlu0 %3282, %v3009
        %v3284 = vpop.permute.xlu0 %3283
        %v3287 = vunpack.c.l.s4 839922192
        %v3288 = vunpack.c.0.s8 %v3287
        %v3289 = vperm.slane %v3284, %v3288
        %3291 = vset.pattern.permute.xlu0 5
        %3292 = vperm.xlu0 %3291, %v3010
        %v3293 = vpop.permute.xlu0 %3292
        %v3296 = vunpack.c.l.s4 839922192
        %v3297 = vunpack.c.0.s8 %v3296
        %v3298 = vperm.slane %v3293, %v3297
        %v3299 = vunpack.c.l.bf16 %v3019
        %v3300 = vunpack.c.l.bf16 %v3028
        %v3301 = vunpack.c.l.bf16 %v3037
        %v3302 = vunpack.c.l.bf16 %v3046
        %v3303 = vunpack.c.l.bf16 %v3055
        %v3304 = vunpack.c.l.bf16 %v3064
        %v3305 = vunpack.c.l.bf16 %v3073
        %v3306 = vunpack.c.l.bf16 %v3082
        %v3307 = vunpack.c.l.bf16 %v3091
        %v3308 = vunpack.c.l.bf16 %v3100
        %v3309 = vunpack.c.l.bf16 %v3109
        %v3310 = vunpack.c.l.bf16 %v3118
        %v3311 = vunpack.c.l.bf16 %v3127
        %v3312 = vunpack.c.l.bf16 %v3136
        %v3313 = vunpack.c.l.bf16 %v3145
        %v3314 = vunpack.c.l.bf16 %v3154
        %v3315 = vunpack.c.l.bf16 %v3163
        %v3316 = vunpack.c.l.bf16 %v3172
        %v3317 = vunpack.c.l.bf16 %v3181
        %v3318 = vunpack.c.l.bf16 %v3190
        %v3319 = vunpack.c.l.bf16 %v3199
        %v3320 = vunpack.c.l.bf16 %v3208
        %v3321 = vunpack.c.l.bf16 %v3217
        %v3322 = vunpack.c.l.bf16 %v3226
        %v3323 = vunpack.c.l.bf16 %v3235
        %v3324 = vunpack.c.l.bf16 %v3244
        %v3325 = vunpack.c.l.bf16 %v3253
        %v3326 = vunpack.c.l.bf16 %v3262
        %v3327 = vunpack.c.l.bf16 %v3271
        %v3328 = vunpack.c.l.bf16 %v3280
        %v3329 = vunpack.c.l.bf16 %v3289
        %v3330 = vunpack.c.l.bf16 %v3298
        %v3331 = vmul.f32 %v3299, %v899
        %v3332 = vmul.f32 %v3300, %v900
        %v3333 = vmul.f32 %v3301, %v901
        %v3334 = vmul.f32 %v3302, %v902
        %v3335 = vmul.f32 %v3303, %v903
        %v3336 = vmul.f32 %v3304, %v904
        %v3337 = vmul.f32 %v3305, %v905
        %v3338 = vmul.f32 %v3306, %v906
        %v3339 = vmul.f32 %v3307, %v907
        %v3340 = vmul.f32 %v3308, %v908
        %v3341 = vmul.f32 %v3309, %v909
        %v3342 = vmul.f32 %v3310, %v910
        %v3343 = vmul.f32 %v3311, %v911
        %v3344 = vmul.f32 %v3312, %v912
        %v3345 = vmul.f32 %v3313, %v913
        %v3346 = vmul.f32 %v3314, %v914
        %v3347 = vmul.f32 %v3315, %v915
        %v3348 = vmul.f32 %v3316, %v916
        %v3349 = vmul.f32 %v3317, %v917
        %v3350 = vmul.f32 %v3318, %v918
        %v3351 = vmul.f32 %v3319, %v919
        %v3352 = vmul.f32 %v3320, %v920
        %v3353 = vmul.f32 %v3321, %v921
        %v3354 = vmul.f32 %v3322, %v922
        %v3355 = vmul.f32 %v3323, %v923
        %v3356 = vmul.f32 %v3324, %v924
        %v3357 = vmul.f32 %v3325, %v925
        %v3358 = vmul.f32 %v3326, %v926
        %v3359 = vmul.f32 %v3327, %v927
        %v3360 = vmul.f32 %v3328, %v928
        %v3361 = vmul.f32 %v3329, %v929
        %v3362 = vmul.f32 %v3330, %v930
        %v3363 = vpack.c.bf16 %v3331, %v3331
        %v3364 = vpack.c.bf16 %v3332, %v3332
        %v3365 = vpack.c.bf16 %v3333, %v3333
        %v3366 = vpack.c.bf16 %v3334, %v3334
        %v3367 = vpack.c.bf16 %v3335, %v3335
        %v3368 = vpack.c.bf16 %v3336, %v3336
        %v3369 = vpack.c.bf16 %v3337, %v3337
        %v3370 = vpack.c.bf16 %v3338, %v3338
        %v3371 = vpack.c.bf16 %v3339, %v3339
        %v3372 = vpack.c.bf16 %v3340, %v3340
        %v3373 = vpack.c.bf16 %v3341, %v3341
        %v3374 = vpack.c.bf16 %v3342, %v3342
        %v3375 = vpack.c.bf16 %v3343, %v3343
        %v3376 = vpack.c.bf16 %v3344, %v3344
        %v3377 = vpack.c.bf16 %v3345, %v3345
        %v3378 = vpack.c.bf16 %v3346, %v3346
        %v3379 = vpack.c.bf16 %v3347, %v3347
        %v3380 = vpack.c.bf16 %v3348, %v3348
        %v3381 = vpack.c.bf16 %v3349, %v3349
        %v3382 = vpack.c.bf16 %v3350, %v3350
        %v3383 = vpack.c.bf16 %v3351, %v3351
        %v3384 = vpack.c.bf16 %v3352, %v3352
        %v3385 = vpack.c.bf16 %v3353, %v3353
        %v3386 = vpack.c.bf16 %v3354, %v3354
        %v3387 = vpack.c.bf16 %v3355, %v3355
        %v3388 = vpack.c.bf16 %v3356, %v3356
        %v3389 = vpack.c.bf16 %v3357, %v3357
        %v3390 = vpack.c.bf16 %v3358, %v3358
        %v3391 = vpack.c.bf16 %v3359, %v3359
        %v3392 = vpack.c.bf16 %v3360, %v3360
        %v3393 = vpack.c.bf16 %v3361, %v3361
        %v3394 = vpack.c.bf16 %v3362, %v3362
        %3395 = vst [vmem:[#allocation3 + $0x14] sm:$0xf] %v3363
        %3396 = vst [vmem:[#allocation3 + $0x34] sm:$0xf] %v3364
        %3397 = vst [vmem:[#allocation3 + $0x54] sm:$0xf] %v3365
        %3398 = vst [vmem:[#allocation3 + $0x74] sm:$0xf] %v3366
        %3399 = vst [vmem:[#allocation3 + $0x94] sm:$0xf] %v3367
        %3400 = vst [vmem:[#allocation3 + $0xb4] sm:$0xf] %v3368
        %3401 = vst [vmem:[#allocation3 + $0xd4] sm:$0xf] %v3369
        %3402 = vst [vmem:[#allocation3 + $0xf4] sm:$0xf] %v3370
        %3403 = vst [vmem:[#allocation3 + $0x114] sm:$0xf] %v3371
        %3404 = vst [vmem:[#allocation3 + $0x134] sm:$0xf] %v3372
        %3405 = vst [vmem:[#allocation3 + $0x154] sm:$0xf] %v3373
        %3406 = vst [vmem:[#allocation3 + $0x174] sm:$0xf] %v3374
        %3407 = vst [vmem:[#allocation3 + $0x194] sm:$0xf] %v3375
        %3408 = vst [vmem:[#allocation3 + $0x1b4] sm:$0xf] %v3376
        %3409 = vst [vmem:[#allocation3 + $0x1d4] sm:$0xf] %v3377
        %3410 = vst [vmem:[#allocation3 + $0x1f4] sm:$0xf] %v3378
        %3411 = vst [vmem:[#allocation3 + $0x214] sm:$0xf] %v3379
        %3412 = vst [vmem:[#allocation3 + $0x234] sm:$0xf] %v3380
        %3413 = vst [vmem:[#allocation3 + $0x254] sm:$0xf] %v3381
        %3414 = vst [vmem:[#allocation3 + $0x274] sm:$0xf] %v3382
        %3415 = vst [vmem:[#allocation3 + $0x294] sm:$0xf] %v3383
        %3416 = vst [vmem:[#allocation3 + $0x2b4] sm:$0xf] %v3384
        %3417 = vst [vmem:[#allocation3 + $0x2d4] sm:$0xf] %v3385
        %3418 = vst [vmem:[#allocation3 + $0x2f4] sm:$0xf] %v3386
        %3419 = vst [vmem:[#allocation3 + $0x314] sm:$0xf] %v3387
        %3420 = vst [vmem:[#allocation3 + $0x334] sm:$0xf] %v3388
        %3421 = vst [vmem:[#allocation3 + $0x354] sm:$0xf] %v3389
        %3422 = vst [vmem:[#allocation3 + $0x374] sm:$0xf] %v3390
        %3423 = vst [vmem:[#allocation3 + $0x394] sm:$0xf] %v3391
        %3424 = vst [vmem:[#allocation3 + $0x3b4] sm:$0xf] %v3392
        %3425 = vst [vmem:[#allocation3 + $0x3d4] sm:$0xf] %v3393
        %3426 = vst [vmem:[#allocation3 + $0x3f4] sm:$0xf] %v3394
        %v3427 = vld [vmem:[%s279] sm:$0xff]
        %v3428 = vld [vmem:[%s279 + $0x8] sm:$0xff]
        %v3429 = vld [vmem:[%s279 + $0x10] sm:$0xff]
        %v3430 = vld [vmem:[%s279 + $0x18] sm:$0xff]
        %v3431 = vld [vmem:[%s279 + $0x20] sm:$0xff]
        %v3432 = vld [vmem:[%s279 + $0x28] sm:$0xff]
        %v3433 = vld [vmem:[%s279 + $0x30] sm:$0xff]
        %v3434 = vld [vmem:[%s279 + $0x38] sm:$0xff]
        %v3435 = vld [vmem:[%s279 + $0x40] sm:$0xff]
        %v3436 = vld [vmem:[%s279 + $0x48] sm:$0xff]
        %v3437 = vld [vmem:[%s279 + $0x50] sm:$0xff]
        %v3438 = vld [vmem:[%s279 + $0x58] sm:$0xff]
        %v3439 = vld [vmem:[%s279 + $0x60] sm:$0xff]
        %v3440 = vld [vmem:[%s279 + $0x68] sm:$0xff]
        %v3441 = vld [vmem:[%s279 + $0x70] sm:$0xff]
        %v3442 = vld [vmem:[%s279 + $0x78] sm:$0xff]
        %v3443 = vld [vmem:[%s279 + $0x80] sm:$0xff]
        %v3444 = vld [vmem:[%s279 + $0x88] sm:$0xff]
        %v3445 = vld [vmem:[%s279 + $0x90] sm:$0xff]
        %v3446 = vld [vmem:[%s279 + $0x98] sm:$0xff]
        %v3447 = vld [vmem:[%s279 + $0xa0] sm:$0xff]
        %v3448 = vld [vmem:[%s279 + $0xa8] sm:$0xff]
        %v3449 = vld [vmem:[%s279 + $0xb0] sm:$0xff]
        %v3450 = vld [vmem:[%s279 + $0xb8] sm:$0xff]
        %v3451 = vld [vmem:[%s279 + $0xc0] sm:$0xff]
        %v3452 = vld [vmem:[%s279 + $0xc8] sm:$0xff]
        %v3453 = vld [vmem:[%s279 + $0xd0] sm:$0xff]
        %v3454 = vld [vmem:[%s279 + $0xd8] sm:$0xff]
        %v3455 = vld [vmem:[%s279 + $0xe0] sm:$0xff]
        %v3456 = vld [vmem:[%s279 + $0xe8] sm:$0xff]
        %v3457 = vld [vmem:[%s279 + $0xf0] sm:$0xff]
        %v3458 = vld [vmem:[%s279 + $0xf8] sm:$0xff]
        %v3459 = vpack.c.bf16 %v3427, %v3427
        %v3460 = vpack.c.bf16 %v3428, %v3428
        %v3461 = vpack.c.bf16 %v3429, %v3429
        %v3462 = vpack.c.bf16 %v3430, %v3430
        %v3463 = vpack.c.bf16 %v3431, %v3431
        %v3464 = vpack.c.bf16 %v3432, %v3432
        %v3465 = vpack.c.bf16 %v3433, %v3433
        %v3466 = vpack.c.bf16 %v3434, %v3434
        %v3467 = vpack.c.bf16 %v3435, %v3435
        %v3468 = vpack.c.bf16 %v3436, %v3436
        %v3469 = vpack.c.bf16 %v3437, %v3437
        %v3470 = vpack.c.bf16 %v3438, %v3438
        %v3471 = vpack.c.bf16 %v3439, %v3439
        %v3472 = vpack.c.bf16 %v3440, %v3440
        %v3473 = vpack.c.bf16 %v3441, %v3441
        %v3474 = vpack.c.bf16 %v3442, %v3442
        %v3475 = vpack.c.bf16 %v3443, %v3443
        %v3476 = vpack.c.bf16 %v3444, %v3444
        %v3477 = vpack.c.bf16 %v3445, %v3445
        %v3478 = vpack.c.bf16 %v3446, %v3446
        %v3479 = vpack.c.bf16 %v3447, %v3447
        %v3480 = vpack.c.bf16 %v3448, %v3448
        %v3481 = vpack.c.bf16 %v3449, %v3449
        %v3482 = vpack.c.bf16 %v3450, %v3450
        %v3483 = vpack.c.bf16 %v3451, %v3451
        %v3484 = vpack.c.bf16 %v3452, %v3452
        %v3485 = vpack.c.bf16 %v3453, %v3453
        %v3486 = vpack.c.bf16 %v3454, %v3454
        %v3487 = vpack.c.bf16 %v3455, %v3455
        %v3488 = vpack.c.bf16 %v3456, %v3456
        %v3489 = vpack.c.bf16 %v3457, %v3457
        %v3490 = vpack.c.bf16 %v3458, %v3458
        %3492 = vset.pattern.permute.xlu0 6
        %3493 = vperm.xlu0 %3492, %v3459
        %v3494 = vpop.permute.xlu0 %3493
        %v3497 = vunpack.c.l.s4 839922192
        %v3498 = vunpack.c.0.s8 %v3497
        %v3499 = vperm.slane %v3494, %v3498
        %3501 = vset.pattern.permute.xlu0 6
        %3502 = vperm.xlu0 %3501, %v3460
        %v3503 = vpop.permute.xlu0 %3502
        %v3506 = vunpack.c.l.s4 839922192
        %v3507 = vunpack.c.0.s8 %v3506
        %v3508 = vperm.slane %v3503, %v3507
        %3510 = vset.pattern.permute.xlu0 6
        %3511 = vperm.xlu0 %3510, %v3461
        %v3512 = vpop.permute.xlu0 %3511
        %v3515 = vunpack.c.l.s4 839922192
        %v3516 = vunpack.c.0.s8 %v3515
        %v3517 = vperm.slane %v3512, %v3516
        %3519 = vset.pattern.permute.xlu0 6
        %3520 = vperm.xlu0 %3519, %v3462
        %v3521 = vpop.permute.xlu0 %3520
        %v3524 = vunpack.c.l.s4 839922192
        %v3525 = vunpack.c.0.s8 %v3524
        %v3526 = vperm.slane %v3521, %v3525
        %3528 = vset.pattern.permute.xlu0 6
        %3529 = vperm.xlu0 %3528, %v3463
        %v3530 = vpop.permute.xlu0 %3529
        %v3533 = vunpack.c.l.s4 839922192
        %v3534 = vunpack.c.0.s8 %v3533
        %v3535 = vperm.slane %v3530, %v3534
        %3537 = vset.pattern.permute.xlu0 6
        %3538 = vperm.xlu0 %3537, %v3464
        %v3539 = vpop.permute.xlu0 %3538
        %v3542 = vunpack.c.l.s4 839922192
        %v3543 = vunpack.c.0.s8 %v3542
        %v3544 = vperm.slane %v3539, %v3543
        %3546 = vset.pattern.permute.xlu0 6
        %3547 = vperm.xlu0 %3546, %v3465
        %v3548 = vpop.permute.xlu0 %3547
        %v3551 = vunpack.c.l.s4 839922192
        %v3552 = vunpack.c.0.s8 %v3551
        %v3553 = vperm.slane %v3548, %v3552
        %3555 = vset.pattern.permute.xlu0 6
        %3556 = vperm.xlu0 %3555, %v3466
        %v3557 = vpop.permute.xlu0 %3556
        %v3560 = vunpack.c.l.s4 839922192
        %v3561 = vunpack.c.0.s8 %v3560
        %v3562 = vperm.slane %v3557, %v3561
        %3564 = vset.pattern.permute.xlu0 6
        %3565 = vperm.xlu0 %3564, %v3467
        %v3566 = vpop.permute.xlu0 %3565
        %v3569 = vunpack.c.l.s4 839922192
        %v3570 = vunpack.c.0.s8 %v3569
        %v3571 = vperm.slane %v3566, %v3570
        %3573 = vset.pattern.permute.xlu0 6
        %3574 = vperm.xlu0 %3573, %v3468
        %v3575 = vpop.permute.xlu0 %3574
        %v3578 = vunpack.c.l.s4 839922192
        %v3579 = vunpack.c.0.s8 %v3578
        %v3580 = vperm.slane %v3575, %v3579
        %3582 = vset.pattern.permute.xlu0 6
        %3583 = vperm.xlu0 %3582, %v3469
        %v3584 = vpop.permute.xlu0 %3583
        %v3587 = vunpack.c.l.s4 839922192
        %v3588 = vunpack.c.0.s8 %v3587
        %v3589 = vperm.slane %v3584, %v3588
        %3591 = vset.pattern.permute.xlu0 6
        %3592 = vperm.xlu0 %3591, %v3470
        %v3593 = vpop.permute.xlu0 %3592
        %v3596 = vunpack.c.l.s4 839922192
        %v3597 = vunpack.c.0.s8 %v3596
        %v3598 = vperm.slane %v3593, %v3597
        %3600 = vset.pattern.permute.xlu0 6
        %3601 = vperm.xlu0 %3600, %v3471
        %v3602 = vpop.permute.xlu0 %3601
        %v3605 = vunpack.c.l.s4 839922192
        %v3606 = vunpack.c.0.s8 %v3605
        %v3607 = vperm.slane %v3602, %v3606
        %3609 = vset.pattern.permute.xlu0 6
        %3610 = vperm.xlu0 %3609, %v3472
        %v3611 = vpop.permute.xlu0 %3610
        %v3614 = vunpack.c.l.s4 839922192
        %v3615 = vunpack.c.0.s8 %v3614
        %v3616 = vperm.slane %v3611, %v3615
        %3618 = vset.pattern.permute.xlu0 6
        %3619 = vperm.xlu0 %3618, %v3473
        %v3620 = vpop.permute.xlu0 %3619
        %v3623 = vunpack.c.l.s4 839922192
        %v3624 = vunpack.c.0.s8 %v3623
        %v3625 = vperm.slane %v3620, %v3624
        %3627 = vset.pattern.permute.xlu0 6
        %3628 = vperm.xlu0 %3627, %v3474
        %v3629 = vpop.permute.xlu0 %3628
        %v3632 = vunpack.c.l.s4 839922192
        %v3633 = vunpack.c.0.s8 %v3632
        %v3634 = vperm.slane %v3629, %v3633
        %3636 = vset.pattern.permute.xlu0 6
        %3637 = vperm.xlu0 %3636, %v3475
        %v3638 = vpop.permute.xlu0 %3637
        %v3641 = vunpack.c.l.s4 839922192
        %v3642 = vunpack.c.0.s8 %v3641
        %v3643 = vperm.slane %v3638, %v3642
        %3645 = vset.pattern.permute.xlu0 6
        %3646 = vperm.xlu0 %3645, %v3476
        %v3647 = vpop.permute.xlu0 %3646
        %v3650 = vunpack.c.l.s4 839922192
        %v3651 = vunpack.c.0.s8 %v3650
        %v3652 = vperm.slane %v3647, %v3651
        %3654 = vset.pattern.permute.xlu0 6
        %3655 = vperm.xlu0 %3654, %v3477
        %v3656 = vpop.permute.xlu0 %3655
        %v3659 = vunpack.c.l.s4 839922192
        %v3660 = vunpack.c.0.s8 %v3659
        %v3661 = vperm.slane %v3656, %v3660
        %3663 = vset.pattern.permute.xlu0 6
        %3664 = vperm.xlu0 %3663, %v3478
        %v3665 = vpop.permute.xlu0 %3664
        %v3668 = vunpack.c.l.s4 839922192
        %v3669 = vunpack.c.0.s8 %v3668
        %v3670 = vperm.slane %v3665, %v3669
        %3672 = vset.pattern.permute.xlu0 6
        %3673 = vperm.xlu0 %3672, %v3479
        %v3674 = vpop.permute.xlu0 %3673
        %v3677 = vunpack.c.l.s4 839922192
        %v3678 = vunpack.c.0.s8 %v3677
        %v3679 = vperm.slane %v3674, %v3678
        %3681 = vset.pattern.permute.xlu0 6
        %3682 = vperm.xlu0 %3681, %v3480
        %v3683 = vpop.permute.xlu0 %3682
        %v3686 = vunpack.c.l.s4 839922192
        %v3687 = vunpack.c.0.s8 %v3686
        %v3688 = vperm.slane %v3683, %v3687
        %3690 = vset.pattern.permute.xlu0 6
        %3691 = vperm.xlu0 %3690, %v3481
        %v3692 = vpop.permute.xlu0 %3691
        %v3695 = vunpack.c.l.s4 839922192
        %v3696 = vunpack.c.0.s8 %v3695
        %v3697 = vperm.slane %v3692, %v3696
        %3699 = vset.pattern.permute.xlu0 6
        %3700 = vperm.xlu0 %3699, %v3482
        %v3701 = vpop.permute.xlu0 %3700
        %v3704 = vunpack.c.l.s4 839922192
        %v3705 = vunpack.c.0.s8 %v3704
        %v3706 = vperm.slane %v3701, %v3705
        %3708 = vset.pattern.permute.xlu0 6
        %3709 = vperm.xlu0 %3708, %v3483
        %v3710 = vpop.permute.xlu0 %3709
        %v3713 = vunpack.c.l.s4 839922192
        %v3714 = vunpack.c.0.s8 %v3713
        %v3715 = vperm.slane %v3710, %v3714
        %3717 = vset.pattern.permute.xlu0 6
        %3718 = vperm.xlu0 %3717, %v3484
        %v3719 = vpop.permute.xlu0 %3718
        %v3722 = vunpack.c.l.s4 839922192
        %v3723 = vunpack.c.0.s8 %v3722
        %v3724 = vperm.slane %v3719, %v3723
        %3726 = vset.pattern.permute.xlu0 6
        %3727 = vperm.xlu0 %3726, %v3485
        %v3728 = vpop.permute.xlu0 %3727
        %v3731 = vunpack.c.l.s4 839922192
        %v3732 = vunpack.c.0.s8 %v3731
        %v3733 = vperm.slane %v3728, %v3732
        %3735 = vset.pattern.permute.xlu0 6
        %3736 = vperm.xlu0 %3735, %v3486
        %v3737 = vpop.permute.xlu0 %3736
        %v3740 = vunpack.c.l.s4 839922192
        %v3741 = vunpack.c.0.s8 %v3740
        %v3742 = vperm.slane %v3737, %v3741
        %3744 = vset.pattern.permute.xlu0 6
        %3745 = vperm.xlu0 %3744, %v3487
        %v3746 = vpop.permute.xlu0 %3745
        %v3749 = vunpack.c.l.s4 839922192
        %v3750 = vunpack.c.0.s8 %v3749
        %v3751 = vperm.slane %v3746, %v3750
        %3753 = vset.pattern.permute.xlu0 6
        %3754 = vperm.xlu0 %3753, %v3488
        %v3755 = vpop.permute.xlu0 %3754
        %v3758 = vunpack.c.l.s4 839922192
        %v3759 = vunpack.c.0.s8 %v3758
        %v3760 = vperm.slane %v3755, %v3759
        %3762 = vset.pattern.permute.xlu0 6
        %3763 = vperm.xlu0 %3762, %v3489
        %v3764 = vpop.permute.xlu0 %3763
        %v3767 = vunpack.c.l.s4 839922192
        %v3768 = vunpack.c.0.s8 %v3767
        %v3769 = vperm.slane %v3764, %v3768
        %3771 = vset.pattern.permute.xlu0 6
        %3772 = vperm.xlu0 %3771, %v3490
        %v3773 = vpop.permute.xlu0 %3772
        %v3776 = vunpack.c.l.s4 839922192
        %v3777 = vunpack.c.0.s8 %v3776
        %v3778 = vperm.slane %v3773, %v3777
        %v3779 = vunpack.c.l.bf16 %v3499
        %v3780 = vunpack.c.l.bf16 %v3508
        %v3781 = vunpack.c.l.bf16 %v3517
        %v3782 = vunpack.c.l.bf16 %v3526
        %v3783 = vunpack.c.l.bf16 %v3535
        %v3784 = vunpack.c.l.bf16 %v3544
        %v3785 = vunpack.c.l.bf16 %v3553
        %v3786 = vunpack.c.l.bf16 %v3562
        %v3787 = vunpack.c.l.bf16 %v3571
        %v3788 = vunpack.c.l.bf16 %v3580
        %v3789 = vunpack.c.l.bf16 %v3589
        %v3790 = vunpack.c.l.bf16 %v3598
        %v3791 = vunpack.c.l.bf16 %v3607
        %v3792 = vunpack.c.l.bf16 %v3616
        %v3793 = vunpack.c.l.bf16 %v3625
        %v3794 = vunpack.c.l.bf16 %v3634
        %v3795 = vunpack.c.l.bf16 %v3643
        %v3796 = vunpack.c.l.bf16 %v3652
        %v3797 = vunpack.c.l.bf16 %v3661
        %v3798 = vunpack.c.l.bf16 %v3670
        %v3799 = vunpack.c.l.bf16 %v3679
        %v3800 = vunpack.c.l.bf16 %v3688
        %v3801 = vunpack.c.l.bf16 %v3697
        %v3802 = vunpack.c.l.bf16 %v3706
        %v3803 = vunpack.c.l.bf16 %v3715
        %v3804 = vunpack.c.l.bf16 %v3724
        %v3805 = vunpack.c.l.bf16 %v3733
        %v3806 = vunpack.c.l.bf16 %v3742
        %v3807 = vunpack.c.l.bf16 %v3751
        %v3808 = vunpack.c.l.bf16 %v3760
        %v3809 = vunpack.c.l.bf16 %v3769
        %v3810 = vunpack.c.l.bf16 %v3778
        %v3811 = vmul.f32 %v3779, %v899
        %v3812 = vmul.f32 %v3780, %v900
        %v3813 = vmul.f32 %v3781, %v901
        %v3814 = vmul.f32 %v3782, %v902
        %v3815 = vmul.f32 %v3783, %v903
        %v3816 = vmul.f32 %v3784, %v904
        %v3817 = vmul.f32 %v3785, %v905
        %v3818 = vmul.f32 %v3786, %v906
        %v3819 = vmul.f32 %v3787, %v907
        %v3820 = vmul.f32 %v3788, %v908
        %v3821 = vmul.f32 %v3789, %v909
        %v3822 = vmul.f32 %v3790, %v910
        %v3823 = vmul.f32 %v3791, %v911
        %v3824 = vmul.f32 %v3792, %v912
        %v3825 = vmul.f32 %v3793, %v913
        %v3826 = vmul.f32 %v3794, %v914
        %v3827 = vmul.f32 %v3795, %v915
        %v3828 = vmul.f32 %v3796, %v916
        %v3829 = vmul.f32 %v3797, %v917
        %v3830 = vmul.f32 %v3798, %v918
        %v3831 = vmul.f32 %v3799, %v919
        %v3832 = vmul.f32 %v3800, %v920
        %v3833 = vmul.f32 %v3801, %v921
        %v3834 = vmul.f32 %v3802, %v922
        %v3835 = vmul.f32 %v3803, %v923
        %v3836 = vmul.f32 %v3804, %v924
        %v3837 = vmul.f32 %v3805, %v925
        %v3838 = vmul.f32 %v3806, %v926
        %v3839 = vmul.f32 %v3807, %v927
        %v3840 = vmul.f32 %v3808, %v928
        %v3841 = vmul.f32 %v3809, %v929
        %v3842 = vmul.f32 %v3810, %v930
        %v3843 = vpack.c.bf16 %v3811, %v3811
        %v3844 = vpack.c.bf16 %v3812, %v3812
        %v3845 = vpack.c.bf16 %v3813, %v3813
        %v3846 = vpack.c.bf16 %v3814, %v3814
        %v3847 = vpack.c.bf16 %v3815, %v3815
        %v3848 = vpack.c.bf16 %v3816, %v3816
        %v3849 = vpack.c.bf16 %v3817, %v3817
        %v3850 = vpack.c.bf16 %v3818, %v3818
        %v3851 = vpack.c.bf16 %v3819, %v3819
        %v3852 = vpack.c.bf16 %v3820, %v3820
        %v3853 = vpack.c.bf16 %v3821, %v3821
        %v3854 = vpack.c.bf16 %v3822, %v3822
        %v3855 = vpack.c.bf16 %v3823, %v3823
        %v3856 = vpack.c.bf16 %v3824, %v3824
        %v3857 = vpack.c.bf16 %v3825, %v3825
        %v3858 = vpack.c.bf16 %v3826, %v3826
        %v3859 = vpack.c.bf16 %v3827, %v3827
        %v3860 = vpack.c.bf16 %v3828, %v3828
        %v3861 = vpack.c.bf16 %v3829, %v3829
        %v3862 = vpack.c.bf16 %v3830, %v3830
        %v3863 = vpack.c.bf16 %v3831, %v3831
        %v3864 = vpack.c.bf16 %v3832, %v3832
        %v3865 = vpack.c.bf16 %v3833, %v3833
        %v3866 = vpack.c.bf16 %v3834, %v3834
        %v3867 = vpack.c.bf16 %v3835, %v3835
        %v3868 = vpack.c.bf16 %v3836, %v3836
        %v3869 = vpack.c.bf16 %v3837, %v3837
        %v3870 = vpack.c.bf16 %v3838, %v3838
        %v3871 = vpack.c.bf16 %v3839, %v3839
        %v3872 = vpack.c.bf16 %v3840, %v3840
        %v3873 = vpack.c.bf16 %v3841, %v3841
        %v3874 = vpack.c.bf16 %v3842, %v3842
        %3875 = vst [vmem:[#allocation3 + $0x18] sm:$0xf] %v3843
        %3876 = vst [vmem:[#allocation3 + $0x38] sm:$0xf] %v3844
        %3877 = vst [vmem:[#allocation3 + $0x58] sm:$0xf] %v3845
        %3878 = vst [vmem:[#allocation3 + $0x78] sm:$0xf] %v3846
        %3879 = vst [vmem:[#allocation3 + $0x98] sm:$0xf] %v3847
        %3880 = vst [vmem:[#allocation3 + $0xb8] sm:$0xf] %v3848
        %3881 = vst [vmem:[#allocation3 + $0xd8] sm:$0xf] %v3849
        %3882 = vst [vmem:[#allocation3 + $0xf8] sm:$0xf] %v3850
        %3883 = vst [vmem:[#allocation3 + $0x118] sm:$0xf] %v3851
        %3884 = vst [vmem:[#allocation3 + $0x138] sm:$0xf] %v3852
        %3885 = vst [vmem:[#allocation3 + $0x158] sm:$0xf] %v3853
        %3886 = vst [vmem:[#allocation3 + $0x178] sm:$0xf] %v3854
        %3887 = vst [vmem:[#allocation3 + $0x198] sm:$0xf] %v3855
        %3888 = vst [vmem:[#allocation3 + $0x1b8] sm:$0xf] %v3856
        %3889 = vst [vmem:[#allocation3 + $0x1d8] sm:$0xf] %v3857
        %3890 = vst [vmem:[#allocation3 + $0x1f8] sm:$0xf] %v3858
        %3891 = vst [vmem:[#allocation3 + $0x218] sm:$0xf] %v3859
        %3892 = vst [vmem:[#allocation3 + $0x238] sm:$0xf] %v3860
        %3893 = vst [vmem:[#allocation3 + $0x258] sm:$0xf] %v3861
        %3894 = vst [vmem:[#allocation3 + $0x278] sm:$0xf] %v3862
        %3895 = vst [vmem:[#allocation3 + $0x298] sm:$0xf] %v3863
        %3896 = vst [vmem:[#allocation3 + $0x2b8] sm:$0xf] %v3864
        %3897 = vst [vmem:[#allocation3 + $0x2d8] sm:$0xf] %v3865
        %3898 = vst [vmem:[#allocation3 + $0x2f8] sm:$0xf] %v3866
        %3899 = vst [vmem:[#allocation3 + $0x318] sm:$0xf] %v3867
        %3900 = vst [vmem:[#allocation3 + $0x338] sm:$0xf] %v3868
        %3901 = vst [vmem:[#allocation3 + $0x358] sm:$0xf] %v3869
        %3902 = vst [vmem:[#allocation3 + $0x378] sm:$0xf] %v3870
        %3903 = vst [vmem:[#allocation3 + $0x398] sm:$0xf] %v3871
        %3904 = vst [vmem:[#allocation3 + $0x3b8] sm:$0xf] %v3872
        %3905 = vst [vmem:[#allocation3 + $0x3d8] sm:$0xf] %v3873
        %3906 = vst [vmem:[#allocation3 + $0x3f8] sm:$0xf] %v3874
        %v3907 = vld [vmem:[%s279] sm:$0xff]
        %v3908 = vld [vmem:[%s279 + $0x8] sm:$0xff]
        %v3909 = vld [vmem:[%s279 + $0x10] sm:$0xff]
        %v3910 = vld [vmem:[%s279 + $0x18] sm:$0xff]
        %v3911 = vld [vmem:[%s279 + $0x20] sm:$0xff]
        %v3912 = vld [vmem:[%s279 + $0x28] sm:$0xff]
        %v3913 = vld [vmem:[%s279 + $0x30] sm:$0xff]
        %v3914 = vld [vmem:[%s279 + $0x38] sm:$0xff]
        %v3915 = vld [vmem:[%s279 + $0x40] sm:$0xff]
        %v3916 = vld [vmem:[%s279 + $0x48] sm:$0xff]
        %v3917 = vld [vmem:[%s279 + $0x50] sm:$0xff]
        %v3918 = vld [vmem:[%s279 + $0x58] sm:$0xff]
        %v3919 = vld [vmem:[%s279 + $0x60] sm:$0xff]
        %v3920 = vld [vmem:[%s279 + $0x68] sm:$0xff]
        %v3921 = vld [vmem:[%s279 + $0x70] sm:$0xff]
        %v3922 = vld [vmem:[%s279 + $0x78] sm:$0xff]
        %v3923 = vld [vmem:[%s279 + $0x80] sm:$0xff]
        %v3924 = vld [vmem:[%s279 + $0x88] sm:$0xff]
        %v3925 = vld [vmem:[%s279 + $0x90] sm:$0xff]
        %v3926 = vld [vmem:[%s279 + $0x98] sm:$0xff]
        %v3927 = vld [vmem:[%s279 + $0xa0] sm:$0xff]
        %v3928 = vld [vmem:[%s279 + $0xa8] sm:$0xff]
        %v3929 = vld [vmem:[%s279 + $0xb0] sm:$0xff]
        %v3930 = vld [vmem:[%s279 + $0xb8] sm:$0xff]
        %v3931 = vld [vmem:[%s279 + $0xc0] sm:$0xff]
        %v3932 = vld [vmem:[%s279 + $0xc8] sm:$0xff]
        %v3933 = vld [vmem:[%s279 + $0xd0] sm:$0xff]
        %v3934 = vld [vmem:[%s279 + $0xd8] sm:$0xff]
        %v3935 = vld [vmem:[%s279 + $0xe0] sm:$0xff]
        %v3936 = vld [vmem:[%s279 + $0xe8] sm:$0xff]
        %v3937 = vld [vmem:[%s279 + $0xf0] sm:$0xff]
        %v3938 = vld [vmem:[%s279 + $0xf8] sm:$0xff]
        %v3939 = vpack.c.bf16 %v3907, %v3907
        %v3940 = vpack.c.bf16 %v3908, %v3908
        %v3941 = vpack.c.bf16 %v3909, %v3909
        %v3942 = vpack.c.bf16 %v3910, %v3910
        %v3943 = vpack.c.bf16 %v3911, %v3911
        %v3944 = vpack.c.bf16 %v3912, %v3912
        %v3945 = vpack.c.bf16 %v3913, %v3913
        %v3946 = vpack.c.bf16 %v3914, %v3914
        %v3947 = vpack.c.bf16 %v3915, %v3915
        %v3948 = vpack.c.bf16 %v3916, %v3916
        %v3949 = vpack.c.bf16 %v3917, %v3917
        %v3950 = vpack.c.bf16 %v3918, %v3918
        %v3951 = vpack.c.bf16 %v3919, %v3919
        %v3952 = vpack.c.bf16 %v3920, %v3920
        %v3953 = vpack.c.bf16 %v3921, %v3921
        %v3954 = vpack.c.bf16 %v3922, %v3922
        %v3955 = vpack.c.bf16 %v3923, %v3923
        %v3956 = vpack.c.bf16 %v3924, %v3924
        %v3957 = vpack.c.bf16 %v3925, %v3925
        %v3958 = vpack.c.bf16 %v3926, %v3926
        %v3959 = vpack.c.bf16 %v3927, %v3927
        %v3960 = vpack.c.bf16 %v3928, %v3928
        %v3961 = vpack.c.bf16 %v3929, %v3929
        %v3962 = vpack.c.bf16 %v3930, %v3930
        %v3963 = vpack.c.bf16 %v3931, %v3931
        %v3964 = vpack.c.bf16 %v3932, %v3932
        %v3965 = vpack.c.bf16 %v3933, %v3933
        %v3966 = vpack.c.bf16 %v3934, %v3934
        %v3967 = vpack.c.bf16 %v3935, %v3935
        %v3968 = vpack.c.bf16 %v3936, %v3936
        %v3969 = vpack.c.bf16 %v3937, %v3937
        %v3970 = vpack.c.bf16 %v3938, %v3938
        %3972 = vset.pattern.permute.xlu0 7
        %3973 = vperm.xlu0 %3972, %v3939
        %v3974 = vpop.permute.xlu0 %3973
        %v3977 = vunpack.c.l.s4 839922192
        %v3978 = vunpack.c.0.s8 %v3977
        %v3979 = vperm.slane %v3974, %v3978
        %3981 = vset.pattern.permute.xlu0 7
        %3982 = vperm.xlu0 %3981, %v3940
        %v3983 = vpop.permute.xlu0 %3982
        %v3986 = vunpack.c.l.s4 839922192
        %v3987 = vunpack.c.0.s8 %v3986
        %v3988 = vperm.slane %v3983, %v3987
        %3990 = vset.pattern.permute.xlu0 7
        %3991 = vperm.xlu0 %3990, %v3941
        %v3992 = vpop.permute.xlu0 %3991
        %v3995 = vunpack.c.l.s4 839922192
        %v3996 = vunpack.c.0.s8 %v3995
        %v3997 = vperm.slane %v3992, %v3996
        %3999 = vset.pattern.permute.xlu0 7
        %4000 = vperm.xlu0 %3999, %v3942
        %v4001 = vpop.permute.xlu0 %4000
        %v4004 = vunpack.c.l.s4 839922192
        %v4005 = vunpack.c.0.s8 %v4004
        %v4006 = vperm.slane %v4001, %v4005
        %4008 = vset.pattern.permute.xlu0 7
        %4009 = vperm.xlu0 %4008, %v3943
        %v4010 = vpop.permute.xlu0 %4009
        %v4013 = vunpack.c.l.s4 839922192
        %v4014 = vunpack.c.0.s8 %v4013
        %v4015 = vperm.slane %v4010, %v4014
        %4017 = vset.pattern.permute.xlu0 7
        %4018 = vperm.xlu0 %4017, %v3944
        %v4019 = vpop.permute.xlu0 %4018
        %v4022 = vunpack.c.l.s4 839922192
        %v4023 = vunpack.c.0.s8 %v4022
        %v4024 = vperm.slane %v4019, %v4023
        %4026 = vset.pattern.permute.xlu0 7
        %4027 = vperm.xlu0 %4026, %v3945
        %v4028 = vpop.permute.xlu0 %4027
        %v4031 = vunpack.c.l.s4 839922192
        %v4032 = vunpack.c.0.s8 %v4031
        %v4033 = vperm.slane %v4028, %v4032
        %4035 = vset.pattern.permute.xlu0 7
        %4036 = vperm.xlu0 %4035, %v3946
        %v4037 = vpop.permute.xlu0 %4036
        %v4040 = vunpack.c.l.s4 839922192
        %v4041 = vunpack.c.0.s8 %v4040
        %v4042 = vperm.slane %v4037, %v4041
        %4044 = vset.pattern.permute.xlu0 7
        %4045 = vperm.xlu0 %4044, %v3947
        %v4046 = vpop.permute.xlu0 %4045
        %v4049 = vunpack.c.l.s4 839922192
        %v4050 = vunpack.c.0.s8 %v4049
        %v4051 = vperm.slane %v4046, %v4050
        %4053 = vset.pattern.permute.xlu0 7
        %4054 = vperm.xlu0 %4053, %v3948
        %v4055 = vpop.permute.xlu0 %4054
        %v4058 = vunpack.c.l.s4 839922192
        %v4059 = vunpack.c.0.s8 %v4058
        %v4060 = vperm.slane %v4055, %v4059
        %4062 = vset.pattern.permute.xlu0 7
        %4063 = vperm.xlu0 %4062, %v3949
        %v4064 = vpop.permute.xlu0 %4063
        %v4067 = vunpack.c.l.s4 839922192
        %v4068 = vunpack.c.0.s8 %v4067
        %v4069 = vperm.slane %v4064, %v4068
        %4071 = vset.pattern.permute.xlu0 7
        %4072 = vperm.xlu0 %4071, %v3950
        %v4073 = vpop.permute.xlu0 %4072
        %v4076 = vunpack.c.l.s4 839922192
        %v4077 = vunpack.c.0.s8 %v4076
        %v4078 = vperm.slane %v4073, %v4077
        %4080 = vset.pattern.permute.xlu0 7
        %4081 = vperm.xlu0 %4080, %v3951
        %v4082 = vpop.permute.xlu0 %4081
        %v4085 = vunpack.c.l.s4 839922192
        %v4086 = vunpack.c.0.s8 %v4085
        %v4087 = vperm.slane %v4082, %v4086
        %4089 = vset.pattern.permute.xlu0 7
        %4090 = vperm.xlu0 %4089, %v3952
        %v4091 = vpop.permute.xlu0 %4090
        %v4094 = vunpack.c.l.s4 839922192
        %v4095 = vunpack.c.0.s8 %v4094
        %v4096 = vperm.slane %v4091, %v4095
        %4098 = vset.pattern.permute.xlu0 7
        %4099 = vperm.xlu0 %4098, %v3953
        %v4100 = vpop.permute.xlu0 %4099
        %v4103 = vunpack.c.l.s4 839922192
        %v4104 = vunpack.c.0.s8 %v4103
        %v4105 = vperm.slane %v4100, %v4104
        %4107 = vset.pattern.permute.xlu0 7
        %4108 = vperm.xlu0 %4107, %v3954
        %v4109 = vpop.permute.xlu0 %4108
        %v4112 = vunpack.c.l.s4 839922192
        %v4113 = vunpack.c.0.s8 %v4112
        %v4114 = vperm.slane %v4109, %v4113
        %4116 = vset.pattern.permute.xlu0 7
        %4117 = vperm.xlu0 %4116, %v3955
        %v4118 = vpop.permute.xlu0 %4117
        %v4121 = vunpack.c.l.s4 839922192
        %v4122 = vunpack.c.0.s8 %v4121
        %v4123 = vperm.slane %v4118, %v4122
        %4125 = vset.pattern.permute.xlu0 7
        %4126 = vperm.xlu0 %4125, %v3956
        %v4127 = vpop.permute.xlu0 %4126
        %v4130 = vunpack.c.l.s4 839922192
        %v4131 = vunpack.c.0.s8 %v4130
        %v4132 = vperm.slane %v4127, %v4131
        %4134 = vset.pattern.permute.xlu0 7
        %4135 = vperm.xlu0 %4134, %v3957
        %v4136 = vpop.permute.xlu0 %4135
        %v4139 = vunpack.c.l.s4 839922192
        %v4140 = vunpack.c.0.s8 %v4139
        %v4141 = vperm.slane %v4136, %v4140
        %4143 = vset.pattern.permute.xlu0 7
        %4144 = vperm.xlu0 %4143, %v3958
        %v4145 = vpop.permute.xlu0 %4144
        %v4148 = vunpack.c.l.s4 839922192
        %v4149 = vunpack.c.0.s8 %v4148
        %v4150 = vperm.slane %v4145, %v4149
        %4152 = vset.pattern.permute.xlu0 7
        %4153 = vperm.xlu0 %4152, %v3959
        %v4154 = vpop.permute.xlu0 %4153
        %v4157 = vunpack.c.l.s4 839922192
        %v4158 = vunpack.c.0.s8 %v4157
        %v4159 = vperm.slane %v4154, %v4158
        %4161 = vset.pattern.permute.xlu0 7
        %4162 = vperm.xlu0 %4161, %v3960
        %v4163 = vpop.permute.xlu0 %4162
        %v4166 = vunpack.c.l.s4 839922192
        %v4167 = vunpack.c.0.s8 %v4166
        %v4168 = vperm.slane %v4163, %v4167
        %4170 = vset.pattern.permute.xlu0 7
        %4171 = vperm.xlu0 %4170, %v3961
        %v4172 = vpop.permute.xlu0 %4171
        %v4175 = vunpack.c.l.s4 839922192
        %v4176 = vunpack.c.0.s8 %v4175
        %v4177 = vperm.slane %v4172, %v4176
        %4179 = vset.pattern.permute.xlu0 7
        %4180 = vperm.xlu0 %4179, %v3962
        %v4181 = vpop.permute.xlu0 %4180
        %v4184 = vunpack.c.l.s4 839922192
        %v4185 = vunpack.c.0.s8 %v4184
        %v4186 = vperm.slane %v4181, %v4185
        %4188 = vset.pattern.permute.xlu0 7
        %4189 = vperm.xlu0 %4188, %v3963
        %v4190 = vpop.permute.xlu0 %4189
        %v4193 = vunpack.c.l.s4 839922192
        %v4194 = vunpack.c.0.s8 %v4193
        %v4195 = vperm.slane %v4190, %v4194
        %4197 = vset.pattern.permute.xlu0 7
        %4198 = vperm.xlu0 %4197, %v3964
        %v4199 = vpop.permute.xlu0 %4198
        %v4202 = vunpack.c.l.s4 839922192
        %v4203 = vunpack.c.0.s8 %v4202
        %v4204 = vperm.slane %v4199, %v4203
        %4206 = vset.pattern.permute.xlu0 7
        %4207 = vperm.xlu0 %4206, %v3965
        %v4208 = vpop.permute.xlu0 %4207
        %v4211 = vunpack.c.l.s4 839922192
        %v4212 = vunpack.c.0.s8 %v4211
        %v4213 = vperm.slane %v4208, %v4212
        %4215 = vset.pattern.permute.xlu0 7
        %4216 = vperm.xlu0 %4215, %v3966
        %v4217 = vpop.permute.xlu0 %4216
        %v4220 = vunpack.c.l.s4 839922192
        %v4221 = vunpack.c.0.s8 %v4220
        %v4222 = vperm.slane %v4217, %v4221
        %4224 = vset.pattern.permute.xlu0 7
        %4225 = vperm.xlu0 %4224, %v3967
        %v4226 = vpop.permute.xlu0 %4225
        %v4229 = vunpack.c.l.s4 839922192
        %v4230 = vunpack.c.0.s8 %v4229
        %v4231 = vperm.slane %v4226, %v4230
        %4233 = vset.pattern.permute.xlu0 7
        %4234 = vperm.xlu0 %4233, %v3968
        %v4235 = vpop.permute.xlu0 %4234
        %v4238 = vunpack.c.l.s4 839922192
        %v4239 = vunpack.c.0.s8 %v4238
        %v4240 = vperm.slane %v4235, %v4239
        %4242 = vset.pattern.permute.xlu0 7
        %4243 = vperm.xlu0 %4242, %v3969
        %v4244 = vpop.permute.xlu0 %4243
        %v4247 = vunpack.c.l.s4 839922192
        %v4248 = vunpack.c.0.s8 %v4247
        %v4249 = vperm.slane %v4244, %v4248
        %4251 = vset.pattern.permute.xlu0 7
        %4252 = vperm.xlu0 %4251, %v3970
        %v4253 = vpop.permute.xlu0 %4252
        %v4256 = vunpack.c.l.s4 839922192
        %v4257 = vunpack.c.0.s8 %v4256
        %v4258 = vperm.slane %v4253, %v4257
        %v4259 = vunpack.c.l.bf16 %v3979
        %v4260 = vunpack.c.l.bf16 %v3988
        %v4261 = vunpack.c.l.bf16 %v3997
        %v4262 = vunpack.c.l.bf16 %v4006
        %v4263 = vunpack.c.l.bf16 %v4015
        %v4264 = vunpack.c.l.bf16 %v4024
        %v4265 = vunpack.c.l.bf16 %v4033
        %v4266 = vunpack.c.l.bf16 %v4042
        %v4267 = vunpack.c.l.bf16 %v4051
        %v4268 = vunpack.c.l.bf16 %v4060
        %v4269 = vunpack.c.l.bf16 %v4069
        %v4270 = vunpack.c.l.bf16 %v4078
        %v4271 = vunpack.c.l.bf16 %v4087
        %v4272 = vunpack.c.l.bf16 %v4096
        %v4273 = vunpack.c.l.bf16 %v4105
        %v4274 = vunpack.c.l.bf16 %v4114
        %v4275 = vunpack.c.l.bf16 %v4123
        %v4276 = vunpack.c.l.bf16 %v4132
        %v4277 = vunpack.c.l.bf16 %v4141
        %v4278 = vunpack.c.l.bf16 %v4150
        %v4279 = vunpack.c.l.bf16 %v4159
        %v4280 = vunpack.c.l.bf16 %v4168
        %v4281 = vunpack.c.l.bf16 %v4177
        %v4282 = vunpack.c.l.bf16 %v4186
        %v4283 = vunpack.c.l.bf16 %v4195
        %v4284 = vunpack.c.l.bf16 %v4204
        %v4285 = vunpack.c.l.bf16 %v4213
        %v4286 = vunpack.c.l.bf16 %v4222
        %v4287 = vunpack.c.l.bf16 %v4231
        %v4288 = vunpack.c.l.bf16 %v4240
        %v4289 = vunpack.c.l.bf16 %v4249
        %v4290 = vunpack.c.l.bf16 %v4258
        %v4291 = vmul.f32 %v4259, %v899
        %v4292 = vmul.f32 %v4260, %v900
        %v4293 = vmul.f32 %v4261, %v901
        %v4294 = vmul.f32 %v4262, %v902
        %v4295 = vmul.f32 %v4263, %v903
        %v4296 = vmul.f32 %v4264, %v904
        %v4297 = vmul.f32 %v4265, %v905
        %v4298 = vmul.f32 %v4266, %v906
        %v4299 = vmul.f32 %v4267, %v907
        %v4300 = vmul.f32 %v4268, %v908
        %v4301 = vmul.f32 %v4269, %v909
        %v4302 = vmul.f32 %v4270, %v910
        %v4303 = vmul.f32 %v4271, %v911
        %v4304 = vmul.f32 %v4272, %v912
        %v4305 = vmul.f32 %v4273, %v913
        %v4306 = vmul.f32 %v4274, %v914
        %v4307 = vmul.f32 %v4275, %v915
        %v4308 = vmul.f32 %v4276, %v916
        %v4309 = vmul.f32 %v4277, %v917
        %v4310 = vmul.f32 %v4278, %v918
        %v4311 = vmul.f32 %v4279, %v919
        %v4312 = vmul.f32 %v4280, %v920
        %v4313 = vmul.f32 %v4281, %v921
        %v4314 = vmul.f32 %v4282, %v922
        %v4315 = vmul.f32 %v4283, %v923
        %v4316 = vmul.f32 %v4284, %v924
        %v4317 = vmul.f32 %v4285, %v925
        %v4318 = vmul.f32 %v4286, %v926
        %v4319 = vmul.f32 %v4287, %v927
        %v4320 = vmul.f32 %v4288, %v928
        %v4321 = vmul.f32 %v4289, %v929
        %v4322 = vmul.f32 %v4290, %v930
        %v4323 = vpack.c.bf16 %v4291, %v4291
        %v4324 = vpack.c.bf16 %v4292, %v4292
        %v4325 = vpack.c.bf16 %v4293, %v4293
        %v4326 = vpack.c.bf16 %v4294, %v4294
        %v4327 = vpack.c.bf16 %v4295, %v4295
        %v4328 = vpack.c.bf16 %v4296, %v4296
        %v4329 = vpack.c.bf16 %v4297, %v4297
        %v4330 = vpack.c.bf16 %v4298, %v4298
        %v4331 = vpack.c.bf16 %v4299, %v4299
        %v4332 = vpack.c.bf16 %v4300, %v4300
        %v4333 = vpack.c.bf16 %v4301, %v4301
        %v4334 = vpack.c.bf16 %v4302, %v4302
        %v4335 = vpack.c.bf16 %v4303, %v4303
        %v4336 = vpack.c.bf16 %v4304, %v4304
        %v4337 = vpack.c.bf16 %v4305, %v4305
        %v4338 = vpack.c.bf16 %v4306, %v4306
        %v4339 = vpack.c.bf16 %v4307, %v4307
        %v4340 = vpack.c.bf16 %v4308, %v4308
        %v4341 = vpack.c.bf16 %v4309, %v4309
        %v4342 = vpack.c.bf16 %v4310, %v4310
        %v4343 = vpack.c.bf16 %v4311, %v4311
        %v4344 = vpack.c.bf16 %v4312, %v4312
        %v4345 = vpack.c.bf16 %v4313, %v4313
        %v4346 = vpack.c.bf16 %v4314, %v4314
        %v4347 = vpack.c.bf16 %v4315, %v4315
        %v4348 = vpack.c.bf16 %v4316, %v4316
        %v4349 = vpack.c.bf16 %v4317, %v4317
        %v4350 = vpack.c.bf16 %v4318, %v4318
        %v4351 = vpack.c.bf16 %v4319, %v4319
        %v4352 = vpack.c.bf16 %v4320, %v4320
        %v4353 = vpack.c.bf16 %v4321, %v4321
        %v4354 = vpack.c.bf16 %v4322, %v4322
        %4355 = vst [vmem:[#allocation3 + $0x1c] sm:$0xf] %v4323
        %4356 = vst [vmem:[#allocation3 + $0x3c] sm:$0xf] %v4324
        %4357 = vst [vmem:[#allocation3 + $0x5c] sm:$0xf] %v4325
        %4358 = vst [vmem:[#allocation3 + $0x7c] sm:$0xf] %v4326
        %4359 = vst [vmem:[#allocation3 + $0x9c] sm:$0xf] %v4327
        %4360 = vst [vmem:[#allocation3 + $0xbc] sm:$0xf] %v4328
        %4361 = vst [vmem:[#allocation3 + $0xdc] sm:$0xf] %v4329
        %4362 = vst [vmem:[#allocation3 + $0xfc] sm:$0xf] %v4330
        %4363 = vst [vmem:[#allocation3 + $0x11c] sm:$0xf] %v4331
        %4364 = vst [vmem:[#allocation3 + $0x13c] sm:$0xf] %v4332
        %4365 = vst [vmem:[#allocation3 + $0x15c] sm:$0xf] %v4333
        %4366 = vst [vmem:[#allocation3 + $0x17c] sm:$0xf] %v4334
        %4367 = vst [vmem:[#allocation3 + $0x19c] sm:$0xf] %v4335
        %4368 = vst [vmem:[#allocation3 + $0x1bc] sm:$0xf] %v4336
        %4369 = vst [vmem:[#allocation3 + $0x1dc] sm:$0xf] %v4337
        %4370 = vst [vmem:[#allocation3 + $0x1fc] sm:$0xf] %v4338
        %4371 = vst [vmem:[#allocation3 + $0x21c] sm:$0xf] %v4339
        %4372 = vst [vmem:[#allocation3 + $0x23c] sm:$0xf] %v4340
        %4373 = vst [vmem:[#allocation3 + $0x25c] sm:$0xf] %v4341
        %4374 = vst [vmem:[#allocation3 + $0x27c] sm:$0xf] %v4342
        %4375 = vst [vmem:[#allocation3 + $0x29c] sm:$0xf] %v4343
        %4376 = vst [vmem:[#allocation3 + $0x2bc] sm:$0xf] %v4344
        %4377 = vst [vmem:[#allocation3 + $0x2dc] sm:$0xf] %v4345
        %4378 = vst [vmem:[#allocation3 + $0x2fc] sm:$0xf] %v4346
        %4379 = vst [vmem:[#allocation3 + $0x31c] sm:$0xf] %v4347
        %4380 = vst [vmem:[#allocation3 + $0x33c] sm:$0xf] %v4348
        %4381 = vst [vmem:[#allocation3 + $0x35c] sm:$0xf] %v4349
        %4382 = vst [vmem:[#allocation3 + $0x37c] sm:$0xf] %v4350
        %4383 = vst [vmem:[#allocation3 + $0x39c] sm:$0xf] %v4351
        %4384 = vst [vmem:[#allocation3 + $0x3bc] sm:$0xf] %v4352
        %4385 = vst [vmem:[#allocation3 + $0x3dc] sm:$0xf] %v4353
        %4386 = vst [vmem:[#allocation3 + $0x3fc] sm:$0xf] %v4354
        %v4387 = vld [vmem:[#allocation7] sm:$0xff]
        %v4388 = vld [vmem:[#allocation7 + $0x8] sm:$0xff]
        %v4389 = vld [vmem:[#allocation7 + $0x10] sm:$0xff]
        %v4390 = vld [vmem:[#allocation7 + $0x18] sm:$0xff]
        %v4391 = vld [vmem:[#allocation7 + $0x20] sm:$0xff]
        %v4392 = vld [vmem:[#allocation7 + $0x28] sm:$0xff]
        %v4393 = vld [vmem:[#allocation7 + $0x30] sm:$0xff]
        %v4394 = vld [vmem:[#allocation7 + $0x38] sm:$0xff]
        %v4395 = vld [vmem:[#allocation7 + $0x40] sm:$0xff]
        %v4396 = vld [vmem:[#allocation7 + $0x48] sm:$0xff]
        %v4397 = vld [vmem:[#allocation7 + $0x50] sm:$0xff]
        %v4398 = vld [vmem:[#allocation7 + $0x58] sm:$0xff]
        %v4399 = vld [vmem:[#allocation7 + $0x60] sm:$0xff]
        %v4400 = vld [vmem:[#allocation7 + $0x68] sm:$0xff]
        %v4401 = vld [vmem:[#allocation7 + $0x70] sm:$0xff]
        %v4402 = vld [vmem:[#allocation7 + $0x78] sm:$0xff]
        %v4403 = vld [vmem:[#allocation7 + $0x80] sm:$0xff]
        %v4404 = vld [vmem:[#allocation7 + $0x88] sm:$0xff]
        %v4405 = vld [vmem:[#allocation7 + $0x90] sm:$0xff]
        %v4406 = vld [vmem:[#allocation7 + $0x98] sm:$0xff]
        %v4407 = vld [vmem:[#allocation7 + $0xa0] sm:$0xff]
        %v4408 = vld [vmem:[#allocation7 + $0xa8] sm:$0xff]
        %v4409 = vld [vmem:[#allocation7 + $0xb0] sm:$0xff]
        %v4410 = vld [vmem:[#allocation7 + $0xb8] sm:$0xff]
        %v4411 = vld [vmem:[#allocation7 + $0xc0] sm:$0xff]
        %v4412 = vld [vmem:[#allocation7 + $0xc8] sm:$0xff]
        %v4413 = vld [vmem:[#allocation7 + $0xd0] sm:$0xff]
        %v4414 = vld [vmem:[#allocation7 + $0xd8] sm:$0xff]
        %v4415 = vld [vmem:[#allocation7 + $0xe0] sm:$0xff]
        %v4416 = vld [vmem:[#allocation7 + $0xe8] sm:$0xff]
        %v4417 = vld [vmem:[#allocation7 + $0xf0] sm:$0xff]
        %v4418 = vld [vmem:[#allocation7 + $0xf8] sm:$0xff]
        %v4419 = vld [vmem:[#allocation3] sm:$0xff]
        %v4420 = vld [vmem:[#allocation3 + $0x8] sm:$0xff]
        %v4421 = vld [vmem:[#allocation3 + $0x10] sm:$0xff]
        %v4422 = vld [vmem:[#allocation3 + $0x18] sm:$0xff]
        %v4423 = vld [vmem:[#allocation3 + $0x20] sm:$0xff]
        %v4424 = vld [vmem:[#allocation3 + $0x28] sm:$0xff]
        %v4425 = vld [vmem:[#allocation3 + $0x30] sm:$0xff]
        %v4426 = vld [vmem:[#allocation3 + $0x38] sm:$0xff]
        %v4427 = vld [vmem:[#allocation3 + $0x40] sm:$0xff]
        %v4428 = vld [vmem:[#allocation3 + $0x48] sm:$0xff]
        %v4429 = vld [vmem:[#allocation3 + $0x50] sm:$0xff]
        %v4430 = vld [vmem:[#allocation3 + $0x58] sm:$0xff]
        %v4431 = vld [vmem:[#allocation3 + $0x60] sm:$0xff]
        %v4432 = vld [vmem:[#allocation3 + $0x68] sm:$0xff]
        %v4433 = vld [vmem:[#allocation3 + $0x70] sm:$0xff]
        %v4434 = vld [vmem:[#allocation3 + $0x78] sm:$0xff]
        %v4435 = vld [vmem:[#allocation3 + $0x80] sm:$0xff]
        %v4436 = vld [vmem:[#allocation3 + $0x88] sm:$0xff]
        %v4437 = vld [vmem:[#allocation3 + $0x90] sm:$0xff]
        %v4438 = vld [vmem:[#allocation3 + $0x98] sm:$0xff]
        %v4439 = vld [vmem:[#allocation3 + $0xa0] sm:$0xff]
        %v4440 = vld [vmem:[#allocation3 + $0xa8] sm:$0xff]
        %v4441 = vld [vmem:[#allocation3 + $0xb0] sm:$0xff]
        %v4442 = vld [vmem:[#allocation3 + $0xb8] sm:$0xff]
        %v4443 = vld [vmem:[#allocation3 + $0xc0] sm:$0xff]
        %v4444 = vld [vmem:[#allocation3 + $0xc8] sm:$0xff]
        %v4445 = vld [vmem:[#allocation3 + $0xd0] sm:$0xff]
        %v4446 = vld [vmem:[#allocation3 + $0xd8] sm:$0xff]
        %v4447 = vld [vmem:[#allocation3 + $0xe0] sm:$0xff]
        %v4448 = vld [vmem:[#allocation3 + $0xe8] sm:$0xff]
        %v4449 = vld [vmem:[#allocation3 + $0xf0] sm:$0xff]
        %v4450 = vld [vmem:[#allocation3 + $0xf8] sm:$0xff]
        %v4451 = vld [vmem:[#allocation3 + $0x100] sm:$0xff]
        %v4452 = vld [vmem:[#allocation3 + $0x108] sm:$0xff]
        %v4453 = vld [vmem:[#allocation3 + $0x110] sm:$0xff]
        %v4454 = vld [vmem:[#allocation3 + $0x118] sm:$0xff]
        %v4455 = vld [vmem:[#allocation3 + $0x120] sm:$0xff]
        %v4456 = vld [vmem:[#allocation3 + $0x128] sm:$0xff]
        %v4457 = vld [vmem:[#allocation3 + $0x130] sm:$0xff]
        %v4458 = vld [vmem:[#allocation3 + $0x138] sm:$0xff]
        %v4459 = vld [vmem:[#allocation3 + $0x140] sm:$0xff]
        %v4460 = vld [vmem:[#allocation3 + $0x148] sm:$0xff]
        %v4461 = vld [vmem:[#allocation3 + $0x150] sm:$0xff]
        %v4462 = vld [vmem:[#allocation3 + $0x158] sm:$0xff]
        %v4463 = vld [vmem:[#allocation3 + $0x160] sm:$0xff]
        %v4464 = vld [vmem:[#allocation3 + $0x168] sm:$0xff]
        %v4465 = vld [vmem:[#allocation3 + $0x170] sm:$0xff]
        %v4466 = vld [vmem:[#allocation3 + $0x178] sm:$0xff]
        %v4467 = vld [vmem:[#allocation3 + $0x180] sm:$0xff]
        %v4468 = vld [vmem:[#allocation3 + $0x188] sm:$0xff]
        %v4469 = vld [vmem:[#allocation3 + $0x190] sm:$0xff]
        %v4470 = vld [vmem:[#allocation3 + $0x198] sm:$0xff]
        %v4471 = vld [vmem:[#allocation3 + $0x1a0] sm:$0xff]
        %v4472 = vld [vmem:[#allocation3 + $0x1a8] sm:$0xff]
        %v4473 = vld [vmem:[#allocation3 + $0x1b0] sm:$0xff]
        %v4474 = vld [vmem:[#allocation3 + $0x1b8] sm:$0xff]
        %v4475 = vld [vmem:[#allocation3 + $0x1c0] sm:$0xff]
        %v4476 = vld [vmem:[#allocation3 + $0x1c8] sm:$0xff]
        %v4477 = vld [vmem:[#allocation3 + $0x1d0] sm:$0xff]
        %v4478 = vld [vmem:[#allocation3 + $0x1d8] sm:$0xff]
        %v4479 = vld [vmem:[#allocation3 + $0x1e0] sm:$0xff]
        %v4480 = vld [vmem:[#allocation3 + $0x1e8] sm:$0xff]
        %v4481 = vld [vmem:[#allocation3 + $0x1f0] sm:$0xff]
        %v4482 = vld [vmem:[#allocation3 + $0x1f8] sm:$0xff]
        %v4483 = vld [vmem:[#allocation3 + $0x200] sm:$0xff]
        %v4484 = vld [vmem:[#allocation3 + $0x208] sm:$0xff]
        %v4485 = vld [vmem:[#allocation3 + $0x210] sm:$0xff]
        %v4486 = vld [vmem:[#allocation3 + $0x218] sm:$0xff]
        %v4487 = vld [vmem:[#allocation3 + $0x220] sm:$0xff]
        %v4488 = vld [vmem:[#allocation3 + $0x228] sm:$0xff]
        %v4489 = vld [vmem:[#allocation3 + $0x230] sm:$0xff]
        %v4490 = vld [vmem:[#allocation3 + $0x238] sm:$0xff]
        %v4491 = vld [vmem:[#allocation3 + $0x240] sm:$0xff]
        %v4492 = vld [vmem:[#allocation3 + $0x248] sm:$0xff]
        %v4493 = vld [vmem:[#allocation3 + $0x250] sm:$0xff]
        %v4494 = vld [vmem:[#allocation3 + $0x258] sm:$0xff]
        %v4495 = vld [vmem:[#allocation3 + $0x260] sm:$0xff]
        %v4496 = vld [vmem:[#allocation3 + $0x268] sm:$0xff]
        %v4497 = vld [vmem:[#allocation3 + $0x270] sm:$0xff]
        %v4498 = vld [vmem:[#allocation3 + $0x278] sm:$0xff]
        %v4499 = vld [vmem:[#allocation3 + $0x280] sm:$0xff]
        %v4500 = vld [vmem:[#allocation3 + $0x288] sm:$0xff]
        %v4501 = vld [vmem:[#allocation3 + $0x290] sm:$0xff]
        %v4502 = vld [vmem:[#allocation3 + $0x298] sm:$0xff]
        %v4503 = vld [vmem:[#allocation3 + $0x2a0] sm:$0xff]
        %v4504 = vld [vmem:[#allocation3 + $0x2a8] sm:$0xff]
        %v4505 = vld [vmem:[#allocation3 + $0x2b0] sm:$0xff]
        %v4506 = vld [vmem:[#allocation3 + $0x2b8] sm:$0xff]
        %v4507 = vld [vmem:[#allocation3 + $0x2c0] sm:$0xff]
        %v4508 = vld [vmem:[#allocation3 + $0x2c8] sm:$0xff]
        %v4509 = vld [vmem:[#allocation3 + $0x2d0] sm:$0xff]
        %v4510 = vld [vmem:[#allocation3 + $0x2d8] sm:$0xff]
        %v4511 = vld [vmem:[#allocation3 + $0x2e0] sm:$0xff]
        %v4512 = vld [vmem:[#allocation3 + $0x2e8] sm:$0xff]
        %v4513 = vld [vmem:[#allocation3 + $0x2f0] sm:$0xff]
        %v4514 = vld [vmem:[#allocation3 + $0x2f8] sm:$0xff]
        %v4515 = vld [vmem:[#allocation3 + $0x300] sm:$0xff]
        %v4516 = vld [vmem:[#allocation3 + $0x308] sm:$0xff]
        %v4517 = vld [vmem:[#allocation3 + $0x310] sm:$0xff]
        %v4518 = vld [vmem:[#allocation3 + $0x318] sm:$0xff]
        %v4519 = vld [vmem:[#allocation3 + $0x320] sm:$0xff]
        %v4520 = vld [vmem:[#allocation3 + $0x328] sm:$0xff]
        %v4521 = vld [vmem:[#allocation3 + $0x330] sm:$0xff]
        %v4522 = vld [vmem:[#allocation3 + $0x338] sm:$0xff]
        %v4523 = vld [vmem:[#allocation3 + $0x340] sm:$0xff]
        %v4524 = vld [vmem:[#allocation3 + $0x348] sm:$0xff]
        %v4525 = vld [vmem:[#allocation3 + $0x350] sm:$0xff]
        %v4526 = vld [vmem:[#allocation3 + $0x358] sm:$0xff]
        %v4527 = vld [vmem:[#allocation3 + $0x360] sm:$0xff]
        %v4528 = vld [vmem:[#allocation3 + $0x368] sm:$0xff]
        %v4529 = vld [vmem:[#allocation3 + $0x370] sm:$0xff]
        %v4530 = vld [vmem:[#allocation3 + $0x378] sm:$0xff]
        %v4531 = vld [vmem:[#allocation3 + $0x380] sm:$0xff]
        %v4532 = vld [vmem:[#allocation3 + $0x388] sm:$0xff]
        %v4533 = vld [vmem:[#allocation3 + $0x390] sm:$0xff]
        %v4534 = vld [vmem:[#allocation3 + $0x398] sm:$0xff]
        %v4535 = vld [vmem:[#allocation3 + $0x3a0] sm:$0xff]
        %v4536 = vld [vmem:[#allocation3 + $0x3a8] sm:$0xff]
        %v4537 = vld [vmem:[#allocation3 + $0x3b0] sm:$0xff]
        %v4538 = vld [vmem:[#allocation3 + $0x3b8] sm:$0xff]
        %v4539 = vld [vmem:[#allocation3 + $0x3c0] sm:$0xff]
        %v4540 = vld [vmem:[#allocation3 + $0x3c8] sm:$0xff]
        %v4541 = vld [vmem:[#allocation3 + $0x3d0] sm:$0xff]
        %v4542 = vld [vmem:[#allocation3 + $0x3d8] sm:$0xff]
        %v4543 = vld [vmem:[#allocation3 + $0x3e0] sm:$0xff]
        %v4544 = vld [vmem:[#allocation3 + $0x3e8] sm:$0xff]
        %v4545 = vld [vmem:[#allocation3 + $0x3f0] sm:$0xff]
        %v4546 = vld [vmem:[#allocation3 + $0x3f8] sm:$0xff]
        %v4547 = vld [vmem:[%s230] sm:$0xf]
        %v4548 = vld [vmem:[%s230 + $0x4] sm:$0xf]
        %v4549 = vld [vmem:[%s230 + $0x8] sm:$0xf]
        %v4550 = vld [vmem:[%s230 + $0xc] sm:$0xf]
        %v4551 = vld [vmem:[%s230 + $0x10] sm:$0xf]
        %v4552 = vld [vmem:[%s230 + $0x14] sm:$0xf]
        %v4553 = vld [vmem:[%s230 + $0x18] sm:$0xf]
        %v4554 = vld [vmem:[%s230 + $0x1c] sm:$0xf]
        %v4555 = vld [vmem:[%s230 + $0x20] sm:$0xf]
        %v4556 = vld [vmem:[%s230 + $0x24] sm:$0xf]
        %v4557 = vld [vmem:[%s230 + $0x28] sm:$0xf]
        %v4558 = vld [vmem:[%s230 + $0x2c] sm:$0xf]
        %v4559 = vld [vmem:[%s230 + $0x30] sm:$0xf]
        %v4560 = vld [vmem:[%s230 + $0x34] sm:$0xf]
        %v4561 = vld [vmem:[%s230 + $0x38] sm:$0xf]
        %v4562 = vld [vmem:[%s230 + $0x3c] sm:$0xf]
        %v4563 = vld [vmem:[%s230 + $0x40] sm:$0xf]
        %v4564 = vld [vmem:[%s230 + $0x44] sm:$0xf]
        %v4565 = vld [vmem:[%s230 + $0x48] sm:$0xf]
        %v4566 = vld [vmem:[%s230 + $0x4c] sm:$0xf]
        %v4567 = vld [vmem:[%s230 + $0x50] sm:$0xf]
        %v4568 = vld [vmem:[%s230 + $0x54] sm:$0xf]
        %v4569 = vld [vmem:[%s230 + $0x58] sm:$0xf]
        %v4570 = vld [vmem:[%s230 + $0x5c] sm:$0xf]
        %v4571 = vld [vmem:[%s230 + $0x60] sm:$0xf]
        %v4572 = vld [vmem:[%s230 + $0x64] sm:$0xf]
        %v4573 = vld [vmem:[%s230 + $0x68] sm:$0xf]
        %v4574 = vld [vmem:[%s230 + $0x6c] sm:$0xf]
        %v4575 = vld [vmem:[%s230 + $0x70] sm:$0xf]
        %v4576 = vld [vmem:[%s230 + $0x74] sm:$0xf]
        %v4577 = vld [vmem:[%s230 + $0x78] sm:$0xf]
        %v4578 = vld [vmem:[%s230 + $0x7c] sm:$0xf]
        %v4579 = vld [vmem:[%s230 + $0x80] sm:$0xf]
        %v4580 = vld [vmem:[%s230 + $0x84] sm:$0xf]
        %v4581 = vld [vmem:[%s230 + $0x88] sm:$0xf]
        %v4582 = vld [vmem:[%s230 + $0x8c] sm:$0xf]
        %v4583 = vld [vmem:[%s230 + $0x90] sm:$0xf]
        %v4584 = vld [vmem:[%s230 + $0x94] sm:$0xf]
        %v4585 = vld [vmem:[%s230 + $0x98] sm:$0xf]
        %v4586 = vld [vmem:[%s230 + $0x9c] sm:$0xf]
        %v4587 = vld [vmem:[%s230 + $0xa0] sm:$0xf]
        %v4588 = vld [vmem:[%s230 + $0xa4] sm:$0xf]
        %v4589 = vld [vmem:[%s230 + $0xa8] sm:$0xf]
        %v4590 = vld [vmem:[%s230 + $0xac] sm:$0xf]
        %v4591 = vld [vmem:[%s230 + $0xb0] sm:$0xf]
        %v4592 = vld [vmem:[%s230 + $0xb4] sm:$0xf]
        %v4593 = vld [vmem:[%s230 + $0xb8] sm:$0xf]
        %v4594 = vld [vmem:[%s230 + $0xbc] sm:$0xf]
        %v4595 = vld [vmem:[%s230 + $0xc0] sm:$0xf]
        %v4596 = vld [vmem:[%s230 + $0xc4] sm:$0xf]
        %v4597 = vld [vmem:[%s230 + $0xc8] sm:$0xf]
        %v4598 = vld [vmem:[%s230 + $0xcc] sm:$0xf]
        %v4599 = vld [vmem:[%s230 + $0xd0] sm:$0xf]
        %v4600 = vld [vmem:[%s230 + $0xd4] sm:$0xf]
        %v4601 = vld [vmem:[%s230 + $0xd8] sm:$0xf]
        %v4602 = vld [vmem:[%s230 + $0xdc] sm:$0xf]
        %v4603 = vld [vmem:[%s230 + $0xe0] sm:$0xf]
        %v4604 = vld [vmem:[%s230 + $0xe4] sm:$0xf]
        %v4605 = vld [vmem:[%s230 + $0xe8] sm:$0xf]
        %v4606 = vld [vmem:[%s230 + $0xec] sm:$0xf]
        %v4607 = vld [vmem:[%s230 + $0xf0] sm:$0xf]
        %v4608 = vld [vmem:[%s230 + $0xf4] sm:$0xf]
        %v4609 = vld [vmem:[%s230 + $0xf8] sm:$0xf]
        %v4610 = vld [vmem:[%s230 + $0xfc] sm:$0xf]
        %v4611 = vld [vmem:[%s230 + $0x100] sm:$0xf]
        %v4612 = vld [vmem:[%s230 + $0x104] sm:$0xf]
        %v4613 = vld [vmem:[%s230 + $0x108] sm:$0xf]
        %v4614 = vld [vmem:[%s230 + $0x10c] sm:$0xf]
        %v4615 = vld [vmem:[%s230 + $0x110] sm:$0xf]
        %v4616 = vld [vmem:[%s230 + $0x114] sm:$0xf]
        %v4617 = vld [vmem:[%s230 + $0x118] sm:$0xf]
        %v4618 = vld [vmem:[%s230 + $0x11c] sm:$0xf]
        %v4619 = vld [vmem:[%s230 + $0x120] sm:$0xf]
        %v4620 = vld [vmem:[%s230 + $0x124] sm:$0xf]
        %v4621 = vld [vmem:[%s230 + $0x128] sm:$0xf]
        %v4622 = vld [vmem:[%s230 + $0x12c] sm:$0xf]
        %v4623 = vld [vmem:[%s230 + $0x130] sm:$0xf]
        %v4624 = vld [vmem:[%s230 + $0x134] sm:$0xf]
        %v4625 = vld [vmem:[%s230 + $0x138] sm:$0xf]
        %v4626 = vld [vmem:[%s230 + $0x13c] sm:$0xf]
        %v4627 = vld [vmem:[%s230 + $0x140] sm:$0xf]
        %v4628 = vld [vmem:[%s230 + $0x144] sm:$0xf]
        %v4629 = vld [vmem:[%s230 + $0x148] sm:$0xf]
        %v4630 = vld [vmem:[%s230 + $0x14c] sm:$0xf]
        %v4631 = vld [vmem:[%s230 + $0x150] sm:$0xf]
        %v4632 = vld [vmem:[%s230 + $0x154] sm:$0xf]
        %v4633 = vld [vmem:[%s230 + $0x158] sm:$0xf]
        %v4634 = vld [vmem:[%s230 + $0x15c] sm:$0xf]
        %v4635 = vld [vmem:[%s230 + $0x160] sm:$0xf]
        %v4636 = vld [vmem:[%s230 + $0x164] sm:$0xf]
        %v4637 = vld [vmem:[%s230 + $0x168] sm:$0xf]
        %v4638 = vld [vmem:[%s230 + $0x16c] sm:$0xf]
        %v4639 = vld [vmem:[%s230 + $0x170] sm:$0xf]
        %v4640 = vld [vmem:[%s230 + $0x174] sm:$0xf]
        %v4641 = vld [vmem:[%s230 + $0x178] sm:$0xf]
        %v4642 = vld [vmem:[%s230 + $0x17c] sm:$0xf]
        %v4643 = vld [vmem:[%s230 + $0x180] sm:$0xf]
        %v4644 = vld [vmem:[%s230 + $0x184] sm:$0xf]
        %v4645 = vld [vmem:[%s230 + $0x188] sm:$0xf]
        %v4646 = vld [vmem:[%s230 + $0x18c] sm:$0xf]
        %v4647 = vld [vmem:[%s230 + $0x190] sm:$0xf]
        %v4648 = vld [vmem:[%s230 + $0x194] sm:$0xf]
        %v4649 = vld [vmem:[%s230 + $0x198] sm:$0xf]
        %v4650 = vld [vmem:[%s230 + $0x19c] sm:$0xf]
        %v4651 = vld [vmem:[%s230 + $0x1a0] sm:$0xf]
        %v4652 = vld [vmem:[%s230 + $0x1a4] sm:$0xf]
        %v4653 = vld [vmem:[%s230 + $0x1a8] sm:$0xf]
        %v4654 = vld [vmem:[%s230 + $0x1ac] sm:$0xf]
        %v4655 = vld [vmem:[%s230 + $0x1b0] sm:$0xf]
        %v4656 = vld [vmem:[%s230 + $0x1b4] sm:$0xf]
        %v4657 = vld [vmem:[%s230 + $0x1b8] sm:$0xf]
        %v4658 = vld [vmem:[%s230 + $0x1bc] sm:$0xf]
        %v4659 = vld [vmem:[%s230 + $0x1c0] sm:$0xf]
        %v4660 = vld [vmem:[%s230 + $0x1c4] sm:$0xf]
        %v4661 = vld [vmem:[%s230 + $0x1c8] sm:$0xf]
        %v4662 = vld [vmem:[%s230 + $0x1cc] sm:$0xf]
        %v4663 = vld [vmem:[%s230 + $0x1d0] sm:$0xf]
        %v4664 = vld [vmem:[%s230 + $0x1d4] sm:$0xf]
        %v4665 = vld [vmem:[%s230 + $0x1d8] sm:$0xf]
        %v4666 = vld [vmem:[%s230 + $0x1dc] sm:$0xf]
        %v4667 = vld [vmem:[%s230 + $0x1e0] sm:$0xf]
        %v4668 = vld [vmem:[%s230 + $0x1e4] sm:$0xf]
        %v4669 = vld [vmem:[%s230 + $0x1e8] sm:$0xf]
        %v4670 = vld [vmem:[%s230 + $0x1ec] sm:$0xf]
        %v4671 = vld [vmem:[%s230 + $0x1f0] sm:$0xf]
        %v4672 = vld [vmem:[%s230 + $0x1f4] sm:$0xf]
        %v4673 = vld [vmem:[%s230 + $0x1f8] sm:$0xf]
        %v4674 = vld [vmem:[%s230 + $0x1fc] sm:$0xf]
        %v4803 = vunpack.c.l.b16 %v4419
        %v4804 = vunpack.c.h.b16 %v4419
        %v4805 = vunpack.c.l.b16 %v4420
        %v4806 = vunpack.c.h.b16 %v4420
        %v4807 = vunpack.c.l.b16 %v4421
        %v4808 = vunpack.c.h.b16 %v4421
        %v4809 = vunpack.c.l.b16 %v4422
        %v4810 = vunpack.c.h.b16 %v4422
        %v4811 = vunpack.c.l.b16 %v4423
        %v4812 = vunpack.c.h.b16 %v4423
        %v4813 = vunpack.c.l.b16 %v4424
        %v4814 = vunpack.c.h.b16 %v4424
        %v4815 = vunpack.c.l.b16 %v4425
        %v4816 = vunpack.c.h.b16 %v4425
        %v4817 = vunpack.c.l.b16 %v4426
        %v4818 = vunpack.c.h.b16 %v4426
        %v4819 = vunpack.c.l.b16 %v4427
        %v4820 = vunpack.c.h.b16 %v4427
        %v4821 = vunpack.c.l.b16 %v4428
        %v4822 = vunpack.c.h.b16 %v4428
        %v4823 = vunpack.c.l.b16 %v4429
        %v4824 = vunpack.c.h.b16 %v4429
        %v4825 = vunpack.c.l.b16 %v4430
        %v4826 = vunpack.c.h.b16 %v4430
        %v4827 = vunpack.c.l.b16 %v4431
        %v4828 = vunpack.c.h.b16 %v4431
        %v4829 = vunpack.c.l.b16 %v4432
        %v4830 = vunpack.c.h.b16 %v4432
        %v4831 = vunpack.c.l.b16 %v4433
        %v4832 = vunpack.c.h.b16 %v4433
        %v4833 = vunpack.c.l.b16 %v4434
        %v4834 = vunpack.c.h.b16 %v4434
        %v4835 = vunpack.c.l.b16 %v4435
        %v4836 = vunpack.c.h.b16 %v4435
        %v4837 = vunpack.c.l.b16 %v4436
        %v4838 = vunpack.c.h.b16 %v4436
        %v4839 = vunpack.c.l.b16 %v4437
        %v4840 = vunpack.c.h.b16 %v4437
        %v4841 = vunpack.c.l.b16 %v4438
        %v4842 = vunpack.c.h.b16 %v4438
        %v4843 = vunpack.c.l.b16 %v4439
        %v4844 = vunpack.c.h.b16 %v4439
        %v4845 = vunpack.c.l.b16 %v4440
        %v4846 = vunpack.c.h.b16 %v4440
        %v4847 = vunpack.c.l.b16 %v4441
        %v4848 = vunpack.c.h.b16 %v4441
        %v4849 = vunpack.c.l.b16 %v4442
        %v4850 = vunpack.c.h.b16 %v4442
        %v4851 = vunpack.c.l.b16 %v4443
        %v4852 = vunpack.c.h.b16 %v4443
        %v4853 = vunpack.c.l.b16 %v4444
        %v4854 = vunpack.c.h.b16 %v4444
        %v4855 = vunpack.c.l.b16 %v4445
        %v4856 = vunpack.c.h.b16 %v4445
        %v4857 = vunpack.c.l.b16 %v4446
        %v4858 = vunpack.c.h.b16 %v4446
        %v4859 = vunpack.c.l.b16 %v4447
        %v4860 = vunpack.c.h.b16 %v4447
        %v4861 = vunpack.c.l.b16 %v4448
        %v4862 = vunpack.c.h.b16 %v4448
        %v4863 = vunpack.c.l.b16 %v4449
        %v4864 = vunpack.c.h.b16 %v4449
        %v4865 = vunpack.c.l.b16 %v4450
        %v4866 = vunpack.c.h.b16 %v4450
        %v4867 = vunpack.c.l.b16 %v4451
        %v4868 = vunpack.c.h.b16 %v4451
        %v4869 = vunpack.c.l.b16 %v4452
        %v4870 = vunpack.c.h.b16 %v4452
        %v4871 = vunpack.c.l.b16 %v4453
        %v4872 = vunpack.c.h.b16 %v4453
        %v4873 = vunpack.c.l.b16 %v4454
        %v4874 = vunpack.c.h.b16 %v4454
        %v4875 = vunpack.c.l.b16 %v4455
        %v4876 = vunpack.c.h.b16 %v4455
        %v4877 = vunpack.c.l.b16 %v4456
        %v4878 = vunpack.c.h.b16 %v4456
        %v4879 = vunpack.c.l.b16 %v4457
        %v4880 = vunpack.c.h.b16 %v4457
        %v4881 = vunpack.c.l.b16 %v4458
        %v4882 = vunpack.c.h.b16 %v4458
        %v4883 = vunpack.c.l.b16 %v4459
        %v4884 = vunpack.c.h.b16 %v4459
        %v4885 = vunpack.c.l.b16 %v4460
        %v4886 = vunpack.c.h.b16 %v4460
        %v4887 = vunpack.c.l.b16 %v4461
        %v4888 = vunpack.c.h.b16 %v4461
        %v4889 = vunpack.c.l.b16 %v4462
        %v4890 = vunpack.c.h.b16 %v4462
        %v4891 = vunpack.c.l.b16 %v4463
        %v4892 = vunpack.c.h.b16 %v4463
        %v4893 = vunpack.c.l.b16 %v4464
        %v4894 = vunpack.c.h.b16 %v4464
        %v4895 = vunpack.c.l.b16 %v4465
        %v4896 = vunpack.c.h.b16 %v4465
        %v4897 = vunpack.c.l.b16 %v4466
        %v4898 = vunpack.c.h.b16 %v4466
        %v4899 = vunpack.c.l.b16 %v4467
        %v4900 = vunpack.c.h.b16 %v4467
        %v4901 = vunpack.c.l.b16 %v4468
        %v4902 = vunpack.c.h.b16 %v4468
        %v4903 = vunpack.c.l.b16 %v4469
        %v4904 = vunpack.c.h.b16 %v4469
        %v4905 = vunpack.c.l.b16 %v4470
        %v4906 = vunpack.c.h.b16 %v4470
        %v4907 = vunpack.c.l.b16 %v4471
        %v4908 = vunpack.c.h.b16 %v4471
        %v4909 = vunpack.c.l.b16 %v4472
        %v4910 = vunpack.c.h.b16 %v4472
        %v4911 = vunpack.c.l.b16 %v4473
        %v4912 = vunpack.c.h.b16 %v4473
        %v4913 = vunpack.c.l.b16 %v4474
        %v4914 = vunpack.c.h.b16 %v4474
        %v4915 = vunpack.c.l.b16 %v4475
        %v4916 = vunpack.c.h.b16 %v4475
        %v4917 = vunpack.c.l.b16 %v4476
        %v4918 = vunpack.c.h.b16 %v4476
        %v4919 = vunpack.c.l.b16 %v4477
        %v4920 = vunpack.c.h.b16 %v4477
        %v4921 = vunpack.c.l.b16 %v4478
        %v4922 = vunpack.c.h.b16 %v4478
        %v4923 = vunpack.c.l.b16 %v4479
        %v4924 = vunpack.c.h.b16 %v4479
        %v4925 = vunpack.c.l.b16 %v4480
        %v4926 = vunpack.c.h.b16 %v4480
        %v4927 = vunpack.c.l.b16 %v4481
        %v4928 = vunpack.c.h.b16 %v4481
        %v4929 = vunpack.c.l.b16 %v4482
        %v4930 = vunpack.c.h.b16 %v4482
        %v4931 = vunpack.c.l.b16 %v4483
        %v4932 = vunpack.c.h.b16 %v4483
        %v4933 = vunpack.c.l.b16 %v4484
        %v4934 = vunpack.c.h.b16 %v4484
        %v4935 = vunpack.c.l.b16 %v4485
        %v4936 = vunpack.c.h.b16 %v4485
        %v4937 = vunpack.c.l.b16 %v4486
        %v4938 = vunpack.c.h.b16 %v4486
        %v4939 = vunpack.c.l.b16 %v4487
        %v4940 = vunpack.c.h.b16 %v4487
        %v4941 = vunpack.c.l.b16 %v4488
        %v4942 = vunpack.c.h.b16 %v4488
        %v4943 = vunpack.c.l.b16 %v4489
        %v4944 = vunpack.c.h.b16 %v4489
        %v4945 = vunpack.c.l.b16 %v4490
        %v4946 = vunpack.c.h.b16 %v4490
        %v4947 = vunpack.c.l.b16 %v4491
        %v4948 = vunpack.c.h.b16 %v4491
        %v4949 = vunpack.c.l.b16 %v4492
        %v4950 = vunpack.c.h.b16 %v4492
        %v4951 = vunpack.c.l.b16 %v4493
        %v4952 = vunpack.c.h.b16 %v4493
        %v4953 = vunpack.c.l.b16 %v4494
        %v4954 = vunpack.c.h.b16 %v4494
        %v4955 = vunpack.c.l.b16 %v4495
        %v4956 = vunpack.c.h.b16 %v4495
        %v4957 = vunpack.c.l.b16 %v4496
        %v4958 = vunpack.c.h.b16 %v4496
        %v4959 = vunpack.c.l.b16 %v4497
        %v4960 = vunpack.c.h.b16 %v4497
        %v4961 = vunpack.c.l.b16 %v4498
        %v4962 = vunpack.c.h.b16 %v4498
        %v4963 = vunpack.c.l.b16 %v4499
        %v4964 = vunpack.c.h.b16 %v4499
        %v4965 = vunpack.c.l.b16 %v4500
        %v4966 = vunpack.c.h.b16 %v4500
        %v4967 = vunpack.c.l.b16 %v4501
        %v4968 = vunpack.c.h.b16 %v4501
        %v4969 = vunpack.c.l.b16 %v4502
        %v4970 = vunpack.c.h.b16 %v4502
        %v4971 = vunpack.c.l.b16 %v4503
        %v4972 = vunpack.c.h.b16 %v4503
        %v4973 = vunpack.c.l.b16 %v4504
        %v4974 = vunpack.c.h.b16 %v4504
        %v4975 = vunpack.c.l.b16 %v4505
        %v4976 = vunpack.c.h.b16 %v4505
        %v4977 = vunpack.c.l.b16 %v4506
        %v4978 = vunpack.c.h.b16 %v4506
        %v4979 = vunpack.c.l.b16 %v4507
        %v4980 = vunpack.c.h.b16 %v4507
        %v4981 = vunpack.c.l.b16 %v4508
        %v4982 = vunpack.c.h.b16 %v4508
        %v4983 = vunpack.c.l.b16 %v4509
        %v4984 = vunpack.c.h.b16 %v4509
        %v4985 = vunpack.c.l.b16 %v4510
        %v4986 = vunpack.c.h.b16 %v4510
        %v4987 = vunpack.c.l.b16 %v4511
        %v4988 = vunpack.c.h.b16 %v4511
        %v4989 = vunpack.c.l.b16 %v4512
        %v4990 = vunpack.c.h.b16 %v4512
        %v4991 = vunpack.c.l.b16 %v4513
        %v4992 = vunpack.c.h.b16 %v4513
        %v4993 = vunpack.c.l.b16 %v4514
        %v4994 = vunpack.c.h.b16 %v4514
        %v4995 = vunpack.c.l.b16 %v4515
        %v4996 = vunpack.c.h.b16 %v4515
        %v4997 = vunpack.c.l.b16 %v4516
        %v4998 = vunpack.c.h.b16 %v4516
        %v4999 = vunpack.c.l.b16 %v4517
        %v5000 = vunpack.c.h.b16 %v4517
        %v5001 = vunpack.c.l.b16 %v4518
        %v5002 = vunpack.c.h.b16 %v4518
        %v5003 = vunpack.c.l.b16 %v4519
        %v5004 = vunpack.c.h.b16 %v4519
        %v5005 = vunpack.c.l.b16 %v4520
        %v5006 = vunpack.c.h.b16 %v4520
        %v5007 = vunpack.c.l.b16 %v4521
        %v5008 = vunpack.c.h.b16 %v4521
        %v5009 = vunpack.c.l.b16 %v4522
        %v5010 = vunpack.c.h.b16 %v4522
        %v5011 = vunpack.c.l.b16 %v4523
        %v5012 = vunpack.c.h.b16 %v4523
        %v5013 = vunpack.c.l.b16 %v4524
        %v5014 = vunpack.c.h.b16 %v4524
        %v5015 = vunpack.c.l.b16 %v4525
        %v5016 = vunpack.c.h.b16 %v4525
        %v5017 = vunpack.c.l.b16 %v4526
        %v5018 = vunpack.c.h.b16 %v4526
        %v5019 = vunpack.c.l.b16 %v4527
        %v5020 = vunpack.c.h.b16 %v4527
        %v5021 = vunpack.c.l.b16 %v4528
        %v5022 = vunpack.c.h.b16 %v4528
        %v5023 = vunpack.c.l.b16 %v4529
        %v5024 = vunpack.c.h.b16 %v4529
        %v5025 = vunpack.c.l.b16 %v4530
        %v5026 = vunpack.c.h.b16 %v4530
        %v5027 = vunpack.c.l.b16 %v4531
        %v5028 = vunpack.c.h.b16 %v4531
        %v5029 = vunpack.c.l.b16 %v4532
        %v5030 = vunpack.c.h.b16 %v4532
        %v5031 = vunpack.c.l.b16 %v4533
        %v5032 = vunpack.c.h.b16 %v4533
        %v5033 = vunpack.c.l.b16 %v4534
        %v5034 = vunpack.c.h.b16 %v4534
        %v5035 = vunpack.c.l.b16 %v4535
        %v5036 = vunpack.c.h.b16 %v4535
        %v5037 = vunpack.c.l.b16 %v4536
        %v5038 = vunpack.c.h.b16 %v4536
        %v5039 = vunpack.c.l.b16 %v4537
        %v5040 = vunpack.c.h.b16 %v4537
        %v5041 = vunpack.c.l.b16 %v4538
        %v5042 = vunpack.c.h.b16 %v4538
        %v5043 = vunpack.c.l.b16 %v4539
        %v5044 = vunpack.c.h.b16 %v4539
        %v5045 = vunpack.c.l.b16 %v4540
        %v5046 = vunpack.c.h.b16 %v4540
        %v5047 = vunpack.c.l.b16 %v4541
        %v5048 = vunpack.c.h.b16 %v4541
        %v5049 = vunpack.c.l.b16 %v4542
        %v5050 = vunpack.c.h.b16 %v4542
        %v5051 = vunpack.c.l.b16 %v4543
        %v5052 = vunpack.c.h.b16 %v4543
        %v5053 = vunpack.c.l.b16 %v4544
        %v5054 = vunpack.c.h.b16 %v4544
        %v5055 = vunpack.c.l.b16 %v4545
        %v5056 = vunpack.c.h.b16 %v4545
        %v5057 = vunpack.c.l.b16 %v4546
        %v5058 = vunpack.c.h.b16 %v4546
        %v5059 = vpack.c.b16 %v4811, %v4803
        %v5060 = vpack.c.b16 %v4812, %v4804
        %v5061 = vpack.c.b16 %v4813, %v4805
        %v5062 = vpack.c.b16 %v4814, %v4806
        %v5063 = vpack.c.b16 %v4815, %v4807
        %v5064 = vpack.c.b16 %v4816, %v4808
        %v5065 = vpack.c.b16 %v4817, %v4809
        %v5066 = vpack.c.b16 %v4818, %v4810
        %v5067 = vpack.c.b16 %v4827, %v4819
        %v5068 = vpack.c.b16 %v4828, %v4820
        %v5069 = vpack.c.b16 %v4829, %v4821
        %v5070 = vpack.c.b16 %v4830, %v4822
        %v5071 = vpack.c.b16 %v4831, %v4823
        %v5072 = vpack.c.b16 %v4832, %v4824
        %v5073 = vpack.c.b16 %v4833, %v4825
        %v5074 = vpack.c.b16 %v4834, %v4826
        %v5075 = vpack.c.b16 %v4843, %v4835
        %v5076 = vpack.c.b16 %v4844, %v4836
        %v5077 = vpack.c.b16 %v4845, %v4837
        %v5078 = vpack.c.b16 %v4846, %v4838
        %v5079 = vpack.c.b16 %v4847, %v4839
        %v5080 = vpack.c.b16 %v4848, %v4840
        %v5081 = vpack.c.b16 %v4849, %v4841
        %v5082 = vpack.c.b16 %v4850, %v4842
        %v5083 = vpack.c.b16 %v4859, %v4851
        %v5084 = vpack.c.b16 %v4860, %v4852
        %v5085 = vpack.c.b16 %v4861, %v4853
        %v5086 = vpack.c.b16 %v4862, %v4854
        %v5087 = vpack.c.b16 %v4863, %v4855
        %v5088 = vpack.c.b16 %v4864, %v4856
        %v5089 = vpack.c.b16 %v4865, %v4857
        %v5090 = vpack.c.b16 %v4866, %v4858
        %v5091 = vpack.c.b16 %v4875, %v4867
        %v5092 = vpack.c.b16 %v4876, %v4868
        %v5093 = vpack.c.b16 %v4877, %v4869
        %v5094 = vpack.c.b16 %v4878, %v4870
        %v5095 = vpack.c.b16 %v4879, %v4871
        %v5096 = vpack.c.b16 %v4880, %v4872
        %v5097 = vpack.c.b16 %v4881, %v4873
        %v5098 = vpack.c.b16 %v4882, %v4874
        %v5099 = vpack.c.b16 %v4891, %v4883
        %v5100 = vpack.c.b16 %v4892, %v4884
        %v5101 = vpack.c.b16 %v4893, %v4885
        %v5102 = vpack.c.b16 %v4894, %v4886
        %v5103 = vpack.c.b16 %v4895, %v4887
        %v5104 = vpack.c.b16 %v4896, %v4888
        %v5105 = vpack.c.b16 %v4897, %v4889
        %v5106 = vpack.c.b16 %v4898, %v4890
        %v5107 = vpack.c.b16 %v4907, %v4899
        %v5108 = vpack.c.b16 %v4908, %v4900
        %v5109 = vpack.c.b16 %v4909, %v4901
        %v5110 = vpack.c.b16 %v4910, %v4902
        %v5111 = vpack.c.b16 %v4911, %v4903
        %v5112 = vpack.c.b16 %v4912, %v4904
        %v5113 = vpack.c.b16 %v4913, %v4905
        %v5114 = vpack.c.b16 %v4914, %v4906
        %v5115 = vpack.c.b16 %v4923, %v4915
        %v5116 = vpack.c.b16 %v4924, %v4916
        %v5117 = vpack.c.b16 %v4925, %v4917
        %v5118 = vpack.c.b16 %v4926, %v4918
        %v5119 = vpack.c.b16 %v4927, %v4919
        %v5120 = vpack.c.b16 %v4928, %v4920
        %v5121 = vpack.c.b16 %v4929, %v4921
        %v5122 = vpack.c.b16 %v4930, %v4922
        %v5123 = vpack.c.b16 %v4939, %v4931
        %v5124 = vpack.c.b16 %v4940, %v4932
        %v5125 = vpack.c.b16 %v4941, %v4933
        %v5126 = vpack.c.b16 %v4942, %v4934
        %v5127 = vpack.c.b16 %v4943, %v4935
        %v5128 = vpack.c.b16 %v4944, %v4936
        %v5129 = vpack.c.b16 %v4945, %v4937
        %v5130 = vpack.c.b16 %v4946, %v4938
        %v5131 = vpack.c.b16 %v4955, %v4947
        %v5132 = vpack.c.b16 %v4956, %v4948
        %v5133 = vpack.c.b16 %v4957, %v4949
        %v5134 = vpack.c.b16 %v4958, %v4950
        %v5135 = vpack.c.b16 %v4959, %v4951
        %v5136 = vpack.c.b16 %v4960, %v4952
        %v5137 = vpack.c.b16 %v4961, %v4953
        %v5138 = vpack.c.b16 %v4962, %v4954
        %v5139 = vpack.c.b16 %v4971, %v4963
        %v5140 = vpack.c.b16 %v4972, %v4964
        %v5141 = vpack.c.b16 %v4973, %v4965
        %v5142 = vpack.c.b16 %v4974, %v4966
        %v5143 = vpack.c.b16 %v4975, %v4967
        %v5144 = vpack.c.b16 %v4976, %v4968
        %v5145 = vpack.c.b16 %v4977, %v4969
        %v5146 = vpack.c.b16 %v4978, %v4970
        %v5147 = vpack.c.b16 %v4987, %v4979
        %v5148 = vpack.c.b16 %v4988, %v4980
        %v5149 = vpack.c.b16 %v4989, %v4981
        %v5150 = vpack.c.b16 %v4990, %v4982
        %v5151 = vpack.c.b16 %v4991, %v4983
        %v5152 = vpack.c.b16 %v4992, %v4984
        %v5153 = vpack.c.b16 %v4993, %v4985
        %v5154 = vpack.c.b16 %v4994, %v4986
        %v5155 = vpack.c.b16 %v5003, %v4995
        %v5156 = vpack.c.b16 %v5004, %v4996
        %v5157 = vpack.c.b16 %v5005, %v4997
        %v5158 = vpack.c.b16 %v5006, %v4998
        %v5159 = vpack.c.b16 %v5007, %v4999
        %v5160 = vpack.c.b16 %v5008, %v5000
        %v5161 = vpack.c.b16 %v5009, %v5001
        %v5162 = vpack.c.b16 %v5010, %v5002
        %v5163 = vpack.c.b16 %v5019, %v5011
        %v5164 = vpack.c.b16 %v5020, %v5012
        %v5165 = vpack.c.b16 %v5021, %v5013
        %v5166 = vpack.c.b16 %v5022, %v5014
        %v5167 = vpack.c.b16 %v5023, %v5015
        %v5168 = vpack.c.b16 %v5024, %v5016
        %v5169 = vpack.c.b16 %v5025, %v5017
        %v5170 = vpack.c.b16 %v5026, %v5018
        %v5171 = vpack.c.b16 %v5035, %v5027
        %v5172 = vpack.c.b16 %v5036, %v5028
        %v5173 = vpack.c.b16 %v5037, %v5029
        %v5174 = vpack.c.b16 %v5038, %v5030
        %v5175 = vpack.c.b16 %v5039, %v5031
        %v5176 = vpack.c.b16 %v5040, %v5032
        %v5177 = vpack.c.b16 %v5041, %v5033
        %v5178 = vpack.c.b16 %v5042, %v5034
        %v5179 = vpack.c.b16 %v5051, %v5043
        %v5180 = vpack.c.b16 %v5052, %v5044
        %v5181 = vpack.c.b16 %v5053, %v5045
        %v5182 = vpack.c.b16 %v5054, %v5046
        %v5183 = vpack.c.b16 %v5055, %v5047
        %v5184 = vpack.c.b16 %v5056, %v5048
        %v5185 = vpack.c.b16 %v5057, %v5049
        %v5186 = vpack.c.b16 %v5058, %v5050
        %v5443 = vunpack.c.l.b16 %v4547
        %v5444 = vunpack.c.l.b16 %v4548
        %v5445 = vunpack.c.l.b16 %v4549
        %v5446 = vunpack.c.l.b16 %v4550
        %v5447 = vunpack.c.l.b16 %v4551
        %v5448 = vunpack.c.l.b16 %v4552
        %v5449 = vunpack.c.l.b16 %v4553
        %v5450 = vunpack.c.l.b16 %v4554
        %v5451 = vunpack.c.l.b16 %v4555
        %v5452 = vunpack.c.l.b16 %v4556
        %v5453 = vunpack.c.l.b16 %v4557
        %v5454 = vunpack.c.l.b16 %v4558
        %v5455 = vunpack.c.l.b16 %v4559
        %v5456 = vunpack.c.l.b16 %v4560
        %v5457 = vunpack.c.l.b16 %v4561
        %v5458 = vunpack.c.l.b16 %v4562
        %v5459 = vunpack.c.l.b16 %v4563
        %v5460 = vunpack.c.l.b16 %v4564
        %v5461 = vunpack.c.l.b16 %v4565
        %v5462 = vunpack.c.l.b16 %v4566
        %v5463 = vunpack.c.l.b16 %v4567
        %v5464 = vunpack.c.l.b16 %v4568
        %v5465 = vunpack.c.l.b16 %v4569
        %v5466 = vunpack.c.l.b16 %v4570
        %v5467 = vunpack.c.l.b16 %v4571
        %v5468 = vunpack.c.l.b16 %v4572
        %v5469 = vunpack.c.l.b16 %v4573
        %v5470 = vunpack.c.l.b16 %v4574
        %v5471 = vunpack.c.l.b16 %v4575
        %v5472 = vunpack.c.l.b16 %v4576
        %v5473 = vunpack.c.l.b16 %v4577
        %v5474 = vunpack.c.l.b16 %v4578
        %v5475 = vunpack.c.l.b16 %v4579
        %v5476 = vunpack.c.l.b16 %v4580
        %v5477 = vunpack.c.l.b16 %v4581
        %v5478 = vunpack.c.l.b16 %v4582
        %v5479 = vunpack.c.l.b16 %v4583
        %v5480 = vunpack.c.l.b16 %v4584
        %v5481 = vunpack.c.l.b16 %v4585
        %v5482 = vunpack.c.l.b16 %v4586
        %v5483 = vunpack.c.l.b16 %v4587
        %v5484 = vunpack.c.l.b16 %v4588
        %v5485 = vunpack.c.l.b16 %v4589
        %v5486 = vunpack.c.l.b16 %v4590
        %v5487 = vunpack.c.l.b16 %v4591
        %v5488 = vunpack.c.l.b16 %v4592
        %v5489 = vunpack.c.l.b16 %v4593
        %v5490 = vunpack.c.l.b16 %v4594
        %v5491 = vunpack.c.l.b16 %v4595
        %v5492 = vunpack.c.l.b16 %v4596
        %v5493 = vunpack.c.l.b16 %v4597
        %v5494 = vunpack.c.l.b16 %v4598
        %v5495 = vunpack.c.l.b16 %v4599
        %v5496 = vunpack.c.l.b16 %v4600
        %v5497 = vunpack.c.l.b16 %v4601
        %v5498 = vunpack.c.l.b16 %v4602
        %v5499 = vunpack.c.l.b16 %v4603
        %v5500 = vunpack.c.l.b16 %v4604
        %v5501 = vunpack.c.l.b16 %v4605
        %v5502 = vunpack.c.l.b16 %v4606
        %v5503 = vunpack.c.l.b16 %v4607
        %v5504 = vunpack.c.l.b16 %v4608
        %v5505 = vunpack.c.l.b16 %v4609
        %v5506 = vunpack.c.l.b16 %v4610
        %v5507 = vunpack.c.l.b16 %v4611
        %v5508 = vunpack.c.l.b16 %v4612
        %v5509 = vunpack.c.l.b16 %v4613
        %v5510 = vunpack.c.l.b16 %v4614
        %v5511 = vunpack.c.l.b16 %v4615
        %v5512 = vunpack.c.l.b16 %v4616
        %v5513 = vunpack.c.l.b16 %v4617
        %v5514 = vunpack.c.l.b16 %v4618
        %v5515 = vunpack.c.l.b16 %v4619
        %v5516 = vunpack.c.l.b16 %v4620
        %v5517 = vunpack.c.l.b16 %v4621
        %v5518 = vunpack.c.l.b16 %v4622
        %v5519 = vunpack.c.l.b16 %v4623
        %v5520 = vunpack.c.l.b16 %v4624
        %v5521 = vunpack.c.l.b16 %v4625
        %v5522 = vunpack.c.l.b16 %v4626
        %v5523 = vunpack.c.l.b16 %v4627
        %v5524 = vunpack.c.l.b16 %v4628
        %v5525 = vunpack.c.l.b16 %v4629
        %v5526 = vunpack.c.l.b16 %v4630
        %v5527 = vunpack.c.l.b16 %v4631
        %v5528 = vunpack.c.l.b16 %v4632
        %v5529 = vunpack.c.l.b16 %v4633
        %v5530 = vunpack.c.l.b16 %v4634
        %v5531 = vunpack.c.l.b16 %v4635
        %v5532 = vunpack.c.l.b16 %v4636
        %v5533 = vunpack.c.l.b16 %v4637
        %v5534 = vunpack.c.l.b16 %v4638
        %v5535 = vunpack.c.l.b16 %v4639
        %v5536 = vunpack.c.l.b16 %v4640
        %v5537 = vunpack.c.l.b16 %v4641
        %v5538 = vunpack.c.l.b16 %v4642
        %v5539 = vunpack.c.l.b16 %v4643
        %v5540 = vunpack.c.l.b16 %v4644
        %v5541 = vunpack.c.l.b16 %v4645
        %v5542 = vunpack.c.l.b16 %v4646
        %v5543 = vunpack.c.l.b16 %v4647
        %v5544 = vunpack.c.l.b16 %v4648
        %v5545 = vunpack.c.l.b16 %v4649
        %v5546 = vunpack.c.l.b16 %v4650
        %v5547 = vunpack.c.l.b16 %v4651
        %v5548 = vunpack.c.l.b16 %v4652
        %v5549 = vunpack.c.l.b16 %v4653
        %v5550 = vunpack.c.l.b16 %v4654
        %v5551 = vunpack.c.l.b16 %v4655
        %v5552 = vunpack.c.l.b16 %v4656
        %v5553 = vunpack.c.l.b16 %v4657
        %v5554 = vunpack.c.l.b16 %v4658
        %v5555 = vunpack.c.l.b16 %v4659
        %v5556 = vunpack.c.l.b16 %v4660
        %v5557 = vunpack.c.l.b16 %v4661
        %v5558 = vunpack.c.l.b16 %v4662
        %v5559 = vunpack.c.l.b16 %v4663
        %v5560 = vunpack.c.l.b16 %v4664
        %v5561 = vunpack.c.l.b16 %v4665
        %v5562 = vunpack.c.l.b16 %v4666
        %v5563 = vunpack.c.l.b16 %v4667
        %v5564 = vunpack.c.l.b16 %v4668
        %v5565 = vunpack.c.l.b16 %v4669
        %v5566 = vunpack.c.l.b16 %v4670
        %v5567 = vunpack.c.l.b16 %v4671
        %v5568 = vunpack.c.l.b16 %v4672
        %v5569 = vunpack.c.l.b16 %v4673
        %v5570 = vunpack.c.l.b16 %v4674
        %v5571 = vpack.c.b16 %v5444, %v5443
        %v5572 = vpack.c.b16 %v5446, %v5445
        %v5573 = vpack.c.b16 %v5448, %v5447
        %v5574 = vpack.c.b16 %v5450, %v5449
        %v5575 = vpack.c.b16 %v5452, %v5451
        %v5576 = vpack.c.b16 %v5454, %v5453
        %v5577 = vpack.c.b16 %v5456, %v5455
        %v5578 = vpack.c.b16 %v5458, %v5457
        %v5579 = vpack.c.b16 %v5460, %v5459
        %v5580 = vpack.c.b16 %v5462, %v5461
        %v5581 = vpack.c.b16 %v5464, %v5463
        %v5582 = vpack.c.b16 %v5466, %v5465
        %v5583 = vpack.c.b16 %v5468, %v5467
        %v5584 = vpack.c.b16 %v5470, %v5469
        %v5585 = vpack.c.b16 %v5472, %v5471
        %v5586 = vpack.c.b16 %v5474, %v5473
        %v5587 = vpack.c.b16 %v5476, %v5475
        %v5588 = vpack.c.b16 %v5478, %v5477
        %v5589 = vpack.c.b16 %v5480, %v5479
        %v5590 = vpack.c.b16 %v5482, %v5481
        %v5591 = vpack.c.b16 %v5484, %v5483
        %v5592 = vpack.c.b16 %v5486, %v5485
        %v5593 = vpack.c.b16 %v5488, %v5487
        %v5594 = vpack.c.b16 %v5490, %v5489
        %v5595 = vpack.c.b16 %v5492, %v5491
        %v5596 = vpack.c.b16 %v5494, %v5493
        %v5597 = vpack.c.b16 %v5496, %v5495
        %v5598 = vpack.c.b16 %v5498, %v5497
        %v5599 = vpack.c.b16 %v5500, %v5499
        %v5600 = vpack.c.b16 %v5502, %v5501
        %v5601 = vpack.c.b16 %v5504, %v5503
        %v5602 = vpack.c.b16 %v5506, %v5505
        %v5603 = vpack.c.b16 %v5508, %v5507
        %v5604 = vpack.c.b16 %v5510, %v5509
        %v5605 = vpack.c.b16 %v5512, %v5511
        %v5606 = vpack.c.b16 %v5514, %v5513
        %v5607 = vpack.c.b16 %v5516, %v5515
        %v5608 = vpack.c.b16 %v5518, %v5517
        %v5609 = vpack.c.b16 %v5520, %v5519
        %v5610 = vpack.c.b16 %v5522, %v5521
        %v5611 = vpack.c.b16 %v5524, %v5523
        %v5612 = vpack.c.b16 %v5526, %v5525
        %v5613 = vpack.c.b16 %v5528, %v5527
        %v5614 = vpack.c.b16 %v5530, %v5529
        %v5615 = vpack.c.b16 %v5532, %v5531
        %v5616 = vpack.c.b16 %v5534, %v5533
        %v5617 = vpack.c.b16 %v5536, %v5535
        %v5618 = vpack.c.b16 %v5538, %v5537
        %v5619 = vpack.c.b16 %v5540, %v5539
        %v5620 = vpack.c.b16 %v5542, %v5541
        %v5621 = vpack.c.b16 %v5544, %v5543
        %v5622 = vpack.c.b16 %v5546, %v5545
        %v5623 = vpack.c.b16 %v5548, %v5547
        %v5624 = vpack.c.b16 %v5550, %v5549
        %v5625 = vpack.c.b16 %v5552, %v5551
        %v5626 = vpack.c.b16 %v5554, %v5553
        %v5627 = vpack.c.b16 %v5556, %v5555
        %v5628 = vpack.c.b16 %v5558, %v5557
        %v5629 = vpack.c.b16 %v5560, %v5559
        %v5630 = vpack.c.b16 %v5562, %v5561
        %v5631 = vpack.c.b16 %v5564, %v5563
        %v5632 = vpack.c.b16 %v5566, %v5565
        %v5633 = vpack.c.b16 %v5568, %v5567
        %v5634 = vpack.c.b16 %v5570, %v5569
        %5699 = vmatpush.bf16.msra.mxu0 %v5578
        %5700 = vmatpush.bf16.msra.mxu0 %v5577
        %5701 = vmatpush.bf16.msra.mxu0 %v5576
        %5702 = vmatpush.bf16.msra.mxu0 %v5575
        %5703 = vmatpush.bf16.msra.mxu0 %v5574
        %5704 = vmatpush.bf16.msra.mxu0 %v5573
        %5705 = vmatpush.bf16.msra.mxu0 %v5572
        %5706 = vmatpush.bf16.msra.mxu0 %v5571
        %5707 = vmatmul.bf16.gmra.mxu0 %v5059
        %v5708 = vpop.f32.mrf.mxu0
        %v5709 = vadd.f32 0.0, %v5708
        %v5710 = vpop.f32.mrf.mxu0
        %v5711 = vadd.f32 0.0, %v5710
        %5712 = vmatmul.bf16.gmra.mxu0 %v5067
        %v5713 = vpop.f32.mrf.mxu0
        %v5714 = vadd.f32 0.0, %v5713
        %v5715 = vpop.f32.mrf.mxu0
        %v5716 = vadd.f32 0.0, %v5715
        %5717 = vmatmul.bf16.gmra.mxu0 %v5075
        %v5718 = vpop.f32.mrf.mxu0
        %v5719 = vadd.f32 0.0, %v5718
        %v5720 = vpop.f32.mrf.mxu0
        %v5721 = vadd.f32 0.0, %v5720
        %5722 = vmatmul.bf16.gmra.mxu0 %v5083
        %v5723 = vpop.f32.mrf.mxu0
        %v5724 = vadd.f32 0.0, %v5723
        %v5725 = vpop.f32.mrf.mxu0
        %v5726 = vadd.f32 0.0, %v5725
        %5727 = vmatmul.bf16.gmra.mxu0 %v5091
        %v5728 = vpop.f32.mrf.mxu0
        %v5729 = vadd.f32 0.0, %v5728
        %v5730 = vpop.f32.mrf.mxu0
        %v5731 = vadd.f32 0.0, %v5730
        %5732 = vmatmul.bf16.gmra.mxu0 %v5099
        %v5733 = vpop.f32.mrf.mxu0
        %v5734 = vadd.f32 0.0, %v5733
        %v5735 = vpop.f32.mrf.mxu0
        %v5736 = vadd.f32 0.0, %v5735
        %5737 = vmatmul.bf16.gmra.mxu0 %v5107
        %v5738 = vpop.f32.mrf.mxu0
        %v5739 = vadd.f32 0.0, %v5738
        %v5740 = vpop.f32.mrf.mxu0
        %v5741 = vadd.f32 0.0, %v5740
        %5742 = vmatmul.bf16.gmra.mxu0 %v5115
        %v5743 = vpop.f32.mrf.mxu0
        %v5744 = vadd.f32 0.0, %v5743
        %v5745 = vpop.f32.mrf.mxu0
        %v5746 = vadd.f32 0.0, %v5745
        %5747 = vmatmul.bf16.gmra.mxu0 %v5123
        %v5748 = vpop.f32.mrf.mxu0
        %v5749 = vadd.f32 0.0, %v5748
        %v5750 = vpop.f32.mrf.mxu0
        %v5751 = vadd.f32 0.0, %v5750
        %5752 = vmatmul.bf16.gmra.mxu0 %v5131
        %v5753 = vpop.f32.mrf.mxu0
        %v5754 = vadd.f32 0.0, %v5753
        %v5755 = vpop.f32.mrf.mxu0
        %v5756 = vadd.f32 0.0, %v5755
        %5757 = vmatmul.bf16.gmra.mxu0 %v5139
        %v5758 = vpop.f32.mrf.mxu0
        %v5759 = vadd.f32 0.0, %v5758
        %v5760 = vpop.f32.mrf.mxu0
        %v5761 = vadd.f32 0.0, %v5760
        %5762 = vmatmul.bf16.gmra.mxu0 %v5147
        %v5763 = vpop.f32.mrf.mxu0
        %v5764 = vadd.f32 0.0, %v5763
        %v5765 = vpop.f32.mrf.mxu0
        %v5766 = vadd.f32 0.0, %v5765
        %5767 = vmatmul.bf16.gmra.mxu0 %v5155
        %v5768 = vpop.f32.mrf.mxu0
        %v5769 = vadd.f32 0.0, %v5768
        %v5770 = vpop.f32.mrf.mxu0
        %v5771 = vadd.f32 0.0, %v5770
        %5772 = vmatmul.bf16.gmra.mxu0 %v5163
        %v5773 = vpop.f32.mrf.mxu0
        %v5774 = vadd.f32 0.0, %v5773
        %v5775 = vpop.f32.mrf.mxu0
        %v5776 = vadd.f32 0.0, %v5775
        %5777 = vmatmul.bf16.gmra.mxu0 %v5171
        %v5778 = vpop.f32.mrf.mxu0
        %v5779 = vadd.f32 0.0, %v5778
        %v5780 = vpop.f32.mrf.mxu0
        %v5781 = vadd.f32 0.0, %v5780
        %5782 = vmatmul.bf16.gmra.mxu0 %v5179
        %v5783 = vpop.f32.mrf.mxu0
        %v5784 = vadd.f32 0.0, %v5783
        %v5785 = vpop.f32.mrf.mxu0
        %v5786 = vadd.f32 0.0, %v5785
        %5787 = vdwg.mxu0
        %5788 = vmatpush.bf16.msra.mxu0 %v5586
        %5789 = vmatpush.bf16.msra.mxu0 %v5585
        %5790 = vmatpush.bf16.msra.mxu0 %v5584
        %5791 = vmatpush.bf16.msra.mxu0 %v5583
        %5792 = vmatpush.bf16.msra.mxu0 %v5582
        %5793 = vmatpush.bf16.msra.mxu0 %v5581
        %5794 = vmatpush.bf16.msra.mxu0 %v5580
        %5795 = vmatpush.bf16.msra.mxu0 %v5579
        %5796 = vmatmul.bf16.gmra.mxu0 %v5060
        %v5797 = vpop.f32.mrf.mxu0
        %v5798 = vadd.f32 %v5709, %v5797
        %v5799 = vpop.f32.mrf.mxu0
        %v5800 = vadd.f32 %v5711, %v5799
        %5801 = vmatmul.bf16.gmra.mxu0 %v5068
        %v5802 = vpop.f32.mrf.mxu0
        %v5803 = vadd.f32 %v5714, %v5802
        %v5804 = vpop.f32.mrf.mxu0
        %v5805 = vadd.f32 %v5716, %v5804
        %5806 = vmatmul.bf16.gmra.mxu0 %v5076
        %v5807 = vpop.f32.mrf.mxu0
        %v5808 = vadd.f32 %v5719, %v5807
        %v5809 = vpop.f32.mrf.mxu0
        %v5810 = vadd.f32 %v5721, %v5809
        %5811 = vmatmul.bf16.gmra.mxu0 %v5084
        %v5812 = vpop.f32.mrf.mxu0
        %v5813 = vadd.f32 %v5724, %v5812
        %v5814 = vpop.f32.mrf.mxu0
        %v5815 = vadd.f32 %v5726, %v5814
        %5816 = vmatmul.bf16.gmra.mxu0 %v5092
        %v5817 = vpop.f32.mrf.mxu0
        %v5818 = vadd.f32 %v5729, %v5817
        %v5819 = vpop.f32.mrf.mxu0
        %v5820 = vadd.f32 %v5731, %v5819
        %5821 = vmatmul.bf16.gmra.mxu0 %v5100
        %v5822 = vpop.f32.mrf.mxu0
        %v5823 = vadd.f32 %v5734, %v5822
        %v5824 = vpop.f32.mrf.mxu0
        %v5825 = vadd.f32 %v5736, %v5824
        %5826 = vmatmul.bf16.gmra.mxu0 %v5108
        %v5827 = vpop.f32.mrf.mxu0
        %v5828 = vadd.f32 %v5739, %v5827
        %v5829 = vpop.f32.mrf.mxu0
        %v5830 = vadd.f32 %v5741, %v5829
        %5831 = vmatmul.bf16.gmra.mxu0 %v5116
        %v5832 = vpop.f32.mrf.mxu0
        %v5833 = vadd.f32 %v5744, %v5832
        %v5834 = vpop.f32.mrf.mxu0
        %v5835 = vadd.f32 %v5746, %v5834
        %5836 = vmatmul.bf16.gmra.mxu0 %v5124
        %v5837 = vpop.f32.mrf.mxu0
        %v5838 = vadd.f32 %v5749, %v5837
        %v5839 = vpop.f32.mrf.mxu0
        %v5840 = vadd.f32 %v5751, %v5839
        %5841 = vmatmul.bf16.gmra.mxu0 %v5132
        %v5842 = vpop.f32.mrf.mxu0
        %v5843 = vadd.f32 %v5754, %v5842
        %v5844 = vpop.f32.mrf.mxu0
        %v5845 = vadd.f32 %v5756, %v5844
        %5846 = vmatmul.bf16.gmra.mxu0 %v5140
        %v5847 = vpop.f32.mrf.mxu0
        %v5848 = vadd.f32 %v5759, %v5847
        %v5849 = vpop.f32.mrf.mxu0
        %v5850 = vadd.f32 %v5761, %v5849
        %5851 = vmatmul.bf16.gmra.mxu0 %v5148
        %v5852 = vpop.f32.mrf.mxu0
        %v5853 = vadd.f32 %v5764, %v5852
        %v5854 = vpop.f32.mrf.mxu0
        %v5855 = vadd.f32 %v5766, %v5854
        %5856 = vmatmul.bf16.gmra.mxu0 %v5156
        %v5857 = vpop.f32.mrf.mxu0
        %v5858 = vadd.f32 %v5769, %v5857
        %v5859 = vpop.f32.mrf.mxu0
        %v5860 = vadd.f32 %v5771, %v5859
        %5861 = vmatmul.bf16.gmra.mxu0 %v5164
        %v5862 = vpop.f32.mrf.mxu0
        %v5863 = vadd.f32 %v5774, %v5862
        %v5864 = vpop.f32.mrf.mxu0
        %v5865 = vadd.f32 %v5776, %v5864
        %5866 = vmatmul.bf16.gmra.mxu0 %v5172
        %v5867 = vpop.f32.mrf.mxu0
        %v5868 = vadd.f32 %v5779, %v5867
        %v5869 = vpop.f32.mrf.mxu0
        %v5870 = vadd.f32 %v5781, %v5869
        %5871 = vmatmul.bf16.gmra.mxu0 %v5180
        %v5872 = vpop.f32.mrf.mxu0
        %v5873 = vadd.f32 %v5784, %v5872
        %v5874 = vpop.f32.mrf.mxu0
        %v5875 = vadd.f32 %v5786, %v5874
        %5876 = vdwg.mxu0
        %5877 = vmatpush.bf16.msra.mxu0 %v5594
        %5878 = vmatpush.bf16.msra.mxu0 %v5593
        %5879 = vmatpush.bf16.msra.mxu0 %v5592
        %5880 = vmatpush.bf16.msra.mxu0 %v5591
        %5881 = vmatpush.bf16.msra.mxu0 %v5590
        %5882 = vmatpush.bf16.msra.mxu0 %v5589
        %5883 = vmatpush.bf16.msra.mxu0 %v5588
        %5884 = vmatpush.bf16.msra.mxu0 %v5587
        %5885 = vmatmul.bf16.gmra.mxu0 %v5061
        %v5886 = vpop.f32.mrf.mxu0
        %v5887 = vadd.f32 %v5798, %v5886
        %v5888 = vpop.f32.mrf.mxu0
        %v5889 = vadd.f32 %v5800, %v5888
        %5890 = vmatmul.bf16.gmra.mxu0 %v5069
        %v5891 = vpop.f32.mrf.mxu0
        %v5892 = vadd.f32 %v5803, %v5891
        %v5893 = vpop.f32.mrf.mxu0
        %v5894 = vadd.f32 %v5805, %v5893
        %5895 = vmatmul.bf16.gmra.mxu0 %v5077
        %v5896 = vpop.f32.mrf.mxu0
        %v5897 = vadd.f32 %v5808, %v5896
        %v5898 = vpop.f32.mrf.mxu0
        %v5899 = vadd.f32 %v5810, %v5898
        %5900 = vmatmul.bf16.gmra.mxu0 %v5085
        %v5901 = vpop.f32.mrf.mxu0
        %v5902 = vadd.f32 %v5813, %v5901
        %v5903 = vpop.f32.mrf.mxu0
        %v5904 = vadd.f32 %v5815, %v5903
        %5905 = vmatmul.bf16.gmra.mxu0 %v5093
        %v5906 = vpop.f32.mrf.mxu0
        %v5907 = vadd.f32 %v5818, %v5906
        %v5908 = vpop.f32.mrf.mxu0
        %v5909 = vadd.f32 %v5820, %v5908
        %5910 = vmatmul.bf16.gmra.mxu0 %v5101
        %v5911 = vpop.f32.mrf.mxu0
        %v5912 = vadd.f32 %v5823, %v5911
        %v5913 = vpop.f32.mrf.mxu0
        %v5914 = vadd.f32 %v5825, %v5913
        %5915 = vmatmul.bf16.gmra.mxu0 %v5109
        %v5916 = vpop.f32.mrf.mxu0
        %v5917 = vadd.f32 %v5828, %v5916
        %v5918 = vpop.f32.mrf.mxu0
        %v5919 = vadd.f32 %v5830, %v5918
        %5920 = vmatmul.bf16.gmra.mxu0 %v5117
        %v5921 = vpop.f32.mrf.mxu0
        %v5922 = vadd.f32 %v5833, %v5921
        %v5923 = vpop.f32.mrf.mxu0
        %v5924 = vadd.f32 %v5835, %v5923
        %5925 = vmatmul.bf16.gmra.mxu0 %v5125
        %v5926 = vpop.f32.mrf.mxu0
        %v5927 = vadd.f32 %v5838, %v5926
        %v5928 = vpop.f32.mrf.mxu0
        %v5929 = vadd.f32 %v5840, %v5928
        %5930 = vmatmul.bf16.gmra.mxu0 %v5133
        %v5931 = vpop.f32.mrf.mxu0
        %v5932 = vadd.f32 %v5843, %v5931
        %v5933 = vpop.f32.mrf.mxu0
        %v5934 = vadd.f32 %v5845, %v5933
        %5935 = vmatmul.bf16.gmra.mxu0 %v5141
        %v5936 = vpop.f32.mrf.mxu0
        %v5937 = vadd.f32 %v5848, %v5936
        %v5938 = vpop.f32.mrf.mxu0
        %v5939 = vadd.f32 %v5850, %v5938
        %5940 = vmatmul.bf16.gmra.mxu0 %v5149
        %v5941 = vpop.f32.mrf.mxu0
        %v5942 = vadd.f32 %v5853, %v5941
        %v5943 = vpop.f32.mrf.mxu0
        %v5944 = vadd.f32 %v5855, %v5943
        %5945 = vmatmul.bf16.gmra.mxu0 %v5157
        %v5946 = vpop.f32.mrf.mxu0
        %v5947 = vadd.f32 %v5858, %v5946
        %v5948 = vpop.f32.mrf.mxu0
        %v5949 = vadd.f32 %v5860, %v5948
        %5950 = vmatmul.bf16.gmra.mxu0 %v5165
        %v5951 = vpop.f32.mrf.mxu0
        %v5952 = vadd.f32 %v5863, %v5951
        %v5953 = vpop.f32.mrf.mxu0
        %v5954 = vadd.f32 %v5865, %v5953
        %5955 = vmatmul.bf16.gmra.mxu0 %v5173
        %v5956 = vpop.f32.mrf.mxu0
        %v5957 = vadd.f32 %v5868, %v5956
        %v5958 = vpop.f32.mrf.mxu0
        %v5959 = vadd.f32 %v5870, %v5958
        %5960 = vmatmul.bf16.gmra.mxu0 %v5181
        %v5961 = vpop.f32.mrf.mxu0
        %v5962 = vadd.f32 %v5873, %v5961
        %v5963 = vpop.f32.mrf.mxu0
        %v5964 = vadd.f32 %v5875, %v5963
        %5965 = vdwg.mxu0
        %5966 = vmatpush.bf16.msra.mxu0 %v5602
        %5967 = vmatpush.bf16.msra.mxu0 %v5601
        %5968 = vmatpush.bf16.msra.mxu0 %v5600
        %5969 = vmatpush.bf16.msra.mxu0 %v5599
        %5970 = vmatpush.bf16.msra.mxu0 %v5598
        %5971 = vmatpush.bf16.msra.mxu0 %v5597
        %5972 = vmatpush.bf16.msra.mxu0 %v5596
        %5973 = vmatpush.bf16.msra.mxu0 %v5595
        %5974 = vmatmul.bf16.gmra.mxu0 %v5062
        %v5975 = vpop.f32.mrf.mxu0
        %v5976 = vadd.f32 %v5887, %v5975
        %v5977 = vpop.f32.mrf.mxu0
        %v5978 = vadd.f32 %v5889, %v5977
        %5979 = vmatmul.bf16.gmra.mxu0 %v5070
        %v5980 = vpop.f32.mrf.mxu0
        %v5981 = vadd.f32 %v5892, %v5980
        %v5982 = vpop.f32.mrf.mxu0
        %v5983 = vadd.f32 %v5894, %v5982
        %5984 = vmatmul.bf16.gmra.mxu0 %v5078
        %v5985 = vpop.f32.mrf.mxu0
        %v5986 = vadd.f32 %v5897, %v5985
        %v5987 = vpop.f32.mrf.mxu0
        %v5988 = vadd.f32 %v5899, %v5987
        %5989 = vmatmul.bf16.gmra.mxu0 %v5086
        %v5990 = vpop.f32.mrf.mxu0
        %v5991 = vadd.f32 %v5902, %v5990
        %v5992 = vpop.f32.mrf.mxu0
        %v5993 = vadd.f32 %v5904, %v5992
        %5994 = vmatmul.bf16.gmra.mxu0 %v5094
        %v5995 = vpop.f32.mrf.mxu0
        %v5996 = vadd.f32 %v5907, %v5995
        %v5997 = vpop.f32.mrf.mxu0
        %v5998 = vadd.f32 %v5909, %v5997
        %5999 = vmatmul.bf16.gmra.mxu0 %v5102
        %v6000 = vpop.f32.mrf.mxu0
        %v6001 = vadd.f32 %v5912, %v6000
        %v6002 = vpop.f32.mrf.mxu0
        %v6003 = vadd.f32 %v5914, %v6002
        %6004 = vmatmul.bf16.gmra.mxu0 %v5110
        %v6005 = vpop.f32.mrf.mxu0
        %v6006 = vadd.f32 %v5917, %v6005
        %v6007 = vpop.f32.mrf.mxu0
        %v6008 = vadd.f32 %v5919, %v6007
        %6009 = vmatmul.bf16.gmra.mxu0 %v5118
        %v6010 = vpop.f32.mrf.mxu0
        %v6011 = vadd.f32 %v5922, %v6010
        %v6012 = vpop.f32.mrf.mxu0
        %v6013 = vadd.f32 %v5924, %v6012
        %6014 = vmatmul.bf16.gmra.mxu0 %v5126
        %v6015 = vpop.f32.mrf.mxu0
        %v6016 = vadd.f32 %v5927, %v6015
        %v6017 = vpop.f32.mrf.mxu0
        %v6018 = vadd.f32 %v5929, %v6017
        %6019 = vmatmul.bf16.gmra.mxu0 %v5134
        %v6020 = vpop.f32.mrf.mxu0
        %v6021 = vadd.f32 %v5932, %v6020
        %v6022 = vpop.f32.mrf.mxu0
        %v6023 = vadd.f32 %v5934, %v6022
        %6024 = vmatmul.bf16.gmra.mxu0 %v5142
        %v6025 = vpop.f32.mrf.mxu0
        %v6026 = vadd.f32 %v5937, %v6025
        %v6027 = vpop.f32.mrf.mxu0
        %v6028 = vadd.f32 %v5939, %v6027
        %6029 = vmatmul.bf16.gmra.mxu0 %v5150
        %v6030 = vpop.f32.mrf.mxu0
        %v6031 = vadd.f32 %v5942, %v6030
        %v6032 = vpop.f32.mrf.mxu0
        %v6033 = vadd.f32 %v5944, %v6032
        %6034 = vmatmul.bf16.gmra.mxu0 %v5158
        %v6035 = vpop.f32.mrf.mxu0
        %v6036 = vadd.f32 %v5947, %v6035
        %v6037 = vpop.f32.mrf.mxu0
        %v6038 = vadd.f32 %v5949, %v6037
        %6039 = vmatmul.bf16.gmra.mxu0 %v5166
        %v6040 = vpop.f32.mrf.mxu0
        %v6041 = vadd.f32 %v5952, %v6040
        %v6042 = vpop.f32.mrf.mxu0
        %v6043 = vadd.f32 %v5954, %v6042
        %6044 = vmatmul.bf16.gmra.mxu0 %v5174
        %v6045 = vpop.f32.mrf.mxu0
        %v6046 = vadd.f32 %v5957, %v6045
        %v6047 = vpop.f32.mrf.mxu0
        %v6048 = vadd.f32 %v5959, %v6047
        %6049 = vmatmul.bf16.gmra.mxu0 %v5182
        %v6050 = vpop.f32.mrf.mxu0
        %v6051 = vadd.f32 %v5962, %v6050
        %v6052 = vpop.f32.mrf.mxu0
        %v6053 = vadd.f32 %v5964, %v6052
        %6054 = vdwg.mxu0
        %6055 = vmatpush.bf16.msra.mxu0 %v5610
        %6056 = vmatpush.bf16.msra.mxu0 %v5609
        %6057 = vmatpush.bf16.msra.mxu0 %v5608
        %6058 = vmatpush.bf16.msra.mxu0 %v5607
        %6059 = vmatpush.bf16.msra.mxu0 %v5606
        %6060 = vmatpush.bf16.msra.mxu0 %v5605
        %6061 = vmatpush.bf16.msra.mxu0 %v5604
        %6062 = vmatpush.bf16.msra.mxu0 %v5603
        %6063 = vmatmul.bf16.gmra.mxu0 %v5063
        %v6064 = vpop.f32.mrf.mxu0
        %v6065 = vadd.f32 %v5976, %v6064
        %v6066 = vpop.f32.mrf.mxu0
        %v6067 = vadd.f32 %v5978, %v6066
        %6068 = vmatmul.bf16.gmra.mxu0 %v5071
        %v6069 = vpop.f32.mrf.mxu0
        %v6070 = vadd.f32 %v5981, %v6069
        %v6071 = vpop.f32.mrf.mxu0
        %v6072 = vadd.f32 %v5983, %v6071
        %6073 = vmatmul.bf16.gmra.mxu0 %v5079
        %v6074 = vpop.f32.mrf.mxu0
        %v6075 = vadd.f32 %v5986, %v6074
        %v6076 = vpop.f32.mrf.mxu0
        %v6077 = vadd.f32 %v5988, %v6076
        %6078 = vmatmul.bf16.gmra.mxu0 %v5087
        %v6079 = vpop.f32.mrf.mxu0
        %v6080 = vadd.f32 %v5991, %v6079
        %v6081 = vpop.f32.mrf.mxu0
        %v6082 = vadd.f32 %v5993, %v6081
        %6083 = vmatmul.bf16.gmra.mxu0 %v5095
        %v6084 = vpop.f32.mrf.mxu0
        %v6085 = vadd.f32 %v5996, %v6084
        %v6086 = vpop.f32.mrf.mxu0
        %v6087 = vadd.f32 %v5998, %v6086
        %6088 = vmatmul.bf16.gmra.mxu0 %v5103
        %v6089 = vpop.f32.mrf.mxu0
        %v6090 = vadd.f32 %v6001, %v6089
        %v6091 = vpop.f32.mrf.mxu0
        %v6092 = vadd.f32 %v6003, %v6091
        %6093 = vmatmul.bf16.gmra.mxu0 %v5111
        %v6094 = vpop.f32.mrf.mxu0
        %v6095 = vadd.f32 %v6006, %v6094
        %v6096 = vpop.f32.mrf.mxu0
        %v6097 = vadd.f32 %v6008, %v6096
        %6098 = vmatmul.bf16.gmra.mxu0 %v5119
        %v6099 = vpop.f32.mrf.mxu0
        %v6100 = vadd.f32 %v6011, %v6099
        %v6101 = vpop.f32.mrf.mxu0
        %v6102 = vadd.f32 %v6013, %v6101
        %6103 = vmatmul.bf16.gmra.mxu0 %v5127
        %v6104 = vpop.f32.mrf.mxu0
        %v6105 = vadd.f32 %v6016, %v6104
        %v6106 = vpop.f32.mrf.mxu0
        %v6107 = vadd.f32 %v6018, %v6106
        %6108 = vmatmul.bf16.gmra.mxu0 %v5135
        %v6109 = vpop.f32.mrf.mxu0
        %v6110 = vadd.f32 %v6021, %v6109
        %v6111 = vpop.f32.mrf.mxu0
        %v6112 = vadd.f32 %v6023, %v6111
        %6113 = vmatmul.bf16.gmra.mxu0 %v5143
        %v6114 = vpop.f32.mrf.mxu0
        %v6115 = vadd.f32 %v6026, %v6114
        %v6116 = vpop.f32.mrf.mxu0
        %v6117 = vadd.f32 %v6028, %v6116
        %6118 = vmatmul.bf16.gmra.mxu0 %v5151
        %v6119 = vpop.f32.mrf.mxu0
        %v6120 = vadd.f32 %v6031, %v6119
        %v6121 = vpop.f32.mrf.mxu0
        %v6122 = vadd.f32 %v6033, %v6121
        %6123 = vmatmul.bf16.gmra.mxu0 %v5159
        %v6124 = vpop.f32.mrf.mxu0
        %v6125 = vadd.f32 %v6036, %v6124
        %v6126 = vpop.f32.mrf.mxu0
        %v6127 = vadd.f32 %v6038, %v6126
        %6128 = vmatmul.bf16.gmra.mxu0 %v5167
        %v6129 = vpop.f32.mrf.mxu0
        %v6130 = vadd.f32 %v6041, %v6129
        %v6131 = vpop.f32.mrf.mxu0
        %v6132 = vadd.f32 %v6043, %v6131
        %6133 = vmatmul.bf16.gmra.mxu0 %v5175
        %v6134 = vpop.f32.mrf.mxu0
        %v6135 = vadd.f32 %v6046, %v6134
        %v6136 = vpop.f32.mrf.mxu0
        %v6137 = vadd.f32 %v6048, %v6136
        %6138 = vmatmul.bf16.gmra.mxu0 %v5183
        %v6139 = vpop.f32.mrf.mxu0
        %v6140 = vadd.f32 %v6051, %v6139
        %v6141 = vpop.f32.mrf.mxu0
        %v6142 = vadd.f32 %v6053, %v6141
        %6143 = vdwg.mxu0
        %6144 = vmatpush.bf16.msra.mxu0 %v5618
        %6145 = vmatpush.bf16.msra.mxu0 %v5617
        %6146 = vmatpush.bf16.msra.mxu0 %v5616
        %6147 = vmatpush.bf16.msra.mxu0 %v5615
        %6148 = vmatpush.bf16.msra.mxu0 %v5614
        %6149 = vmatpush.bf16.msra.mxu0 %v5613
        %6150 = vmatpush.bf16.msra.mxu0 %v5612
        %6151 = vmatpush.bf16.msra.mxu0 %v5611
        %6152 = vmatmul.bf16.gmra.mxu0 %v5064
        %v6153 = vpop.f32.mrf.mxu0
        %v6154 = vadd.f32 %v6065, %v6153
        %v6155 = vpop.f32.mrf.mxu0
        %v6156 = vadd.f32 %v6067, %v6155
        %6157 = vmatmul.bf16.gmra.mxu0 %v5072
        %v6158 = vpop.f32.mrf.mxu0
        %v6159 = vadd.f32 %v6070, %v6158
        %v6160 = vpop.f32.mrf.mxu0
        %v6161 = vadd.f32 %v6072, %v6160
        %6162 = vmatmul.bf16.gmra.mxu0 %v5080
        %v6163 = vpop.f32.mrf.mxu0
        %v6164 = vadd.f32 %v6075, %v6163
        %v6165 = vpop.f32.mrf.mxu0
        %v6166 = vadd.f32 %v6077, %v6165
        %6167 = vmatmul.bf16.gmra.mxu0 %v5088
        %v6168 = vpop.f32.mrf.mxu0
        %v6169 = vadd.f32 %v6080, %v6168
        %v6170 = vpop.f32.mrf.mxu0
        %v6171 = vadd.f32 %v6082, %v6170
        %6172 = vmatmul.bf16.gmra.mxu0 %v5096
        %v6173 = vpop.f32.mrf.mxu0
        %v6174 = vadd.f32 %v6085, %v6173
        %v6175 = vpop.f32.mrf.mxu0
        %v6176 = vadd.f32 %v6087, %v6175
        %6177 = vmatmul.bf16.gmra.mxu0 %v5104
        %v6178 = vpop.f32.mrf.mxu0
        %v6179 = vadd.f32 %v6090, %v6178
        %v6180 = vpop.f32.mrf.mxu0
        %v6181 = vadd.f32 %v6092, %v6180
        %6182 = vmatmul.bf16.gmra.mxu0 %v5112
        %v6183 = vpop.f32.mrf.mxu0
        %v6184 = vadd.f32 %v6095, %v6183
        %v6185 = vpop.f32.mrf.mxu0
        %v6186 = vadd.f32 %v6097, %v6185
        %6187 = vmatmul.bf16.gmra.mxu0 %v5120
        %v6188 = vpop.f32.mrf.mxu0
        %v6189 = vadd.f32 %v6100, %v6188
        %v6190 = vpop.f32.mrf.mxu0
        %v6191 = vadd.f32 %v6102, %v6190
        %6192 = vmatmul.bf16.gmra.mxu0 %v5128
        %v6193 = vpop.f32.mrf.mxu0
        %v6194 = vadd.f32 %v6105, %v6193
        %v6195 = vpop.f32.mrf.mxu0
        %v6196 = vadd.f32 %v6107, %v6195
        %6197 = vmatmul.bf16.gmra.mxu0 %v5136
        %v6198 = vpop.f32.mrf.mxu0
        %v6199 = vadd.f32 %v6110, %v6198
        %v6200 = vpop.f32.mrf.mxu0
        %v6201 = vadd.f32 %v6112, %v6200
        %6202 = vmatmul.bf16.gmra.mxu0 %v5144
        %v6203 = vpop.f32.mrf.mxu0
        %v6204 = vadd.f32 %v6115, %v6203
        %v6205 = vpop.f32.mrf.mxu0
        %v6206 = vadd.f32 %v6117, %v6205
        %6207 = vmatmul.bf16.gmra.mxu0 %v5152
        %v6208 = vpop.f32.mrf.mxu0
        %v6209 = vadd.f32 %v6120, %v6208
        %v6210 = vpop.f32.mrf.mxu0
        %v6211 = vadd.f32 %v6122, %v6210
        %6212 = vmatmul.bf16.gmra.mxu0 %v5160
        %v6213 = vpop.f32.mrf.mxu0
        %v6214 = vadd.f32 %v6125, %v6213
        %v6215 = vpop.f32.mrf.mxu0
        %v6216 = vadd.f32 %v6127, %v6215
        %6217 = vmatmul.bf16.gmra.mxu0 %v5168
        %v6218 = vpop.f32.mrf.mxu0
        %v6219 = vadd.f32 %v6130, %v6218
        %v6220 = vpop.f32.mrf.mxu0
        %v6221 = vadd.f32 %v6132, %v6220
        %6222 = vmatmul.bf16.gmra.mxu0 %v5176
        %v6223 = vpop.f32.mrf.mxu0
        %v6224 = vadd.f32 %v6135, %v6223
        %v6225 = vpop.f32.mrf.mxu0
        %v6226 = vadd.f32 %v6137, %v6225
        %6227 = vmatmul.bf16.gmra.mxu0 %v5184
        %v6228 = vpop.f32.mrf.mxu0
        %v6229 = vadd.f32 %v6140, %v6228
        %v6230 = vpop.f32.mrf.mxu0
        %v6231 = vadd.f32 %v6142, %v6230
        %6232 = vdwg.mxu0
        %6233 = vmatpush.bf16.msra.mxu0 %v5626
        %6234 = vmatpush.bf16.msra.mxu0 %v5625
        %6235 = vmatpush.bf16.msra.mxu0 %v5624
        %6236 = vmatpush.bf16.msra.mxu0 %v5623
        %6237 = vmatpush.bf16.msra.mxu0 %v5622
        %6238 = vmatpush.bf16.msra.mxu0 %v5621
        %6239 = vmatpush.bf16.msra.mxu0 %v5620
        %6240 = vmatpush.bf16.msra.mxu0 %v5619
        %6241 = vmatmul.bf16.gmra.mxu0 %v5065
        %v6242 = vpop.f32.mrf.mxu0
        %v6243 = vadd.f32 %v6154, %v6242
        %v6244 = vpop.f32.mrf.mxu0
        %v6245 = vadd.f32 %v6156, %v6244
        %6246 = vmatmul.bf16.gmra.mxu0 %v5073
        %v6247 = vpop.f32.mrf.mxu0
        %v6248 = vadd.f32 %v6159, %v6247
        %v6249 = vpop.f32.mrf.mxu0
        %v6250 = vadd.f32 %v6161, %v6249
        %6251 = vmatmul.bf16.gmra.mxu0 %v5081
        %v6252 = vpop.f32.mrf.mxu0
        %v6253 = vadd.f32 %v6164, %v6252
        %v6254 = vpop.f32.mrf.mxu0
        %v6255 = vadd.f32 %v6166, %v6254
        %6256 = vmatmul.bf16.gmra.mxu0 %v5089
        %v6257 = vpop.f32.mrf.mxu0
        %v6258 = vadd.f32 %v6169, %v6257
        %v6259 = vpop.f32.mrf.mxu0
        %v6260 = vadd.f32 %v6171, %v6259
        %6261 = vmatmul.bf16.gmra.mxu0 %v5097
        %v6262 = vpop.f32.mrf.mxu0
        %v6263 = vadd.f32 %v6174, %v6262
        %v6264 = vpop.f32.mrf.mxu0
        %v6265 = vadd.f32 %v6176, %v6264
        %6266 = vmatmul.bf16.gmra.mxu0 %v5105
        %v6267 = vpop.f32.mrf.mxu0
        %v6268 = vadd.f32 %v6179, %v6267
        %v6269 = vpop.f32.mrf.mxu0
        %v6270 = vadd.f32 %v6181, %v6269
        %6271 = vmatmul.bf16.gmra.mxu0 %v5113
        %v6272 = vpop.f32.mrf.mxu0
        %v6273 = vadd.f32 %v6184, %v6272
        %v6274 = vpop.f32.mrf.mxu0
        %v6275 = vadd.f32 %v6186, %v6274
        %6276 = vmatmul.bf16.gmra.mxu0 %v5121
        %v6277 = vpop.f32.mrf.mxu0
        %v6278 = vadd.f32 %v6189, %v6277
        %v6279 = vpop.f32.mrf.mxu0
        %v6280 = vadd.f32 %v6191, %v6279
        %6281 = vmatmul.bf16.gmra.mxu0 %v5129
        %v6282 = vpop.f32.mrf.mxu0
        %v6283 = vadd.f32 %v6194, %v6282
        %v6284 = vpop.f32.mrf.mxu0
        %v6285 = vadd.f32 %v6196, %v6284
        %6286 = vmatmul.bf16.gmra.mxu0 %v5137
        %v6287 = vpop.f32.mrf.mxu0
        %v6288 = vadd.f32 %v6199, %v6287
        %v6289 = vpop.f32.mrf.mxu0
        %v6290 = vadd.f32 %v6201, %v6289
        %6291 = vmatmul.bf16.gmra.mxu0 %v5145
        %v6292 = vpop.f32.mrf.mxu0
        %v6293 = vadd.f32 %v6204, %v6292
        %v6294 = vpop.f32.mrf.mxu0
        %v6295 = vadd.f32 %v6206, %v6294
        %6296 = vmatmul.bf16.gmra.mxu0 %v5153
        %v6297 = vpop.f32.mrf.mxu0
        %v6298 = vadd.f32 %v6209, %v6297
        %v6299 = vpop.f32.mrf.mxu0
        %v6300 = vadd.f32 %v6211, %v6299
        %6301 = vmatmul.bf16.gmra.mxu0 %v5161
        %v6302 = vpop.f32.mrf.mxu0
        %v6303 = vadd.f32 %v6214, %v6302
        %v6304 = vpop.f32.mrf.mxu0
        %v6305 = vadd.f32 %v6216, %v6304
        %6306 = vmatmul.bf16.gmra.mxu0 %v5169
        %v6307 = vpop.f32.mrf.mxu0
        %v6308 = vadd.f32 %v6219, %v6307
        %v6309 = vpop.f32.mrf.mxu0
        %v6310 = vadd.f32 %v6221, %v6309
        %6311 = vmatmul.bf16.gmra.mxu0 %v5177
        %v6312 = vpop.f32.mrf.mxu0
        %v6313 = vadd.f32 %v6224, %v6312
        %v6314 = vpop.f32.mrf.mxu0
        %v6315 = vadd.f32 %v6226, %v6314
        %6316 = vmatmul.bf16.gmra.mxu0 %v5185
        %v6317 = vpop.f32.mrf.mxu0
        %v6318 = vadd.f32 %v6229, %v6317
        %v6319 = vpop.f32.mrf.mxu0
        %v6320 = vadd.f32 %v6231, %v6319
        %6321 = vdwg.mxu0
        %6322 = vmatpush.bf16.msra.mxu0 %v5634
        %6323 = vmatpush.bf16.msra.mxu0 %v5633
        %6324 = vmatpush.bf16.msra.mxu0 %v5632
        %6325 = vmatpush.bf16.msra.mxu0 %v5631
        %6326 = vmatpush.bf16.msra.mxu0 %v5630
        %6327 = vmatpush.bf16.msra.mxu0 %v5629
        %6328 = vmatpush.bf16.msra.mxu0 %v5628
        %6329 = vmatpush.bf16.msra.mxu0 %v5627
        %6330 = vmatmul.bf16.gmra.mxu0 %v5066
        %v6331 = vpop.f32.mrf.mxu0
        %v6332 = vadd.f32 %v6243, %v6331
        %v6333 = vpop.f32.mrf.mxu0
        %v6334 = vadd.f32 %v6245, %v6333
        %6335 = vmatmul.bf16.gmra.mxu0 %v5074
        %v6336 = vpop.f32.mrf.mxu0
        %v6337 = vadd.f32 %v6248, %v6336
        %v6338 = vpop.f32.mrf.mxu0
        %v6339 = vadd.f32 %v6250, %v6338
        %6340 = vmatmul.bf16.gmra.mxu0 %v5082
        %v6341 = vpop.f32.mrf.mxu0
        %v6342 = vadd.f32 %v6253, %v6341
        %v6343 = vpop.f32.mrf.mxu0
        %v6344 = vadd.f32 %v6255, %v6343
        %6345 = vmatmul.bf16.gmra.mxu0 %v5090
        %v6346 = vpop.f32.mrf.mxu0
        %v6347 = vadd.f32 %v6258, %v6346
        %v6348 = vpop.f32.mrf.mxu0
        %v6349 = vadd.f32 %v6260, %v6348
        %6350 = vmatmul.bf16.gmra.mxu0 %v5098
        %v6351 = vpop.f32.mrf.mxu0
        %v6352 = vadd.f32 %v6263, %v6351
        %v6353 = vpop.f32.mrf.mxu0
        %v6354 = vadd.f32 %v6265, %v6353
        %6355 = vmatmul.bf16.gmra.mxu0 %v5106
        %v6356 = vpop.f32.mrf.mxu0
        %v6357 = vadd.f32 %v6268, %v6356
        %v6358 = vpop.f32.mrf.mxu0
        %v6359 = vadd.f32 %v6270, %v6358
        %6360 = vmatmul.bf16.gmra.mxu0 %v5114
        %v6361 = vpop.f32.mrf.mxu0
        %v6362 = vadd.f32 %v6273, %v6361
        %v6363 = vpop.f32.mrf.mxu0
        %v6364 = vadd.f32 %v6275, %v6363
        %6365 = vmatmul.bf16.gmra.mxu0 %v5122
        %v6366 = vpop.f32.mrf.mxu0
        %v6367 = vadd.f32 %v6278, %v6366
        %v6368 = vpop.f32.mrf.mxu0
        %v6369 = vadd.f32 %v6280, %v6368
        %6370 = vmatmul.bf16.gmra.mxu0 %v5130
        %v6371 = vpop.f32.mrf.mxu0
        %v6372 = vadd.f32 %v6283, %v6371
        %v6373 = vpop.f32.mrf.mxu0
        %v6374 = vadd.f32 %v6285, %v6373
        %6375 = vmatmul.bf16.gmra.mxu0 %v5138
        %v6376 = vpop.f32.mrf.mxu0
        %v6377 = vadd.f32 %v6288, %v6376
        %v6378 = vpop.f32.mrf.mxu0
        %v6379 = vadd.f32 %v6290, %v6378
        %6380 = vmatmul.bf16.gmra.mxu0 %v5146
        %v6381 = vpop.f32.mrf.mxu0
        %v6382 = vadd.f32 %v6293, %v6381
        %v6383 = vpop.f32.mrf.mxu0
        %v6384 = vadd.f32 %v6295, %v6383
        %6385 = vmatmul.bf16.gmra.mxu0 %v5154
        %v6386 = vpop.f32.mrf.mxu0
        %v6387 = vadd.f32 %v6298, %v6386
        %v6388 = vpop.f32.mrf.mxu0
        %v6389 = vadd.f32 %v6300, %v6388
        %6390 = vmatmul.bf16.gmra.mxu0 %v5162
        %v6391 = vpop.f32.mrf.mxu0
        %v6392 = vadd.f32 %v6303, %v6391
        %v6393 = vpop.f32.mrf.mxu0
        %v6394 = vadd.f32 %v6305, %v6393
        %6395 = vmatmul.bf16.gmra.mxu0 %v5170
        %v6396 = vpop.f32.mrf.mxu0
        %v6397 = vadd.f32 %v6308, %v6396
        %v6398 = vpop.f32.mrf.mxu0
        %v6399 = vadd.f32 %v6310, %v6398
        %6400 = vmatmul.bf16.gmra.mxu0 %v5178
        %v6401 = vpop.f32.mrf.mxu0
        %v6402 = vadd.f32 %v6313, %v6401
        %v6403 = vpop.f32.mrf.mxu0
        %v6404 = vadd.f32 %v6315, %v6403
        %6405 = vmatmul.bf16.gmra.mxu0 %v5186
        %v6406 = vpop.f32.mrf.mxu0
        %v6407 = vadd.f32 %v6318, %v6406
        %v6408 = vpop.f32.mrf.mxu0
        %v6409 = vadd.f32 %v6320, %v6408
        %6410 = vdwg.mxu0
        %v6411 = vadd.f32 %v4387, %v6332
        %v6412 = vadd.f32 %v4388, %v6334
        %v6413 = vadd.f32 %v4389, %v6337
        %v6414 = vadd.f32 %v4390, %v6339
        %v6415 = vadd.f32 %v4391, %v6342
        %v6416 = vadd.f32 %v4392, %v6344
        %v6417 = vadd.f32 %v4393, %v6347
        %v6418 = vadd.f32 %v4394, %v6349
        %v6419 = vadd.f32 %v4395, %v6352
        %v6420 = vadd.f32 %v4396, %v6354
        %v6421 = vadd.f32 %v4397, %v6357
        %v6422 = vadd.f32 %v4398, %v6359
        %v6423 = vadd.f32 %v4399, %v6362
        %v6424 = vadd.f32 %v4400, %v6364
        %v6425 = vadd.f32 %v4401, %v6367
        %v6426 = vadd.f32 %v4402, %v6369
        %v6427 = vadd.f32 %v4403, %v6372
        %v6428 = vadd.f32 %v4404, %v6374
        %v6429 = vadd.f32 %v4405, %v6377
        %v6430 = vadd.f32 %v4406, %v6379
        %v6431 = vadd.f32 %v4407, %v6382
        %v6432 = vadd.f32 %v4408, %v6384
        %v6433 = vadd.f32 %v4409, %v6387
        %v6434 = vadd.f32 %v4410, %v6389
        %v6435 = vadd.f32 %v4411, %v6392
        %v6436 = vadd.f32 %v4412, %v6394
        %v6437 = vadd.f32 %v4413, %v6397
        %v6438 = vadd.f32 %v4414, %v6399
        %v6439 = vadd.f32 %v4415, %v6402
        %v6440 = vadd.f32 %v4416, %v6404
        %v6441 = vadd.f32 %v4417, %v6407
        %v6442 = vadd.f32 %v4418, %v6409
        %6443 = vst [vmem:[#allocation7] sm:$0xff] %v6411
        %6444 = vst [vmem:[#allocation7 + $0x8] sm:$0xff] %v6412
        %6445 = vst [vmem:[#allocation7 + $0x10] sm:$0xff] %v6413
        %6446 = vst [vmem:[#allocation7 + $0x18] sm:$0xff] %v6414
        %6447 = vst [vmem:[#allocation7 + $0x20] sm:$0xff] %v6415
        %6448 = vst [vmem:[#allocation7 + $0x28] sm:$0xff] %v6416
        %6449 = vst [vmem:[#allocation7 + $0x30] sm:$0xff] %v6417
        %6450 = vst [vmem:[#allocation7 + $0x38] sm:$0xff] %v6418
        %6451 = vst [vmem:[#allocation7 + $0x40] sm:$0xff] %v6419
        %6452 = vst [vmem:[#allocation7 + $0x48] sm:$0xff] %v6420
        %6453 = vst [vmem:[#allocation7 + $0x50] sm:$0xff] %v6421
        %6454 = vst [vmem:[#allocation7 + $0x58] sm:$0xff] %v6422
        %6455 = vst [vmem:[#allocation7 + $0x60] sm:$0xff] %v6423
        %6456 = vst [vmem:[#allocation7 + $0x68] sm:$0xff] %v6424
        %6457 = vst [vmem:[#allocation7 + $0x70] sm:$0xff] %v6425
        %6458 = vst [vmem:[#allocation7 + $0x78] sm:$0xff] %v6426
        %6459 = vst [vmem:[#allocation7 + $0x80] sm:$0xff] %v6427
        %6460 = vst [vmem:[#allocation7 + $0x88] sm:$0xff] %v6428
        %6461 = vst [vmem:[#allocation7 + $0x90] sm:$0xff] %v6429
        %6462 = vst [vmem:[#allocation7 + $0x98] sm:$0xff] %v6430
        %6463 = vst [vmem:[#allocation7 + $0xa0] sm:$0xff] %v6431
        %6464 = vst [vmem:[#allocation7 + $0xa8] sm:$0xff] %v6432
        %6465 = vst [vmem:[#allocation7 + $0xb0] sm:$0xff] %v6433
        %6466 = vst [vmem:[#allocation7 + $0xb8] sm:$0xff] %v6434
        %6467 = vst [vmem:[#allocation7 + $0xc0] sm:$0xff] %v6435
        %6468 = vst [vmem:[#allocation7 + $0xc8] sm:$0xff] %v6436
        %6469 = vst [vmem:[#allocation7 + $0xd0] sm:$0xff] %v6437
        %6470 = vst [vmem:[#allocation7 + $0xd8] sm:$0xff] %v6438
        %6471 = vst [vmem:[#allocation7 + $0xe0] sm:$0xff] %v6439
        %6472 = vst [vmem:[#allocation7 + $0xe8] sm:$0xff] %v6440
        %6473 = vst [vmem:[#allocation7 + $0xf0] sm:$0xff] %v6441
        %6474 = vst [vmem:[#allocation7 + $0xf8] sm:$0xff] %v6442
        // Predicated region
        $region45: #{tpu_custom_call.1} parent=35 // pred_check
          %p6475 = pneg %p150
        $region46: #{tpu_custom_call.1} parent=35 // pred_check_branch
          %6477 = sbr.rel (%p6475) target = $region48
        $region47: #{tpu_custom_call.1} parent=35 // pred_region
          %s6478 = smul.u32 32, %s23
          %6480 = vsyncadd [#allocation6], 0
          %s6481 = smul.addr %s6478, 8
          %s6482 = scalar_lea.hbm %s4, %s6481
          %s6483 = sshll.u32 [#allocation7], 4
          %s6484 = int_to_ptr.vmem [resolvable:$true] %s6483
          %s6485 = sshll.u32 %s6482, 4
          %s6486 = int_to_ptr.hbm [resolvable:$true] %s6485
          %6491 = dma.vmem_to_hbm [thread:$0]  %s6484, 4096, %s6486, [#allocation6], 128, 128, 8
        $region48: #{tpu_custom_call.1} parent=35 // pred_fallthru
          _
        // Predicated region
        $region49: #{tpu_custom_call.1} parent=35 // pred_check
          %p6492 = pneg %p150
        $region50: #{tpu_custom_call.1} parent=35 // pred_check_branch
          %6494 = sbr.rel (%p6492) target = $region52
        $region51: #{tpu_custom_call.1} parent=35 // pred_region
          %6496 = dma.done [#allocation6], 4096
        $region52: #{tpu_custom_call.1} parent=35 // pred_fallthru
          _
      $region36: #{tpu_custom_call.1} parent=5 // pred_fallthru
        _
      %p6497 = scmp.le.s32.totalorder 2, %s14
      // Predicated region
      $region53: #{tpu_custom_call.1} parent=5 // pred_check
        %p6498 = pneg %p6497
      $region54: #{tpu_custom_call.1} parent=5 // pred_check_branch
        %6500 = sbr.rel (%p6498) target = $region56
      $region55: #{tpu_custom_call.1} parent=5 // pred_region
        %s6501 = ssub.s32 %s14, 2
      $region56: #{tpu_custom_call.1} parent=5 // pred_fallthru
        _
    $region6: #{tpu_custom_call.1} parent=1 // loop_footer
      %s18 = sadd.s32 1, %s14
    $region7: #{tpu_custom_call.1} parent=1 // loop_footer_branch
      %13 = sbr.rel target = $region3
    $region8: #{tpu_custom_call.1} parent=1 // loop_exit
      _
    %6502 = vsyncpa [#allocation5], 1
    %s6503 = scalar_lea.sflag [#allocation5], 1
    %6504 = vsyncpa %s6503, 1
    %6505 = vsyncpa [#allocation6], 1
    %s6506 = scalar_lea.sflag [#allocation6], 1
    %6507 = vsyncpa %s6506, 1

</llo_original>
